<compile_context>
chip_gen: v7x
topology: tpu7x:2x2x1
jax: 0.10.0
libtpu: 0.0.40
codegen_flags: <defaults>
</compile_context>

<pallas_src>
import functools

import jax
import jax.numpy as jnp
from jax.experimental import pallas as pl
from jax.experimental.pallas import tpu as pltpu


def _elu(v):
    # PyTorch nn.ELU(alpha=1.0).  exp(v)-1 (Mosaic lowering-safe); matches the
    # reference below; negligible difference vs. PyTorch's expm1.
    return jnp.where(v > 0, v, jnp.exp(v) - 1.0)


def _hshift(x, dh):
    """shifted[h, w, c] = x[h + dh, w, c], zero-filled outside [0, H).

    H is the leading (untiled) axis, so slice + concat is just vreg relabeling.
    """
    if dh == 0:
        return x
    zero = jnp.zeros((abs(dh),) + x.shape[1:], x.dtype)
    if dh > 0:
        return jnp.concatenate([x[dh:], zero], axis=0)
    return jnp.concatenate([zero, x[:dh]], axis=0)


def cpm_kernel(x_ref, w_al_ref, b_al_ref,
               wd0_ref, wp0_ref, wd1_ref, wp1_ref, wd2_ref, wp2_ref,
               wc_ref, bc_ref,
               out_ref, *, w_valid):
    H, W, Cin = x_ref.shape
    Cout = w_al_ref.shape[1]

    # ---- hoisted W-border masks (built once, reused by every shift site) ----
    # w_valid is the unpadded image width; columns >= w_valid are scratch padding.
    w_idx = jax.lax.broadcasted_iota(jnp.int32, (H, W, Cout), 1)
    mask_rd_wp1 = w_idx < (w_valid - 1)   # reading column w+1 is in-image
    mask_rd_wm1 = w_idx >= 1              # reading column w-1 is in-image

    def read_wp1(x):   # x[:, w+1, :], zero outside the (unpadded) image
        return jnp.where(mask_rd_wp1, pltpu.roll(x, shift=W - 1, axis=1), 0.0)

    def read_wm1(x):   # x[:, w-1, :], zero outside the (unpadded) image
        return jnp.where(mask_rd_wm1, pltpu.roll(x, shift=1, axis=1), 0.0)

    # ---- align: 1x1 conv as one MXU matmul + bias + ReLU ----
    x = x_ref[...].reshape(H * W, Cin).astype(jnp.float32)
    a = jnp.dot(x, w_al_ref[...], preferred_element_type=jnp.float32)
    a = jnp.maximum(a + b_al_ref[...], 0.0).reshape(H, W, Cout)

    # ---- trunk: 3 x (depthwise 3x3 -> ELU -> pointwise 1x1 -> ELU) ----
    t = a
    for wd_ref, wp_ref in ((wd0_ref, wp0_ref),
                           (wd1_ref, wp1_ref),
                           (wd2_ref, wp2_ref)):
        wd = wd_ref[...]                              # (3, 3, Cout)
        t_m1 = read_wm1(t)                            # t[:, w-1, :]  (kw = 0)
        t_p1 = read_wp1(t)                            # t[:, w+1, :]  (kw = 2)
        rows = []
        for kh in range(3):
            row = (t_m1 * wd[kh:kh + 1, 0:1, :]
                   + t   * wd[kh:kh + 1, 1:2, :]
                   + t_p1 * wd[kh:kh + 1, 2:3, :])
            rows.append(_hshift(row, kh - 1))
        t = _elu(rows[0] + rows[1] + rows[2])
        # pointwise 1x1 (no bias) + ELU
        t = _elu(jnp.dot(t.reshape(H * W, Cout), wp_ref[...],
                         preferred_element_type=jnp.float32)).reshape(H, W, Cout)

    # ---- residual add + final 3x3 conv + bias + ReLU ----
    # im2col the kw axis into one (H*W, 3C) LHS, one fused (3C, 3C) matmul for all
    # three kh taps, then H-shift only the narrow (H,W,C) results before summing.
    s = a + t
    wide = jnp.concatenate([read_wm1(s), s, read_wp1(s)], axis=-1)   # (H, W, 3C)
    r = jnp.dot(wide.reshape(H * W, 3 * Cout), wc_ref[...],
                preferred_element_type=jnp.float32).reshape(H, W, 3 * Cout)
    acc = (_hshift(r[:, :, :Cout], -1)          # kh = 0 reads row h-1
           + r[:, :, Cout:2 * Cout]             # kh = 1
           + _hshift(r[:, :, 2 * Cout:], +1))   # kh = 2 reads row h+1
    y = jnp.maximum(acc + bc_ref[...], 0.0)
    out_ref[...] = y.astype(out_ref.dtype)


def _full_spec(shape):
    nd = len(shape)
    return pl.BlockSpec(shape, lambda n, _nd=nd: (0,) * _nd)


def cpm_forward_nhwc(x_nhwc, params):
    """Production entry point: NHWC in / NHWC out, no layout transposes."""
    N, H, W_in, Cin = x_nhwc.shape
    Cout = params["w_align"].shape[1]

    # Pad W (f32 sublane axis) to a multiple of 8 so every (H,W,C)->(H*W,C)
    # reshape feeding the MXU is a layout no-op (e.g. OpenPose 46 -> 48).
    W_pad = ((W_in + 7) // 8) * 8
    if W_pad != W_in:
        x_nhwc = jnp.pad(x_nhwc, ((0, 0), (0, 0), (0, W_pad - W_in), (0, 0)))

    # Final conv weight: (kh, kw, cin, cout) -> fused (3C, 3C); column block k
    # holds the kh=k tap (kw-major / cin-minor rows to match `wide`).
    wc3 = params["w_conv"].reshape(3, 3 * Cout, Cout)
    wc_fused = jnp.concatenate([wc3[0], wc3[1], wc3[2]], axis=-1)

    y = pl.pallas_call(
        functools.partial(cpm_kernel, w_valid=W_in),
        out_shape=jax.ShapeDtypeStruct((N, H, W_pad, Cout), x_nhwc.dtype),
        grid_spec=pltpu.PrefetchScalarGridSpec(
            num_scalar_prefetch=0,
            grid=(N,),
            in_specs=[
                pl.BlockSpec((pl.Squeezed(), H, W_pad, Cin), lambda n: (n, 0, 0, 0)),
                _full_spec((Cin, Cout)),            # align weight
                _full_spec((1, Cout)),              # align bias
                _full_spec((3, 3, Cout)), _full_spec((Cout, Cout)),   # trunk 0
                _full_spec((3, 3, Cout)), _full_spec((Cout, Cout)),   # trunk 1
                _full_spec((3, 3, Cout)), _full_spec((Cout, Cout)),   # trunk 2
                _full_spec((3 * Cout, 3 * Cout)),   # final conv weight (fused)
                _full_spec((1, Cout)),              # final conv bias
            ],
            out_specs=pl.BlockSpec((pl.Squeezed(), H, W_pad, Cout),
                                   lambda n: (n, 0, 0, 0)),
        ),
        compiler_params=pltpu.CompilerParams(
            dimension_semantics=("parallel",),       # batch items are independent
            vmem_limit_bytes=32 * 1024 * 1024),
    )(x_nhwc,
      params["w_align"], params["b_align"],
      params["w_dw0"], params["w_pw0"],
      params["w_dw1"], params["w_pw1"],
      params["w_dw2"], params["w_pw2"],
      wc_fused, params["b_conv"])

    if W_pad != W_in:
        y = y[:, :, :W_in, :]
    return y


@jax.jit
def cpm_forward(x_nchw, params):
    """PyTorch-compatible NCHW interface (transposes only at the boundary)."""
    x = jnp.transpose(x_nchw, (0, 2, 3, 1))          # NCHW -> NHWC
    y = cpm_forward_nhwc(x, params)
    return jnp.transpose(y, (0, 3, 1, 2))            # NHWC -> NCHW


def cpm_reference(x_nchw, p):
    """Pure-JAX reference (lax.conv) for correctness checking."""
    x = jnp.transpose(x_nchw, (0, 2, 3, 1))
    dn = ("NHWC", "HWIO", "NHWC")

    def conv2d(inp, w, padding):
        return jax.lax.conv_general_dilated(inp, w, (1, 1), padding,
                                            dimension_numbers=dn)

    def dwconv(inp, w):  # w: (3, 3, C)
        C = inp.shape[-1]
        return jax.lax.conv_general_dilated(inp, w.reshape(3, 3, 1, C), (1, 1),
                                            "SAME", dimension_numbers=dn,
                                            feature_group_count=C)

    Cin, Cout = p["w_align"].shape
    a = conv2d(x, p["w_align"].reshape(1, 1, Cin, Cout), "VALID")
    a = jnp.maximum(a + p["b_align"].reshape(1, 1, 1, Cout), 0.0)
    t = a
    for i in range(3):
        t = _elu(dwconv(t, p[f"w_dw{i}"]))
        t = _elu(conv2d(t, p[f"w_pw{i}"].reshape(1, 1, Cout, Cout), "VALID"))
    s = a + t
    y = conv2d(s, p["w_conv"], "SAME") + p["b_conv"].reshape(1, 1, 1, Cout)
    y = jnp.maximum(y, 0.0)
    return jnp.transpose(y, (0, 3, 1, 2))


def init_params(key, in_channels, out_channels):
    ks = jax.random.split(key, 12)
    f32 = jnp.float32
    p = {
        "w_align": jax.random.normal(ks[0], (in_channels, out_channels), f32) * 0.2,
        "b_align": jax.random.normal(ks[1], (1, out_channels), f32) * 0.05,
        "w_conv":  jax.random.normal(ks[2], (3, 3, out_channels, out_channels), f32) * 0.1,
        "b_conv":  jax.random.normal(ks[3], (1, out_channels), f32) * 0.05,
    }
    for i in range(3):
        p[f"w_dw{i}"] = jax.random.normal(ks[4 + 2 * i], (3, 3, out_channels), f32) * 0.2
        p[f"w_pw{i}"] = jax.random.normal(ks[5 + 2 * i], (out_channels, out_channels), f32) * 0.2
    return p


if __name__ == "__main__":
    key = jax.random.PRNGKey(0)
    k_x, k_p = jax.random.split(key)

    N, Cin, Cout, H, W = 2, 4, 8, 16, 16
    x = jax.random.normal(k_x, (N, Cin, H, W), jnp.float32)      # NCHW, like PyTorch
    params = init_params(k_p, Cin, Cout)

    out = cpm_forward(x, params)
    out = jax.block_until_ready(out)

    ref = jax.block_until_ready(cpm_reference(x, params))
    assert out.shape == (N, Cout, H, W), out.shape
    if not jnp.allclose(out, ref, rtol=1e-4, atol=1e-4):
        max_err = float(jnp.max(jnp.abs(out - ref)))
        raise AssertionError(f"Pallas kernel mismatch vs reference, max abs err {max_err}")

    print("KERNEL_OK")
</pallas_src>

<mosaic_0001>
module attributes {stable_mosaic.version = 11 : i64} {
  func.func @cpm_kernel(%arg0: i32, %arg1: memref<1x16x16x4xf32, #tpu.memory_space<vmem>>, %arg2: memref<4x8xf32, #tpu.memory_space<vmem>>, %arg3: memref<1x8xf32, #tpu.memory_space<vmem>>, %arg4: memref<3x3x8xf32, #tpu.memory_space<vmem>>, %arg5: memref<8x8xf32, #tpu.memory_space<vmem>>, %arg6: memref<3x3x8xf32, #tpu.memory_space<vmem>>, %arg7: memref<8x8xf32, #tpu.memory_space<vmem>>, %arg8: memref<3x3x8xf32, #tpu.memory_space<vmem>>, %arg9: memref<8x8xf32, #tpu.memory_space<vmem>>, %arg10: memref<24x24xf32, #tpu.memory_space<vmem>>, %arg11: memref<1x8xf32, #tpu.memory_space<vmem>>, %arg12: memref<1x16x16x8xf32, #tpu.memory_space<vmem>>) attributes {dimension_semantics = [#tpu.dimension_semantics<parallel>], iteration_bounds = array<i64: 2>, scalar_prefetch = 0 : i64, scratch_operands = 0 : i64, tpu.core_type = #tpu.core_type<tc>, window_params = [{transform_indices = @transform_0, window_bounds = array<i64: 1, 16, 16, 4>}, {pipeline_mode = #tpu.pipeline_mode<synchronous>, transform_indices = @transform_1, window_bounds = array<i64: 4, 8>}, {pipeline_mode = #tpu.pipeline_mode<synchronous>, transform_indices = @transform_2, window_bounds = array<i64: 1, 8>}, {pipeline_mode = #tpu.pipeline_mode<synchronous>, transform_indices = @transform_3, window_bounds = array<i64: 3, 3, 8>}, {pipeline_mode = #tpu.pipeline_mode<synchronous>, transform_indices = @transform_4, window_bounds = array<i64: 8, 8>}, {pipeline_mode = #tpu.pipeline_mode<synchronous>, transform_indices = @transform_5, window_bounds = array<i64: 3, 3, 8>}, {pipeline_mode = #tpu.pipeline_mode<synchronous>, transform_indices = @transform_6, window_bounds = array<i64: 8, 8>}, {pipeline_mode = #tpu.pipeline_mode<synchronous>, transform_indices = @transform_7, window_bounds = array<i64: 3, 3, 8>}, {pipeline_mode = #tpu.pipeline_mode<synchronous>, transform_indices = @transform_8, window_bounds = array<i64: 8, 8>}, {pipeline_mode = #tpu.pipeline_mode<synchronous>, transform_indices = @transform_9, window_bounds = array<i64: 24, 24>}, {pipeline_mode = #tpu.pipeline_mode<synchronous>, transform_indices = @transform_10, window_bounds = array<i64: 1, 8>}, {transform_indices = @transform_11, window_bounds = array<i64: 1, 16, 16, 8>}]} {
    %0 = tpu.iota {dimensions = array<i32: 1>} : vector<16x16x8xi32>
    %c15_i32 = arith.constant 15 : i32
    %1 = vector.broadcast %c15_i32 : i32 to vector<16x16x8xi32>
    %2 = arith.cmpi slt, %0, %1 : vector<16x16x8xi32>
    %c1_i32 = arith.constant 1 : i32
    %3 = vector.broadcast %c1_i32 : i32 to vector<16x16x8xi32>
    %4 = arith.cmpi sge, %0, %3 : vector<16x16x8xi32>
    %c0 = arith.constant 0 : index
    %c0_0 = arith.constant 0 : index
    %c0_1 = arith.constant 0 : index
    %c0_2 = arith.constant 0 : index
    %5 = vector.load %arg1[%c0, %c0_0, %c0_1, %c0_2] : memref<1x16x16x4xf32, #tpu.memory_space<vmem>>, vector<1x16x16x4xf32>
    %6 = vector.shape_cast %5 : vector<1x16x16x4xf32> to vector<16x16x4xf32>
    %7 = vector.shape_cast %6 : vector<16x16x4xf32> to vector<256x4xf32>
    %c0_3 = arith.constant 0 : index
    %c0_4 = arith.constant 0 : index
    %8 = vector.load %arg2[%c0_3, %c0_4] : memref<4x8xf32, #tpu.memory_space<vmem>>, vector<4x8xf32>
    %cst = arith.constant dense<0.000000e+00> : vector<256x8xf32>
    %9 = tpu.matmul %7, %8, %cst {dimension_numbers = #tpu.dot_dimension_numbers<[1], [0], [0], [1], [0, 0, 1, 1], [], []>} : vector<256x4xf32>, vector<4x8xf32>, vector<256x8xf32> -> vector<256x8xf32>
    %c0_5 = arith.constant 0 : index
    %c0_6 = arith.constant 0 : index
    %10 = vector.load %arg3[%c0_5, %c0_6] : memref<1x8xf32, #tpu.memory_space<vmem>>, vector<1x8xf32>
    %11 = vector.broadcast %10 : vector<1x8xf32> to vector<256x8xf32>
    %12 = arith.addf %9, %11 : vector<256x8xf32>
    %cst_7 = arith.constant 0.000000e+00 : f32
    %13 = vector.broadcast %cst_7 : f32 to vector<256x8xf32>
    %14 = arith.maximumf %12, %13 : vector<256x8xf32>
    %15 = vector.shape_cast %14 : vector<256x8xf32> to vector<16x16x8xf32>
    %c0_8 = arith.constant 0 : index
    %c0_9 = arith.constant 0 : index
    %c0_10 = arith.constant 0 : index
    %16 = vector.load %arg4[%c0_8, %c0_9, %c0_10] : memref<3x3x8xf32, #tpu.memory_space<vmem>>, vector<3x3x8xf32>
    %c1_i32_11 = arith.constant 1 : i32
    %17 = tpu.dynamic_rotate %15 by %c1_i32_11 dim 1 : vector<16x16x8xf32>, i32 -> vector<16x16x8xf32>
    %cst_12 = arith.constant 0.000000e+00 : f32
    %18 = vector.broadcast %cst_12 : f32 to vector<16x16x8xf32>
    %19 = arith.select %4, %17, %18 : vector<16x16x8xi1>, vector<16x16x8xf32>
    %c15_i32_13 = arith.constant 15 : i32
    %20 = tpu.dynamic_rotate %15 by %c15_i32_13 dim 1 : vector<16x16x8xf32>, i32 -> vector<16x16x8xf32>
    %cst_14 = arith.constant 0.000000e+00 : f32
    %21 = vector.broadcast %cst_14 : f32 to vector<16x16x8xf32>
    %22 = arith.select %2, %20, %21 : vector<16x16x8xi1>, vector<16x16x8xf32>
    %23 = vector.extract_strided_slice %16 {offsets = [0, 0, 0], sizes = [1, 1, 8], strides = [1, 1, 1]} : vector<3x3x8xf32> to vector<1x1x8xf32>
    %24 = vector.broadcast %23 : vector<1x1x8xf32> to vector<16x16x8xf32>
    %25 = arith.mulf %19, %24 : vector<16x16x8xf32>
    %26 = vector.extract_strided_slice %16 {offsets = [0, 1, 0], sizes = [1, 1, 8], strides = [1, 1, 1]} : vector<3x3x8xf32> to vector<1x1x8xf32>
    %27 = vector.broadcast %26 : vector<1x1x8xf32> to vector<16x16x8xf32>
    %28 = arith.mulf %15, %27 : vector<16x16x8xf32>
    %29 = arith.addf %25, %28 : vector<16x16x8xf32>
    %30 = vector.extract_strided_slice %16 {offsets = [0, 2, 0], sizes = [1, 1, 8], strides = [1, 1, 1]} : vector<3x3x8xf32> to vector<1x1x8xf32>
    %31 = vector.broadcast %30 : vector<1x1x8xf32> to vector<16x16x8xf32>
    %32 = arith.mulf %22, %31 : vector<16x16x8xf32>
    %33 = arith.addf %29, %32 : vector<16x16x8xf32>
    %cst_15 = arith.constant 0.000000e+00 : f32
    %34 = vector.broadcast %cst_15 : f32 to vector<1x16x8xf32>
    %35 = vector.extract_strided_slice %33 {offsets = [0, 0, 0], sizes = [15, 16, 8], strides = [1, 1, 1]} : vector<16x16x8xf32> to vector<15x16x8xf32>
    %36 = tpu.concatenate %34, %35 in 0 : vector<1x16x8xf32>, vector<15x16x8xf32> -> vector<16x16x8xf32>
    %37 = vector.extract_strided_slice %16 {offsets = [1, 0, 0], sizes = [1, 1, 8], strides = [1, 1, 1]} : vector<3x3x8xf32> to vector<1x1x8xf32>
    %38 = vector.broadcast %37 : vector<1x1x8xf32> to vector<16x16x8xf32>
    %39 = arith.mulf %19, %38 : vector<16x16x8xf32>
    %40 = vector.extract_strided_slice %16 {offsets = [1, 1, 0], sizes = [1, 1, 8], strides = [1, 1, 1]} : vector<3x3x8xf32> to vector<1x1x8xf32>
    %41 = vector.broadcast %40 : vector<1x1x8xf32> to vector<16x16x8xf32>
    %42 = arith.mulf %15, %41 : vector<16x16x8xf32>
    %43 = arith.addf %39, %42 : vector<16x16x8xf32>
    %44 = vector.extract_strided_slice %16 {offsets = [1, 2, 0], sizes = [1, 1, 8], strides = [1, 1, 1]} : vector<3x3x8xf32> to vector<1x1x8xf32>
    %45 = vector.broadcast %44 : vector<1x1x8xf32> to vector<16x16x8xf32>
    %46 = arith.mulf %22, %45 : vector<16x16x8xf32>
    %47 = arith.addf %43, %46 : vector<16x16x8xf32>
    %48 = vector.extract_strided_slice %16 {offsets = [2, 0, 0], sizes = [1, 1, 8], strides = [1, 1, 1]} : vector<3x3x8xf32> to vector<1x1x8xf32>
    %49 = vector.broadcast %48 : vector<1x1x8xf32> to vector<16x16x8xf32>
    %50 = arith.mulf %19, %49 : vector<16x16x8xf32>
    %51 = vector.extract_strided_slice %16 {offsets = [2, 1, 0], sizes = [1, 1, 8], strides = [1, 1, 1]} : vector<3x3x8xf32> to vector<1x1x8xf32>
    %52 = vector.broadcast %51 : vector<1x1x8xf32> to vector<16x16x8xf32>
    %53 = arith.mulf %15, %52 : vector<16x16x8xf32>
    %54 = arith.addf %50, %53 : vector<16x16x8xf32>
    %55 = vector.extract_strided_slice %16 {offsets = [2, 2, 0], sizes = [1, 1, 8], strides = [1, 1, 1]} : vector<3x3x8xf32> to vector<1x1x8xf32>
    %56 = vector.broadcast %55 : vector<1x1x8xf32> to vector<16x16x8xf32>
    %57 = arith.mulf %22, %56 : vector<16x16x8xf32>
    %58 = arith.addf %54, %57 : vector<16x16x8xf32>
    %cst_16 = arith.constant 0.000000e+00 : f32
    %59 = vector.broadcast %cst_16 : f32 to vector<1x16x8xf32>
    %60 = vector.extract_strided_slice %58 {offsets = [1, 0, 0], sizes = [15, 16, 8], strides = [1, 1, 1]} : vector<16x16x8xf32> to vector<15x16x8xf32>
    %61 = tpu.concatenate %60, %59 in 0 : vector<15x16x8xf32>, vector<1x16x8xf32> -> vector<16x16x8xf32>
    %62 = arith.addf %36, %47 : vector<16x16x8xf32>
    %63 = arith.addf %62, %61 : vector<16x16x8xf32>
    %cst_17 = arith.constant 0.000000e+00 : f32
    %64 = vector.broadcast %cst_17 : f32 to vector<16x16x8xf32>
    %65 = arith.cmpf ogt, %63, %64 : vector<16x16x8xf32>
    %66 = math.exp %63 : vector<16x16x8xf32>
    %cst_18 = arith.constant 1.000000e+00 : f32
    %67 = vector.broadcast %cst_18 : f32 to vector<16x16x8xf32>
    %68 = arith.subf %66, %67 : vector<16x16x8xf32>
    %69 = arith.select %65, %63, %68 : vector<16x16x8xi1>, vector<16x16x8xf32>
    %70 = vector.shape_cast %69 : vector<16x16x8xf32> to vector<256x8xf32>
    %c0_19 = arith.constant 0 : index
    %c0_20 = arith.constant 0 : index
    %71 = vector.load %arg5[%c0_19, %c0_20] : memref<8x8xf32, #tpu.memory_space<vmem>>, vector<8x8xf32>
    %cst_21 = arith.constant dense<0.000000e+00> : vector<256x8xf32>
    %72 = tpu.matmul %70, %71, %cst_21 {dimension_numbers = #tpu.dot_dimension_numbers<[1], [0], [0], [1], [0, 0, 1, 1], [], []>} : vector<256x8xf32>, vector<8x8xf32>, vector<256x8xf32> -> vector<256x8xf32>
    %cst_22 = arith.constant 0.000000e+00 : f32
    %73 = vector.broadcast %cst_22 : f32 to vector<256x8xf32>
    %74 = arith.cmpf ogt, %72, %73 : vector<256x8xf32>
    %75 = math.exp %72 : vector<256x8xf32>
    %cst_23 = arith.constant 1.000000e+00 : f32
    %76 = vector.broadcast %cst_23 : f32 to vector<256x8xf32>
    %77 = arith.subf %75, %76 : vector<256x8xf32>
    %78 = arith.select %74, %72, %77 : vector<256x8xi1>, vector<256x8xf32>
    %79 = vector.shape_cast %78 : vector<256x8xf32> to vector<16x16x8xf32>
    %c0_24 = arith.constant 0 : index
    %c0_25 = arith.constant 0 : index
    %c0_26 = arith.constant 0 : index
    %80 = vector.load %arg6[%c0_24, %c0_25, %c0_26] : memref<3x3x8xf32, #tpu.memory_space<vmem>>, vector<3x3x8xf32>
    %c1_i32_27 = arith.constant 1 : i32
    %81 = tpu.dynamic_rotate %79 by %c1_i32_27 dim 1 : vector<16x16x8xf32>, i32 -> vector<16x16x8xf32>
    %cst_28 = arith.constant 0.000000e+00 : f32
    %82 = vector.broadcast %cst_28 : f32 to vector<16x16x8xf32>
    %83 = arith.select %4, %81, %82 : vector<16x16x8xi1>, vector<16x16x8xf32>
    %c15_i32_29 = arith.constant 15 : i32
    %84 = tpu.dynamic_rotate %79 by %c15_i32_29 dim 1 : vector<16x16x8xf32>, i32 -> vector<16x16x8xf32>
    %cst_30 = arith.constant 0.000000e+00 : f32
    %85 = vector.broadcast %cst_30 : f32 to vector<16x16x8xf32>
    %86 = arith.select %2, %84, %85 : vector<16x16x8xi1>, vector<16x16x8xf32>
    %87 = vector.extract_strided_slice %80 {offsets = [0, 0, 0], sizes = [1, 1, 8], strides = [1, 1, 1]} : vector<3x3x8xf32> to vector<1x1x8xf32>
    %88 = vector.broadcast %87 : vector<1x1x8xf32> to vector<16x16x8xf32>
    %89 = arith.mulf %83, %88 : vector<16x16x8xf32>
    %90 = vector.extract_strided_slice %80 {offsets = [0, 1, 0], sizes = [1, 1, 8], strides = [1, 1, 1]} : vector<3x3x8xf32> to vector<1x1x8xf32>
    %91 = vector.broadcast %90 : vector<1x1x8xf32> to vector<16x16x8xf32>
    %92 = arith.mulf %79, %91 : vector<16x16x8xf32>
    %93 = arith.addf %89, %92 : vector<16x16x8xf32>
    %94 = vector.extract_strided_slice %80 {offsets = [0, 2, 0], sizes = [1, 1, 8], strides = [1, 1, 1]} : vector<3x3x8xf32> to vector<1x1x8xf32>
    %95 = vector.broadcast %94 : vector<1x1x8xf32> to vector<16x16x8xf32>
    %96 = arith.mulf %86, %95 : vector<16x16x8xf32>
    %97 = arith.addf %93, %96 : vector<16x16x8xf32>
    %cst_31 = arith.constant 0.000000e+00 : f32
    %98 = vector.broadcast %cst_31 : f32 to vector<1x16x8xf32>
    %99 = vector.extract_strided_slice %97 {offsets = [0, 0, 0], sizes = [15, 16, 8], strides = [1, 1, 1]} : vector<16x16x8xf32> to vector<15x16x8xf32>
    %100 = tpu.concatenate %98, %99 in 0 : vector<1x16x8xf32>, vector<15x16x8xf32> -> vector<16x16x8xf32>
    %101 = vector.extract_strided_slice %80 {offsets = [1, 0, 0], sizes = [1, 1, 8], strides = [1, 1, 1]} : vector<3x3x8xf32> to vector<1x1x8xf32>
    %102 = vector.broadcast %101 : vector<1x1x8xf32> to vector<16x16x8xf32>
    %103 = arith.mulf %83, %102 : vector<16x16x8xf32>
    %104 = vector.extract_strided_slice %80 {offsets = [1, 1, 0], sizes = [1, 1, 8], strides = [1, 1, 1]} : vector<3x3x8xf32> to vector<1x1x8xf32>
    %105 = vector.broadcast %104 : vector<1x1x8xf32> to vector<16x16x8xf32>
    %106 = arith.mulf %79, %105 : vector<16x16x8xf32>
    %107 = arith.addf %103, %106 : vector<16x16x8xf32>
    %108 = vector.extract_strided_slice %80 {offsets = [1, 2, 0], sizes = [1, 1, 8], strides = [1, 1, 1]} : vector<3x3x8xf32> to vector<1x1x8xf32>
    %109 = vector.broadcast %108 : vector<1x1x8xf32> to vector<16x16x8xf32>
    %110 = arith.mulf %86, %109 : vector<16x16x8xf32>
    %111 = arith.addf %107, %110 : vector<16x16x8xf32>
    %112 = vector.extract_strided_slice %80 {offsets = [2, 0, 0], sizes = [1, 1, 8], strides = [1, 1, 1]} : vector<3x3x8xf32> to vector<1x1x8xf32>
    %113 = vector.broadcast %112 : vector<1x1x8xf32> to vector<16x16x8xf32>
    %114 = arith.mulf %83, %113 : vector<16x16x8xf32>
    %115 = vector.extract_strided_slice %80 {offsets = [2, 1, 0], sizes = [1, 1, 8], strides = [1, 1, 1]} : vector<3x3x8xf32> to vector<1x1x8xf32>
    %116 = vector.broadcast %115 : vector<1x1x8xf32> to vector<16x16x8xf32>
    %117 = arith.mulf %79, %116 : vector<16x16x8xf32>
    %118 = arith.addf %114, %117 : vector<16x16x8xf32>
    %119 = vector.extract_strided_slice %80 {offsets = [2, 2, 0], sizes = [1, 1, 8], strides = [1, 1, 1]} : vector<3x3x8xf32> to vector<1x1x8xf32>
    %120 = vector.broadcast %119 : vector<1x1x8xf32> to vector<16x16x8xf32>
    %121 = arith.mulf %86, %120 : vector<16x16x8xf32>
    %122 = arith.addf %118, %121 : vector<16x16x8xf32>
    %cst_32 = arith.constant 0.000000e+00 : f32
    %123 = vector.broadcast %cst_32 : f32 to vector<1x16x8xf32>
    %124 = vector.extract_strided_slice %122 {offsets = [1, 0, 0], sizes = [15, 16, 8], strides = [1, 1, 1]} : vector<16x16x8xf32> to vector<15x16x8xf32>
    %125 = tpu.concatenate %124, %123 in 0 : vector<15x16x8xf32>, vector<1x16x8xf32> -> vector<16x16x8xf32>
    %126 = arith.addf %100, %111 : vector<16x16x8xf32>
    %127 = arith.addf %126, %125 : vector<16x16x8xf32>
    %cst_33 = arith.constant 0.000000e+00 : f32
    %128 = vector.broadcast %cst_33 : f32 to vector<16x16x8xf32>
    %129 = arith.cmpf ogt, %127, %128 : vector<16x16x8xf32>
    %130 = math.exp %127 : vector<16x16x8xf32>
    %cst_34 = arith.constant 1.000000e+00 : f32
    %131 = vector.broadcast %cst_34 : f32 to vector<16x16x8xf32>
    %132 = arith.subf %130, %131 : vector<16x16x8xf32>
    %133 = arith.select %129, %127, %132 : vector<16x16x8xi1>, vector<16x16x8xf32>
    %134 = vector.shape_cast %133 : vector<16x16x8xf32> to vector<256x8xf32>
    %c0_35 = arith.constant 0 : index
    %c0_36 = arith.constant 0 : index
    %135 = vector.load %arg7[%c0_35, %c0_36] : memref<8x8xf32, #tpu.memory_space<vmem>>, vector<8x8xf32>
    %cst_37 = arith.constant dense<0.000000e+00> : vector<256x8xf32>
    %136 = tpu.matmul %134, %135, %cst_37 {dimension_numbers = #tpu.dot_dimension_numbers<[1], [0], [0], [1], [0, 0, 1, 1], [], []>} : vector<256x8xf32>, vector<8x8xf32>, vector<256x8xf32> -> vector<256x8xf32>
    %cst_38 = arith.constant 0.000000e+00 : f32
    %137 = vector.broadcast %cst_38 : f32 to vector<256x8xf32>
    %138 = arith.cmpf ogt, %136, %137 : vector<256x8xf32>
    %139 = math.exp %136 : vector<256x8xf32>
    %cst_39 = arith.constant 1.000000e+00 : f32
    %140 = vector.broadcast %cst_39 : f32 to vector<256x8xf32>
    %141 = arith.subf %139, %140 : vector<256x8xf32>
    %142 = arith.select %138, %136, %141 : vector<256x8xi1>, vector<256x8xf32>
    %143 = vector.shape_cast %142 : vector<256x8xf32> to vector<16x16x8xf32>
    %c0_40 = arith.constant 0 : index
    %c0_41 = arith.constant 0 : index
    %c0_42 = arith.constant 0 : index
    %144 = vector.load %arg8[%c0_40, %c0_41, %c0_42] : memref<3x3x8xf32, #tpu.memory_space<vmem>>, vector<3x3x8xf32>
    %c1_i32_43 = arith.constant 1 : i32
    %145 = tpu.dynamic_rotate %143 by %c1_i32_43 dim 1 : vector<16x16x8xf32>, i32 -> vector<16x16x8xf32>
    %cst_44 = arith.constant 0.000000e+00 : f32
    %146 = vector.broadcast %cst_44 : f32 to vector<16x16x8xf32>
    %147 = arith.select %4, %145, %146 : vector<16x16x8xi1>, vector<16x16x8xf32>
    %c15_i32_45 = arith.constant 15 : i32
    %148 = tpu.dynamic_rotate %143 by %c15_i32_45 dim 1 : vector<16x16x8xf32>, i32 -> vector<16x16x8xf32>
    %cst_46 = arith.constant 0.000000e+00 : f32
    %149 = vector.broadcast %cst_46 : f32 to vector<16x16x8xf32>
    %150 = arith.select %2, %148, %149 : vector<16x16x8xi1>, vector<16x16x8xf32>
    %151 = vector.extract_strided_slice %144 {offsets = [0, 0, 0], sizes = [1, 1, 8], strides = [1, 1, 1]} : vector<3x3x8xf32> to vector<1x1x8xf32>
    %152 = vector.broadcast %151 : vector<1x1x8xf32> to vector<16x16x8xf32>
    %153 = arith.mulf %147, %152 : vector<16x16x8xf32>
    %154 = vector.extract_strided_slice %144 {offsets = [0, 1, 0], sizes = [1, 1, 8], strides = [1, 1, 1]} : vector<3x3x8xf32> to vector<1x1x8xf32>
    %155 = vector.broadcast %154 : vector<1x1x8xf32> to vector<16x16x8xf32>
    %156 = arith.mulf %143, %155 : vector<16x16x8xf32>
    %157 = arith.addf %153, %156 : vector<16x16x8xf32>
    %158 = vector.extract_strided_slice %144 {offsets = [0, 2, 0], sizes = [1, 1, 8], strides = [1, 1, 1]} : vector<3x3x8xf32> to vector<1x1x8xf32>
    %159 = vector.broadcast %158 : vector<1x1x8xf32> to vector<16x16x8xf32>
    %160 = arith.mulf %150, %159 : vector<16x16x8xf32>
    %161 = arith.addf %157, %160 : vector<16x16x8xf32>
    %cst_47 = arith.constant 0.000000e+00 : f32
    %162 = vector.broadcast %cst_47 : f32 to vector<1x16x8xf32>
    %163 = vector.extract_strided_slice %161 {offsets = [0, 0, 0], sizes = [15, 16, 8], strides = [1, 1, 1]} : vector<16x16x8xf32> to vector<15x16x8xf32>
    %164 = tpu.concatenate %162, %163 in 0 : vector<1x16x8xf32>, vector<15x16x8xf32> -> vector<16x16x8xf32>
    %165 = vector.extract_strided_slice %144 {offsets = [1, 0, 0], sizes = [1, 1, 8], strides = [1, 1, 1]} : vector<3x3x8xf32> to vector<1x1x8xf32>
    %166 = vector.broadcast %165 : vector<1x1x8xf32> to vector<16x16x8xf32>
    %167 = arith.mulf %147, %166 : vector<16x16x8xf32>
    %168 = vector.extract_strided_slice %144 {offsets = [1, 1, 0], sizes = [1, 1, 8], strides = [1, 1, 1]} : vector<3x3x8xf32> to vector<1x1x8xf32>
    %169 = vector.broadcast %168 : vector<1x1x8xf32> to vector<16x16x8xf32>
    %170 = arith.mulf %143, %169 : vector<16x16x8xf32>
    %171 = arith.addf %167, %170 : vector<16x16x8xf32>
    %172 = vector.extract_strided_slice %144 {offsets = [1, 2, 0], sizes = [1, 1, 8], strides = [1, 1, 1]} : vector<3x3x8xf32> to vector<1x1x8xf32>
    %173 = vector.broadcast %172 : vector<1x1x8xf32> to vector<16x16x8xf32>
    %174 = arith.mulf %150, %173 : vector<16x16x8xf32>
    %175 = arith.addf %171, %174 : vector<16x16x8xf32>
    %176 = vector.extract_strided_slice %144 {offsets = [2, 0, 0], sizes = [1, 1, 8], strides = [1, 1, 1]} : vector<3x3x8xf32> to vector<1x1x8xf32>
    %177 = vector.broadcast %176 : vector<1x1x8xf32> to vector<16x16x8xf32>
    %178 = arith.mulf %147, %177 : vector<16x16x8xf32>
    %179 = vector.extract_strided_slice %144 {offsets = [2, 1, 0], sizes = [1, 1, 8], strides = [1, 1, 1]} : vector<3x3x8xf32> to vector<1x1x8xf32>
    %180 = vector.broadcast %179 : vector<1x1x8xf32> to vector<16x16x8xf32>
    %181 = arith.mulf %143, %180 : vector<16x16x8xf32>
    %182 = arith.addf %178, %181 : vector<16x16x8xf32>
    %183 = vector.extract_strided_slice %144 {offsets = [2, 2, 0], sizes = [1, 1, 8], strides = [1, 1, 1]} : vector<3x3x8xf32> to vector<1x1x8xf32>
    %184 = vector.broadcast %183 : vector<1x1x8xf32> to vector<16x16x8xf32>
    %185 = arith.mulf %150, %184 : vector<16x16x8xf32>
    %186 = arith.addf %182, %185 : vector<16x16x8xf32>
    %cst_48 = arith.constant 0.000000e+00 : f32
    %187 = vector.broadcast %cst_48 : f32 to vector<1x16x8xf32>
    %188 = vector.extract_strided_slice %186 {offsets = [1, 0, 0], sizes = [15, 16, 8], strides = [1, 1, 1]} : vector<16x16x8xf32> to vector<15x16x8xf32>
    %189 = tpu.concatenate %188, %187 in 0 : vector<15x16x8xf32>, vector<1x16x8xf32> -> vector<16x16x8xf32>
    %190 = arith.addf %164, %175 : vector<16x16x8xf32>
    %191 = arith.addf %190, %189 : vector<16x16x8xf32>
    %cst_49 = arith.constant 0.000000e+00 : f32
    %192 = vector.broadcast %cst_49 : f32 to vector<16x16x8xf32>
    %193 = arith.cmpf ogt, %191, %192 : vector<16x16x8xf32>
    %194 = math.exp %191 : vector<16x16x8xf32>
    %cst_50 = arith.constant 1.000000e+00 : f32
    %195 = vector.broadcast %cst_50 : f32 to vector<16x16x8xf32>
    %196 = arith.subf %194, %195 : vector<16x16x8xf32>
    %197 = arith.select %193, %191, %196 : vector<16x16x8xi1>, vector<16x16x8xf32>
    %198 = vector.shape_cast %197 : vector<16x16x8xf32> to vector<256x8xf32>
    %c0_51 = arith.constant 0 : index
    %c0_52 = arith.constant 0 : index
    %199 = vector.load %arg9[%c0_51, %c0_52] : memref<8x8xf32, #tpu.memory_space<vmem>>, vector<8x8xf32>
    %cst_53 = arith.constant dense<0.000000e+00> : vector<256x8xf32>
    %200 = tpu.matmul %198, %199, %cst_53 {dimension_numbers = #tpu.dot_dimension_numbers<[1], [0], [0], [1], [0, 0, 1, 1], [], []>} : vector<256x8xf32>, vector<8x8xf32>, vector<256x8xf32> -> vector<256x8xf32>
    %cst_54 = arith.constant 0.000000e+00 : f32
    %201 = vector.broadcast %cst_54 : f32 to vector<256x8xf32>
    %202 = arith.cmpf ogt, %200, %201 : vector<256x8xf32>
    %203 = math.exp %200 : vector<256x8xf32>
    %cst_55 = arith.constant 1.000000e+00 : f32
    %204 = vector.broadcast %cst_55 : f32 to vector<256x8xf32>
    %205 = arith.subf %203, %204 : vector<256x8xf32>
    %206 = arith.select %202, %200, %205 : vector<256x8xi1>, vector<256x8xf32>
    %207 = vector.shape_cast %206 : vector<256x8xf32> to vector<16x16x8xf32>
    %208 = arith.addf %15, %207 : vector<16x16x8xf32>
    %c1_i32_56 = arith.constant 1 : i32
    %209 = tpu.dynamic_rotate %208 by %c1_i32_56 dim 1 : vector<16x16x8xf32>, i32 -> vector<16x16x8xf32>
    %cst_57 = arith.constant 0.000000e+00 : f32
    %210 = vector.broadcast %cst_57 : f32 to vector<16x16x8xf32>
    %211 = arith.select %4, %209, %210 : vector<16x16x8xi1>, vector<16x16x8xf32>
    %c15_i32_58 = arith.constant 15 : i32
    %212 = tpu.dynamic_rotate %208 by %c15_i32_58 dim 1 : vector<16x16x8xf32>, i32 -> vector<16x16x8xf32>
    %cst_59 = arith.constant 0.000000e+00 : f32
    %213 = vector.broadcast %cst_59 : f32 to vector<16x16x8xf32>
    %214 = arith.select %2, %212, %213 : vector<16x16x8xi1>, vector<16x16x8xf32>
    %215 = tpu.concatenate %211, %208, %214 in 2 : vector<16x16x8xf32>, vector<16x16x8xf32>, vector<16x16x8xf32> -> vector<16x16x24xf32>
    %216 = vector.shape_cast %215 : vector<16x16x24xf32> to vector<256x24xf32>
    %c0_60 = arith.constant 0 : index
    %c0_61 = arith.constant 0 : index
    %217 = vector.load %arg10[%c0_60, %c0_61] : memref<24x24xf32, #tpu.memory_space<vmem>>, vector<24x24xf32>
    %cst_62 = arith.constant dense<0.000000e+00> : vector<256x24xf32>
    %218 = tpu.matmul %216, %217, %cst_62 {dimension_numbers = #tpu.dot_dimension_numbers<[1], [0], [0], [1], [0, 0, 1, 1], [], []>} : vector<256x24xf32>, vector<24x24xf32>, vector<256x24xf32> -> vector<256x24xf32>
    %219 = vector.shape_cast %218 : vector<256x24xf32> to vector<16x16x24xf32>
    %220 = vector.extract_strided_slice %219 {offsets = [0, 0, 0], sizes = [16, 16, 8], strides = [1, 1, 1]} : vector<16x16x24xf32> to vector<16x16x8xf32>
    %cst_63 = arith.constant 0.000000e+00 : f32
    %221 = vector.broadcast %cst_63 : f32 to vector<1x16x8xf32>
    %222 = vector.extract_strided_slice %220 {offsets = [0, 0, 0], sizes = [15, 16, 8], strides = [1, 1, 1]} : vector<16x16x8xf32> to vector<15x16x8xf32>
    %223 = tpu.concatenate %221, %222 in 0 : vector<1x16x8xf32>, vector<15x16x8xf32> -> vector<16x16x8xf32>
    %224 = vector.extract_strided_slice %219 {offsets = [0, 0, 8], sizes = [16, 16, 8], strides = [1, 1, 1]} : vector<16x16x24xf32> to vector<16x16x8xf32>
    %225 = arith.addf %223, %224 : vector<16x16x8xf32>
    %226 = vector.extract_strided_slice %219 {offsets = [0, 0, 16], sizes = [16, 16, 8], strides = [1, 1, 1]} : vector<16x16x24xf32> to vector<16x16x8xf32>
    %cst_64 = arith.constant 0.000000e+00 : f32
    %227 = vector.broadcast %cst_64 : f32 to vector<1x16x8xf32>
    %228 = vector.extract_strided_slice %226 {offsets = [1, 0, 0], sizes = [15, 16, 8], strides = [1, 1, 1]} : vector<16x16x8xf32> to vector<15x16x8xf32>
    %229 = tpu.concatenate %228, %227 in 0 : vector<15x16x8xf32>, vector<1x16x8xf32> -> vector<16x16x8xf32>
    %230 = arith.addf %225, %229 : vector<16x16x8xf32>
    %c0_65 = arith.constant 0 : index
    %c0_66 = arith.constant 0 : index
    %231 = vector.load %arg11[%c0_65, %c0_66] : memref<1x8xf32, #tpu.memory_space<vmem>>, vector<1x8xf32>
    %232 = vector.shape_cast %231 : vector<1x8xf32> to vector<1x1x8xf32>
    %233 = vector.broadcast %232 : vector<1x1x8xf32> to vector<16x16x8xf32>
    %234 = arith.addf %230, %233 : vector<16x16x8xf32>
    %cst_67 = arith.constant 0.000000e+00 : f32
    %235 = vector.broadcast %cst_67 : f32 to vector<16x16x8xf32>
    %236 = arith.maximumf %234, %235 : vector<16x16x8xf32>
    %c0_68 = arith.constant 0 : index
    %c0_69 = arith.constant 0 : index
    %c0_70 = arith.constant 0 : index
    %c0_71 = arith.constant 0 : index
    %237 = vector.load %arg12[%c0_68, %c0_69, %c0_70, %c0_71] : memref<1x16x16x8xf32, #tpu.memory_space<vmem>>, vector<1x16x16x8xf32>
    %238 = vector.shape_cast %237 : vector<1x16x16x8xf32> to vector<16x16x8xf32>
    %239 = vector.shape_cast %236 : vector<16x16x8xf32> to vector<1x16x16x8xf32>
    tpu.vector_store %arg12[%c0_68, %c0_69, %c0_70, %c0_71], %239 {strides = array<i32>} : memref<1x16x16x8xf32, #tpu.memory_space<vmem>>, vector<1x16x16x8xf32>,
    return
  }
  func.func @transform_0(%arg0: i32) -> (i32, i32, i32, i32) {
    %c0_i32 = arith.constant 0 : i32
    %c0_i32_0 = arith.constant 0 : i32
    %c0_i32_1 = arith.constant 0 : i32
    %c0_i32_2 = arith.constant 0 : i32
    return %arg0, %c0_i32, %c0_i32_0, %c0_i32_1 : i32, i32, i32, i32
  }
  func.func @transform_1(%arg0: i32) -> (i32, i32) {
    %c0_i32 = arith.constant 0 : i32
    %c0_i32_0 = arith.constant 0 : i32
    %c0_i32_1 = arith.constant 0 : i32
    return %c0_i32, %c0_i32_0 : i32, i32
  }
  func.func @transform_2(%arg0: i32) -> (i32, i32) {
    %c0_i32 = arith.constant 0 : i32
    %c0_i32_0 = arith.constant 0 : i32
    %c0_i32_1 = arith.constant 0 : i32
    return %c0_i32, %c0_i32_0 : i32, i32
  }
  func.func @transform_3(%arg0: i32) -> (i32, i32, i32) {
    %c0_i32 = arith.constant 0 : i32
    %c0_i32_0 = arith.constant 0 : i32
    %c0_i32_1 = arith.constant 0 : i32
    %c0_i32_2 = arith.constant 0 : i32
    return %c0_i32, %c0_i32_0, %c0_i32_1 : i32, i32, i32
  }
  func.func @transform_4(%arg0: i32) -> (i32, i32) {
    %c0_i32 = arith.constant 0 : i32
    %c0_i32_0 = arith.constant 0 : i32
    %c0_i32_1 = arith.constant 0 : i32
    return %c0_i32, %c0_i32_0 : i32, i32
  }
  func.func @transform_5(%arg0: i32) -> (i32, i32, i32) {
    %c0_i32 = arith.constant 0 : i32
    %c0_i32_0 = arith.constant 0 : i32
    %c0_i32_1 = arith.constant 0 : i32
    %c0_i32_2 = arith.constant 0 : i32
    return %c0_i32, %c0_i32_0, %c0_i32_1 : i32, i32, i32
  }
  func.func @transform_6(%arg0: i32) -> (i32, i32) {
    %c0_i32 = arith.constant 0 : i32
    %c0_i32_0 = arith.constant 0 : i32
    %c0_i32_1 = arith.constant 0 : i32
    return %c0_i32, %c0_i32_0 : i32, i32
  }
  func.func @transform_7(%arg0: i32) -> (i32, i32, i32) {
    %c0_i32 = arith.constant 0 : i32
    %c0_i32_0 = arith.constant 0 : i32
    %c0_i32_1 = arith.constant 0 : i32
    %c0_i32_2 = arith.constant 0 : i32
    return %c0_i32, %c0_i32_0, %c0_i32_1 : i32, i32, i32
  }
  func.func @transform_8(%arg0: i32) -> (i32, i32) {
    %c0_i32 = arith.constant 0 : i32
    %c0_i32_0 = arith.constant 0 : i32
    %c0_i32_1 = arith.constant 0 : i32
    return %c0_i32, %c0_i32_0 : i32, i32
  }
  func.func @transform_9(%arg0: i32) -> (i32, i32) {
    %c0_i32 = arith.constant 0 : i32
    %c0_i32_0 = arith.constant 0 : i32
    %c0_i32_1 = arith.constant 0 : i32
    return %c0_i32, %c0_i32_0 : i32, i32
  }
  func.func @transform_10(%arg0: i32) -> (i32, i32) {
    %c0_i32 = arith.constant 0 : i32
    %c0_i32_0 = arith.constant 0 : i32
    %c0_i32_1 = arith.constant 0 : i32
    return %c0_i32, %c0_i32_0 : i32, i32
  }
  func.func @transform_11(%arg0: i32) -> (i32, i32, i32, i32) {
    %c0_i32 = arith.constant 0 : i32
    %c0_i32_0 = arith.constant 0 : i32
    %c0_i32_1 = arith.constant 0 : i32
    %c0_i32_2 = arith.constant 0 : i32
    return %arg0, %c0_i32, %c0_i32_0, %c0_i32_1 : i32, i32, i32, i32
  }
}

</mosaic_0001>

<llo_original>
// kernel: cpm_forward.1
$region0: #{cpm_forward.1}
  #allocation0 [shape = 'u32[]', space=smem, size = 0x4, offset = 0x4, fixed_abs, tag = 'smem constant byte address 0x4 - core index']
  #allocation1 [shape = 'u32[144,128]{1,0:T(1,128)}', space=vmem, size = 0x12000, scoped, tag = 'internal scratch']
  %s0 = inlined_call_operand.vmem [shape: f32[2,16,16,4], index: 0, kind: input, shape index: {}]
  %s1 = inlined_call_operand.vmem [shape: f32[4,8], index: 1, kind: input, shape index: {}]
  %s2 = inlined_call_operand.vmem [shape: f32[1,8], index: 2, kind: input, shape index: {}]
  %s3 = inlined_call_operand.vmem [shape: f32[3,3,8], index: 3, kind: input, shape index: {}]
  %s4 = inlined_call_operand.vmem [shape: f32[8,8], index: 4, kind: input, shape index: {}]
  %s5 = inlined_call_operand.vmem [shape: f32[3,3,8], index: 5, kind: input, shape index: {}]
  %s6 = inlined_call_operand.vmem [shape: f32[8,8], index: 6, kind: input, shape index: {}]
  %s7 = inlined_call_operand.vmem [shape: f32[3,3,8], index: 7, kind: input, shape index: {}]
  %s8 = inlined_call_operand.vmem [shape: f32[8,8], index: 8, kind: input, shape index: {}]
  %s9 = inlined_call_operand.vmem [shape: f32[24,24], index: 9, kind: input, shape index: {}]
  %s10 = inlined_call_operand.vmem [shape: f32[1,8], index: 10, kind: input, shape index: {}]
  %s11 = inlined_call_operand.vmem [shape: f32[2,16,16,8], index: 11, kind: output, shape index: {}]
  %s12 = sld [smem:[#allocation0]]
  $region77: #{cpm_forward.1} parent=0
    _
  %s14 = ssub.s32 1, %s12
  %s15 = scalar_select 0, %s14, %s12
  loop: start=0, step=1, limit=4
  $region2: #{cpm_forward.1} parent=0 // loop_pre_header
    _
  $region3: #{cpm_forward.1} parent=0 // loop_header
    %s17 = sphi 0, %s21
    %p18 = scmp.ge.s32.totalorder %s17, 4
    %s27 = sphi 0, %s29
    %s30 = sphi 0, %s27
    %s31 = sphi 0, %s30
    %s47 = sphi 0, %s31
    %s51 = sphi 0, %s51
    %s53 = sphi 0, %s51
    %s54 = sphi 0, %s53
    %s68 = sphi 0, %s54
    %s72 = sphi 0, %s72
    %s74 = sphi 0, %s72
    %s75 = sphi 0, %s74
    %s89 = sphi 0, %s75
    %s93 = sphi 0, %s93
    %s95 = sphi 0, %s93
    %s96 = sphi 0, %s95
    %s110 = sphi 0, %s96
    %s114 = sphi 0, %s114
    %s116 = sphi 0, %s114
    %s117 = sphi 0, %s116
    %s131 = sphi 0, %s117
    %s135 = sphi 0, %s135
    %s137 = sphi 0, %s135
    %s138 = sphi 0, %s137
    %s152 = sphi 0, %s138
    %s156 = sphi 0, %s156
    %s158 = sphi 0, %s156
    %s159 = sphi 0, %s158
    %s173 = sphi 0, %s159
    %s177 = sphi 0, %s177
    %s179 = sphi 0, %s177
    %s180 = sphi 0, %s179
    %s194 = sphi 0, %s180
    %s198 = sphi 0, %s198
    %s200 = sphi 0, %s198
    %s201 = sphi 0, %s200
    %s215 = sphi 0, %s201
    %s219 = sphi 0, %s219
    %s221 = sphi 0, %s219
    %s222 = sphi 0, %s221
    %s236 = sphi 0, %s222
    %s240 = sphi 0, %s240
    %s242 = sphi 0, %s240
    %s243 = sphi 0, %s242
    %s257 = sphi 0, %s243
    %s263 = sphi 0, %s265
    %s266 = sphi 0, %s263
    %s267 = sphi 0, %s266
    %s283 = sphi 0, %s267
  $region4: #{cpm_forward.1} parent=0 // loop_header_branch
    %20 = sbr.rel (%p18) target = $region8
  $region5: #{cpm_forward.1} parent=0 // loop_body
    %s22 = ssub.s32 %s17, 1
    %s23 = ssub.s32 %s17, 2
    %s24 = sadd.s32 %s17, 1
    %s25 = ssub.s32 %s17, %s24
    %p26 = scmp.eq.s32.totalorder %s25, 0
    %s28 = sadd.s32 %s27, 1
    %s29 = scalar_select %p26, %s27, %s28
    %p32 = pneg %p26
    %p33 = scmp.eq.s32.totalorder %s17, 1
    %p34 = por %p32, %p33
    %p35 = scmp.ne.s32.totalorder %s27, %s30
    %p36 = scmp.eq.s32.totalorder %s17, 0
    %p37 = por %p35, %p36
    %p38 = scmp.ne.s32.totalorder %s27, %s30
    %p39 = scmp.eq.s32.totalorder %s22, 1
    %p40 = por %p38, %p39
    %p41 = scmp.ne.s32.totalorder %s30, %s31
    %p42 = scmp.eq.s32.totalorder %s22, 0
    %p43 = por %p41, %p42
    %p44 = scmp.ne.s32.totalorder %s30, %s31
    %p45 = scmp.eq.s32.totalorder %s23, 1
    %p46 = por %p44, %p45
    %p48 = scmp.ne.s32.totalorder %s31, %s47
    %p49 = scmp.eq.s32.totalorder %s23, 0
    %p50 = por %p48, %p49
    %s52 = sadd.s32 %s51, 1
    %p55 = scmp.eq.s32.totalorder %s17, 1
    %p56 = scmp.ne.s32.totalorder %s51, %s53
    %p57 = scmp.eq.s32.totalorder %s17, 0
    %p58 = por %p56, %p57
    %p59 = scmp.ne.s32.totalorder %s51, %s53
    %p60 = scmp.eq.s32.totalorder %s22, 1
    %p61 = por %p59, %p60
    %p62 = scmp.ne.s32.totalorder %s53, %s54
    %p63 = scmp.eq.s32.totalorder %s22, 0
    %p64 = por %p62, %p63
    %p65 = scmp.ne.s32.totalorder %s53, %s54
    %p66 = scmp.eq.s32.totalorder %s23, 1
    %p67 = por %p65, %p66
    %p69 = scmp.ne.s32.totalorder %s54, %s68
    %p70 = scmp.eq.s32.totalorder %s23, 0
    %p71 = por %p69, %p70
    %s73 = sadd.s32 %s72, 1
    %p76 = scmp.eq.s32.totalorder %s17, 1
    %p77 = scmp.ne.s32.totalorder %s72, %s74
    %p78 = scmp.eq.s32.totalorder %s17, 0
    %p79 = por %p77, %p78
    %p80 = scmp.ne.s32.totalorder %s72, %s74
    %p81 = scmp.eq.s32.totalorder %s22, 1
    %p82 = por %p80, %p81
    %p83 = scmp.ne.s32.totalorder %s74, %s75
    %p84 = scmp.eq.s32.totalorder %s22, 0
    %p85 = por %p83, %p84
    %p86 = scmp.ne.s32.totalorder %s74, %s75
    %p87 = scmp.eq.s32.totalorder %s23, 1
    %p88 = por %p86, %p87
    %p90 = scmp.ne.s32.totalorder %s75, %s89
    %p91 = scmp.eq.s32.totalorder %s23, 0
    %p92 = por %p90, %p91
    %s94 = sadd.s32 %s93, 1
    %p97 = scmp.eq.s32.totalorder %s17, 1
    %p98 = scmp.ne.s32.totalorder %s93, %s95
    %p99 = scmp.eq.s32.totalorder %s17, 0
    %p100 = por %p98, %p99
    %p101 = scmp.ne.s32.totalorder %s93, %s95
    %p102 = scmp.eq.s32.totalorder %s22, 1
    %p103 = por %p101, %p102
    %p104 = scmp.ne.s32.totalorder %s95, %s96
    %p105 = scmp.eq.s32.totalorder %s22, 0
    %p106 = por %p104, %p105
    %p107 = scmp.ne.s32.totalorder %s95, %s96
    %p108 = scmp.eq.s32.totalorder %s23, 1
    %p109 = por %p107, %p108
    %p111 = scmp.ne.s32.totalorder %s96, %s110
    %p112 = scmp.eq.s32.totalorder %s23, 0
    %p113 = por %p111, %p112
    %s115 = sadd.s32 %s114, 1
    %p118 = scmp.eq.s32.totalorder %s17, 1
    %p119 = scmp.ne.s32.totalorder %s114, %s116
    %p120 = scmp.eq.s32.totalorder %s17, 0
    %p121 = por %p119, %p120
    %p122 = scmp.ne.s32.totalorder %s114, %s116
    %p123 = scmp.eq.s32.totalorder %s22, 1
    %p124 = por %p122, %p123
    %p125 = scmp.ne.s32.totalorder %s116, %s117
    %p126 = scmp.eq.s32.totalorder %s22, 0
    %p127 = por %p125, %p126
    %p128 = scmp.ne.s32.totalorder %s116, %s117
    %p129 = scmp.eq.s32.totalorder %s23, 1
    %p130 = por %p128, %p129
    %p132 = scmp.ne.s32.totalorder %s117, %s131
    %p133 = scmp.eq.s32.totalorder %s23, 0
    %p134 = por %p132, %p133
    %s136 = sadd.s32 %s135, 1
    %p139 = scmp.eq.s32.totalorder %s17, 1
    %p140 = scmp.ne.s32.totalorder %s135, %s137
    %p141 = scmp.eq.s32.totalorder %s17, 0
    %p142 = por %p140, %p141
    %p143 = scmp.ne.s32.totalorder %s135, %s137
    %p144 = scmp.eq.s32.totalorder %s22, 1
    %p145 = por %p143, %p144
    %p146 = scmp.ne.s32.totalorder %s137, %s138
    %p147 = scmp.eq.s32.totalorder %s22, 0
    %p148 = por %p146, %p147
    %p149 = scmp.ne.s32.totalorder %s137, %s138
    %p150 = scmp.eq.s32.totalorder %s23, 1
    %p151 = por %p149, %p150
    %p153 = scmp.ne.s32.totalorder %s138, %s152
    %p154 = scmp.eq.s32.totalorder %s23, 0
    %p155 = por %p153, %p154
    %s157 = sadd.s32 %s156, 1
    %p160 = scmp.eq.s32.totalorder %s17, 1
    %p161 = scmp.ne.s32.totalorder %s156, %s158
    %p162 = scmp.eq.s32.totalorder %s17, 0
    %p163 = por %p161, %p162
    %p164 = scmp.ne.s32.totalorder %s156, %s158
    %p165 = scmp.eq.s32.totalorder %s22, 1
    %p166 = por %p164, %p165
    %p167 = scmp.ne.s32.totalorder %s158, %s159
    %p168 = scmp.eq.s32.totalorder %s22, 0
    %p169 = por %p167, %p168
    %p170 = scmp.ne.s32.totalorder %s158, %s159
    %p171 = scmp.eq.s32.totalorder %s23, 1
    %p172 = por %p170, %p171
    %p174 = scmp.ne.s32.totalorder %s159, %s173
    %p175 = scmp.eq.s32.totalorder %s23, 0
    %p176 = por %p174, %p175
    %s178 = sadd.s32 %s177, 1
    %p181 = scmp.eq.s32.totalorder %s17, 1
    %p182 = scmp.ne.s32.totalorder %s177, %s179
    %p183 = scmp.eq.s32.totalorder %s17, 0
    %p184 = por %p182, %p183
    %p185 = scmp.ne.s32.totalorder %s177, %s179
    %p186 = scmp.eq.s32.totalorder %s22, 1
    %p187 = por %p185, %p186
    %p188 = scmp.ne.s32.totalorder %s179, %s180
    %p189 = scmp.eq.s32.totalorder %s22, 0
    %p190 = por %p188, %p189
    %p191 = scmp.ne.s32.totalorder %s179, %s180
    %p192 = scmp.eq.s32.totalorder %s23, 1
    %p193 = por %p191, %p192
    %p195 = scmp.ne.s32.totalorder %s180, %s194
    %p196 = scmp.eq.s32.totalorder %s23, 0
    %p197 = por %p195, %p196
    %s199 = sadd.s32 %s198, 1
    %p202 = scmp.eq.s32.totalorder %s17, 1
    %p203 = scmp.ne.s32.totalorder %s198, %s200
    %p204 = scmp.eq.s32.totalorder %s17, 0
    %p205 = por %p203, %p204
    %p206 = scmp.ne.s32.totalorder %s198, %s200
    %p207 = scmp.eq.s32.totalorder %s22, 1
    %p208 = por %p206, %p207
    %p209 = scmp.ne.s32.totalorder %s200, %s201
    %p210 = scmp.eq.s32.totalorder %s22, 0
    %p211 = por %p209, %p210
    %p212 = scmp.ne.s32.totalorder %s200, %s201
    %p213 = scmp.eq.s32.totalorder %s23, 1
    %p214 = por %p212, %p213
    %p216 = scmp.ne.s32.totalorder %s201, %s215
    %p217 = scmp.eq.s32.totalorder %s23, 0
    %p218 = por %p216, %p217
    %s220 = sadd.s32 %s219, 1
    %p223 = scmp.eq.s32.totalorder %s17, 1
    %p224 = scmp.ne.s32.totalorder %s219, %s221
    %p225 = scmp.eq.s32.totalorder %s17, 0
    %p226 = por %p224, %p225
    %p227 = scmp.ne.s32.totalorder %s219, %s221
    %p228 = scmp.eq.s32.totalorder %s22, 1
    %p229 = por %p227, %p228
    %p230 = scmp.ne.s32.totalorder %s221, %s222
    %p231 = scmp.eq.s32.totalorder %s22, 0
    %p232 = por %p230, %p231
    %p233 = scmp.ne.s32.totalorder %s221, %s222
    %p234 = scmp.eq.s32.totalorder %s23, 1
    %p235 = por %p233, %p234
    %p237 = scmp.ne.s32.totalorder %s222, %s236
    %p238 = scmp.eq.s32.totalorder %s23, 0
    %p239 = por %p237, %p238
    %s241 = sadd.s32 %s240, 1
    %p244 = scmp.eq.s32.totalorder %s17, 1
    %p245 = scmp.ne.s32.totalorder %s240, %s242
    %p246 = scmp.eq.s32.totalorder %s17, 0
    %p247 = por %p245, %p246
    %p248 = scmp.ne.s32.totalorder %s240, %s242
    %p249 = scmp.eq.s32.totalorder %s22, 1
    %p250 = por %p248, %p249
    %p251 = scmp.ne.s32.totalorder %s242, %s243
    %p252 = scmp.eq.s32.totalorder %s22, 0
    %p253 = por %p251, %p252
    %p254 = scmp.ne.s32.totalorder %s242, %s243
    %p255 = scmp.eq.s32.totalorder %s23, 1
    %p256 = por %p254, %p255
    %p258 = scmp.ne.s32.totalorder %s243, %s257
    %p259 = scmp.eq.s32.totalorder %s23, 0
    %p260 = por %p258, %p259
    %s261 = ssub.s32 %s17, %s24
    %p262 = scmp.eq.s32.totalorder %s261, 0
    %s264 = sadd.s32 %s263, 1
    %s265 = scalar_select %p262, %s263, %s264
    %p268 = pneg %p262
    %p269 = scmp.eq.s32.totalorder %s17, 1
    %p270 = por %p268, %p269
    %p271 = scmp.ne.s32.totalorder %s263, %s266
    %p272 = scmp.eq.s32.totalorder %s17, 0
    %p273 = por %p271, %p272
    %p274 = scmp.ne.s32.totalorder %s263, %s266
    %p275 = scmp.eq.s32.totalorder %s22, 1
    %p276 = por %p274, %p275
    %p277 = scmp.ne.s32.totalorder %s266, %s267
    %p278 = scmp.eq.s32.totalorder %s22, 0
    %p279 = por %p277, %p278
    %p280 = scmp.ne.s32.totalorder %s266, %s267
    %p281 = scmp.eq.s32.totalorder %s23, 1
    %p282 = por %p280, %p281
    %p284 = scmp.ne.s32.totalorder %s267, %s283
    %p285 = scmp.eq.s32.totalorder %s23, 0
    %p286 = por %p284, %p285
    %p287 = scmp.le.s32.totalorder 1, %s17
    %p288 = scmp.lt.s32.totalorder %s17, 3
    %p289 = pnand %p287, %p288
    %p290 = pneg %p289
    // Predicated region
    $region9: #{cpm_forward.1} parent=5 // pred_check
      _
    $region10: #{cpm_forward.1} parent=5 // pred_check_branch
      %292 = sbr.rel (%p289) target = $region12
    $region11: #{cpm_forward.1} parent=5 // pred_region
      %s293 = ssub.s32 %s17, 1
      // Predicated region
      $region13: #{cpm_forward.1} parent=11 // pred_check
        %p294 = pneg %p64
      $region14: #{cpm_forward.1} parent=11 // pred_check_branch
        %296 = sbr.rel (%p294) target = $region16
      $region15: #{cpm_forward.1} parent=11 // pred_region
        _
      $region16: #{cpm_forward.1} parent=11 // pred_fallthru
        _
      // Predicated region
      $region17: #{cpm_forward.1} parent=11 // pred_check
        %p297 = pneg %p85
      $region18: #{cpm_forward.1} parent=11 // pred_check_branch
        %299 = sbr.rel (%p297) target = $region20
      $region19: #{cpm_forward.1} parent=11 // pred_region
        _
      $region20: #{cpm_forward.1} parent=11 // pred_fallthru
        _
      // Predicated region
      $region21: #{cpm_forward.1} parent=11 // pred_check
        %p300 = pneg %p106
      $region22: #{cpm_forward.1} parent=11 // pred_check_branch
        %302 = sbr.rel (%p300) target = $region24
      $region23: #{cpm_forward.1} parent=11 // pred_region
        _
      $region24: #{cpm_forward.1} parent=11 // pred_fallthru
        _
      // Predicated region
      $region25: #{cpm_forward.1} parent=11 // pred_check
        %p303 = pneg %p127
      $region26: #{cpm_forward.1} parent=11 // pred_check_branch
        %305 = sbr.rel (%p303) target = $region28
      $region27: #{cpm_forward.1} parent=11 // pred_region
        _
      $region28: #{cpm_forward.1} parent=11 // pred_fallthru
        _
      // Predicated region
      $region29: #{cpm_forward.1} parent=11 // pred_check
        %p306 = pneg %p148
      $region30: #{cpm_forward.1} parent=11 // pred_check_branch
        %308 = sbr.rel (%p306) target = $region32
      $region31: #{cpm_forward.1} parent=11 // pred_region
        _
      $region32: #{cpm_forward.1} parent=11 // pred_fallthru
        _
      // Predicated region
      $region33: #{cpm_forward.1} parent=11 // pred_check
        %p309 = pneg %p169
      $region34: #{cpm_forward.1} parent=11 // pred_check_branch
        %311 = sbr.rel (%p309) target = $region36
      $region35: #{cpm_forward.1} parent=11 // pred_region
        _
      $region36: #{cpm_forward.1} parent=11 // pred_fallthru
        _
      // Predicated region
      $region37: #{cpm_forward.1} parent=11 // pred_check
        %p312 = pneg %p190
      $region38: #{cpm_forward.1} parent=11 // pred_check_branch
        %314 = sbr.rel (%p312) target = $region40
      $region39: #{cpm_forward.1} parent=11 // pred_region
        _
      $region40: #{cpm_forward.1} parent=11 // pred_fallthru
        _
      // Predicated region
      $region41: #{cpm_forward.1} parent=11 // pred_check
        %p315 = pneg %p211
      $region42: #{cpm_forward.1} parent=11 // pred_check_branch
        %317 = sbr.rel (%p315) target = $region44
      $region43: #{cpm_forward.1} parent=11 // pred_region
        _
      $region44: #{cpm_forward.1} parent=11 // pred_fallthru
        _
      // Predicated region
      $region45: #{cpm_forward.1} parent=11 // pred_check
        %p318 = pneg %p232
      $region46: #{cpm_forward.1} parent=11 // pred_check_branch
        %320 = sbr.rel (%p318) target = $region48
      $region47: #{cpm_forward.1} parent=11 // pred_region
        _
      $region48: #{cpm_forward.1} parent=11 // pred_fallthru
        _
      // Predicated region
      $region49: #{cpm_forward.1} parent=11 // pred_check
        %p321 = pneg %p253
      $region50: #{cpm_forward.1} parent=11 // pred_check_branch
        %323 = sbr.rel (%p321) target = $region52
      $region51: #{cpm_forward.1} parent=11 // pred_region
        _
      $region52: #{cpm_forward.1} parent=11 // pred_fallthru
        _
    $region12: #{cpm_forward.1} parent=5 // pred_fallthru
      _
    %p324 = scmp.lt.s32.totalorder %s17, 2
    // Predicated region
    $region53: #{cpm_forward.1} parent=5 // pred_check
      %p325 = pneg %p324
    $region54: #{cpm_forward.1} parent=5 // pred_check_branch
      %327 = sbr.rel (%p325) target = $region56
    $region55: #{cpm_forward.1} parent=5 // pred_region
      // Predicated region
      $region57: #{cpm_forward.1} parent=55 // pred_check
        %p328 = pneg %p37
      $region58: #{cpm_forward.1} parent=55 // pred_check_branch
        %330 = sbr.rel (%p328) target = $region60
      $region59: #{cpm_forward.1} parent=55 // pred_region
        %p331 = scmp.lt.s32.totalorder %s17, 1
        %s332 = scalar_select %p331, %s17, 1
        %s333 = smul.addr %s332, 32
        %s334 = smul.addr %s333, 8
        %s335 = scalar_lea.vmem %s0, %s334
      $region60: #{cpm_forward.1} parent=55 // pred_fallthru
        _
    $region56: #{cpm_forward.1} parent=5 // pred_fallthru
      _
    %p336 = scmp.le.s32.totalorder 1, %s17
    %p337 = scmp.lt.s32.totalorder %s17, 3
    %p338 = pnand %p336, %p337
    %p339 = pneg %p338
    // Predicated region
    $region61: #{cpm_forward.1} parent=5 // pred_check
      _
    $region62: #{cpm_forward.1} parent=5 // pred_check_branch
      %341 = sbr.rel (%p338) target = $region64
    $region63: #{cpm_forward.1} parent=5 // pred_region
      %s342 = ssub.s32 %s17, 1
      %p343 = scmp.lt.s32.totalorder %s22, 1
      %s344 = scalar_select %p343, %s22, 1
      %s345 = smul.addr %s344, 32
      %s346 = smul.addr %s345, 8
      %s347 = scalar_lea.vmem %s0, %s346
      %p348 = pneg %p43
      %p349 = pneg %p40
      %p350 = pneg %p64
      %p351 = pneg %p61
      %p352 = pneg %p85
      %p353 = pneg %p82
      %p354 = pneg %p106
      %p355 = pneg %p103
      %p356 = pneg %p127
      %p357 = pneg %p124
      %p358 = pneg %p148
      %p359 = pneg %p145
      %p360 = pneg %p169
      %p361 = pneg %p166
      %p362 = pneg %p190
      %p363 = pneg %p187
      %p364 = pneg %p211
      %p365 = pneg %p208
      %p366 = pneg %p232
      %p367 = pneg %p229
      %p368 = pneg %p253
      %p369 = pneg %p250
      %p370 = pneg %p279
      %p371 = pneg %p276
      %p372 = scmp.lt.s32.totalorder %s22, 1
      %s373 = scalar_select %p372, %s22, 1
      %s374 = smul.addr %s373, 32
      %s375 = smul.addr %s374, 8
      %s376 = scalar_lea.vmem %s11, %s375
      %p377 = scmp.lt.s32.totalorder %s22, 1
      %s378 = scalar_select %p377, %s22, 1
      %s379 = smul.addr %s378, 32
      %s380 = smul.addr %s379, 8
      %s381 = scalar_lea.vmem %s0, %s380
      %p382 = scmp.lt.s32.totalorder %s22, 1
      %s383 = scalar_select %p382, %s22, 1
      %s384 = smul.addr %s383, 32
      %s385 = smul.addr %s384, 8
      %s386 = scalar_lea.vmem %s11, %s385
      %v387 = vlaneseq
      %v388 = vshrl.u32 %v387, 7
      %v389 = vadd.s32 %v388, 8
      %vm390 = vcmp.lt.s32.totalorder %v388, 15
      %vm391 = vcmp.lt.s32.totalorder %v389, 15
      %vm392 = vcmp.ge.s32.totalorder %v388, 1
      %vm393 = vcmp.ge.s32.totalorder %v389, 1
      %v394 = vld [vmem:[%s381] sm:$0xff]
      %v395 = vld [vmem:[%s381 + $0x8] sm:$0xff]
      %v396 = vld [vmem:[%s381 + $0x10] sm:$0xff]
      %v397 = vld [vmem:[%s381 + $0x18] sm:$0xff]
      %v398 = vld [vmem:[%s381 + $0x20] sm:$0xff]
      %v399 = vld [vmem:[%s381 + $0x28] sm:$0xff]
      %v400 = vld [vmem:[%s381 + $0x30] sm:$0xff]
      %v401 = vld [vmem:[%s381 + $0x38] sm:$0xff]
      %v402 = vld [vmem:[%s381 + $0x40] sm:$0xff]
      %v403 = vld [vmem:[%s381 + $0x48] sm:$0xff]
      %v404 = vld [vmem:[%s381 + $0x50] sm:$0xff]
      %v405 = vld [vmem:[%s381 + $0x58] sm:$0xff]
      %v406 = vld [vmem:[%s381 + $0x60] sm:$0xff]
      %v407 = vld [vmem:[%s381 + $0x68] sm:$0xff]
      %v408 = vld [vmem:[%s381 + $0x70] sm:$0xff]
      %v409 = vld [vmem:[%s381 + $0x78] sm:$0xff]
      %v410 = vld [vmem:[%s381 + $0x80] sm:$0xff]
      %v411 = vld [vmem:[%s381 + $0x88] sm:$0xff]
      %v412 = vld [vmem:[%s381 + $0x90] sm:$0xff]
      %v413 = vld [vmem:[%s381 + $0x98] sm:$0xff]
      %v414 = vld [vmem:[%s381 + $0xa0] sm:$0xff]
      %v415 = vld [vmem:[%s381 + $0xa8] sm:$0xff]
      %v416 = vld [vmem:[%s381 + $0xb0] sm:$0xff]
      %v417 = vld [vmem:[%s381 + $0xb8] sm:$0xff]
      %v418 = vld [vmem:[%s381 + $0xc0] sm:$0xff]
      %v419 = vld [vmem:[%s381 + $0xc8] sm:$0xff]
      %v420 = vld [vmem:[%s381 + $0xd0] sm:$0xff]
      %v421 = vld [vmem:[%s381 + $0xd8] sm:$0xff]
      %v422 = vld [vmem:[%s381 + $0xe0] sm:$0xff]
      %v423 = vld [vmem:[%s381 + $0xe8] sm:$0xff]
      %v424 = vld [vmem:[%s381 + $0xf0] sm:$0xff]
      %v425 = vld [vmem:[%s381 + $0xf8] sm:$0xff]
      %v426 = vld [vmem:[%s1] sm:$0xf]
      %v427 = vld [vmem:[%s2] sm:$0x1]
      %v429 = vlaneseq
      %v430 = vshrl.u32 %v429, 7
      %v431 = vsub.s32 0, %v430
      %v432 = vrot.slane %v427, %v431
      %vm434 = vcmask 31744
      %v436 = vsel %vm434, %v394, 0
      %v439 = vsel %vm434, %v395, 0
      %v442 = vsel %vm434, %v396, 0
      %v445 = vsel %vm434, %v397, 0
      %v448 = vsel %vm434, %v398, 0
      %v451 = vsel %vm434, %v399, 0
      %v454 = vsel %vm434, %v400, 0
      %v457 = vsel %vm434, %v401, 0
      %v460 = vsel %vm434, %v402, 0
      %v463 = vsel %vm434, %v403, 0
      %v466 = vsel %vm434, %v404, 0
      %v469 = vsel %vm434, %v405, 0
      %v472 = vsel %vm434, %v406, 0
      %v475 = vsel %vm434, %v407, 0
      %v478 = vsel %vm434, %v408, 0
      %v481 = vsel %vm434, %v409, 0
      %v484 = vsel %vm434, %v410, 0
      %v487 = vsel %vm434, %v411, 0
      %v490 = vsel %vm434, %v412, 0
      %v493 = vsel %vm434, %v413, 0
      %v496 = vsel %vm434, %v414, 0
      %v499 = vsel %vm434, %v415, 0
      %v502 = vsel %vm434, %v416, 0
      %v505 = vsel %vm434, %v417, 0
      %v508 = vsel %vm434, %v418, 0
      %v511 = vsel %vm434, %v419, 0
      %v514 = vsel %vm434, %v420, 0
      %v517 = vsel %vm434, %v421, 0
      %v520 = vsel %vm434, %v422, 0
      %v523 = vsel %vm434, %v423, 0
      %v526 = vsel %vm434, %v424, 0
      %v529 = vsel %vm434, %v425, 0
      %vm531 = vcmask 1043456
      %v533 = vsel %vm531, %v426, 0
      %535 = vmatprep.subr.mxu0 0.0
      %536 = vmatpush1.msra.mxu0 %v533
      %537 = vmatprep.subr.mxu0 0.0
      %538 = vmatpush1.msra.mxu0 0.0
      %539 = vmatprep.subr.mxu0 0.0
      %540 = vmatpush1.msra.mxu0 0.0
      %541 = vmatprep.subr.mxu0 0.0
      %542 = vmatpush1.msra.mxu0 0.0
      %543 = vmatprep.subr.mxu0 0.0
      %544 = vmatpush1.msra.mxu0 0.0
      %545 = vmatprep.subr.mxu0 0.0
      %546 = vmatpush1.msra.mxu0 0.0
      %547 = vmatprep.subr.mxu0 0.0
      %548 = vmatpush1.msra.mxu0 0.0
      %549 = vmatprep.subr.mxu0 0.0
      %550 = vmatpush1.msra.mxu0 0.0
      %551 = vmatprep.subr.mxu0 0.0
      %552 = vmatpush1.msra.mxu0 0.0
      %553 = vmatprep.subr.mxu0 0.0
      %554 = vmatpush1.msra.mxu0 0.0
      %555 = vmatprep.subr.mxu0 0.0
      %556 = vmatpush1.msra.mxu0 0.0
      %557 = vmatprep.subr.mxu0 0.0
      %558 = vmatpush1.msra.mxu0 0.0
      %559 = vmatprep.subr.mxu0 0.0
      %560 = vmatpush1.msra.mxu0 0.0
      %561 = vmatprep.subr.mxu0 0.0
      %562 = vmatpush1.msra.mxu0 0.0
      %563 = vmatprep.subr.mxu0 0.0
      %564 = vmatpush1.msra.mxu0 0.0
      %565 = vmatprep.subr.mxu0 0.0
      %566 = vmatpush1.msra.mxu0 0.0
      %567 = vmatprep.subr.mxu0 0.0
      %568 = vmatpush1.msra.mxu0 0.0
      %569 = vmatprep.subr.mxu0 0.0
      %570 = vmatpush1.msra.mxu0 0.0
      %571 = vmatprep.subr.mxu0 0.0
      %572 = vmatpush1.msra.mxu0 0.0
      %573 = vmatprep.subr.mxu0 0.0
      %574 = vmatpush1.msra.mxu0 0.0
      %575 = vmatprep.subr.mxu0 0.0
      %576 = vmatpush1.msra.mxu0 0.0
      %577 = vmatprep.subr.mxu0 0.0
      %578 = vmatpush1.msra.mxu0 0.0
      %579 = vmatprep.subr.mxu0 0.0
      %580 = vmatpush1.msra.mxu0 0.0
      %581 = vmatprep.subr.mxu0 0.0
      %582 = vmatpush1.msra.mxu0 0.0
      %583 = vmatprep.subr.mxu0 0.0
      %584 = vmatpush1.msra.mxu0 0.0
      %585 = vmatprep.subr.mxu0 0.0
      %586 = vmatpush1.msra.mxu0 0.0
      %587 = vmatprep.subr.mxu0 0.0
      %588 = vmatpush1.msra.mxu0 0.0
      %589 = vmatprep.subr.mxu0 0.0
      %590 = vmatpush1.msra.mxu0 0.0
      %591 = vmatprep.subr.mxu0 0.0
      %592 = vmatpush1.msra.mxu0 0.0
      %593 = vmatprep.subr.mxu0 0.0
      %594 = vmatpush1.msra.mxu0 0.0
      %595 = vmatprep.subr.mxu0 0.0
      %596 = vmatpush1.msra.mxu0 0.0
      %597 = vmatprep.subr.mxu0 0.0
      %598 = vmatpush1.msra.mxu0 0.0
      %599 = vmatprep.mubr.f32.mxu0 0.0
      %600 = vmatmul.mubr.f32.gmra.mrb[0].mxu0 %v436
      %v601 = vpop.f32.mrb[0].mxu0
      %v602 = vadd.f32 %v432, %v601
      %v603 = vpop.f32.mrb[0].mxu0
      %604 = vmatprep.mubr.f32.mxu0 0.0
      %605 = vmatmul.mubr.f32.gmra.mrb[0].mxu0 %v439
      %v606 = vpop.f32.mrb[0].mxu0
      %v607 = vadd.f32 %v432, %v606
      %v608 = vpop.f32.mrb[0].mxu0
      %609 = vmatprep.mubr.f32.mxu0 0.0
      %610 = vmatmul.mubr.f32.gmra.mrb[0].mxu0 %v442
      %v611 = vpop.f32.mrb[0].mxu0
      %v612 = vadd.f32 %v432, %v611
      %v613 = vpop.f32.mrb[0].mxu0
      %614 = vmatprep.mubr.f32.mxu0 0.0
      %615 = vmatmul.mubr.f32.gmra.mrb[0].mxu0 %v445
      %v616 = vpop.f32.mrb[0].mxu0
      %v617 = vadd.f32 %v432, %v616
      %v618 = vpop.f32.mrb[0].mxu0
      %619 = vmatprep.mubr.f32.mxu0 0.0
      %620 = vmatmul.mubr.f32.gmra.mrb[0].mxu0 %v448
      %v621 = vpop.f32.mrb[0].mxu0
      %v622 = vadd.f32 %v432, %v621
      %v623 = vpop.f32.mrb[0].mxu0
      %624 = vmatprep.mubr.f32.mxu0 0.0
      %625 = vmatmul.mubr.f32.gmra.mrb[0].mxu0 %v451
      %v626 = vpop.f32.mrb[0].mxu0
      %v627 = vadd.f32 %v432, %v626
      %v628 = vpop.f32.mrb[0].mxu0
      %629 = vmatprep.mubr.f32.mxu0 0.0
      %630 = vmatmul.mubr.f32.gmra.mrb[0].mxu0 %v454
      %v631 = vpop.f32.mrb[0].mxu0
      %v632 = vadd.f32 %v432, %v631
      %v633 = vpop.f32.mrb[0].mxu0
      %634 = vmatprep.mubr.f32.mxu0 0.0
      %635 = vmatmul.mubr.f32.gmra.mrb[0].mxu0 %v457
      %v636 = vpop.f32.mrb[0].mxu0
      %v637 = vadd.f32 %v432, %v636
      %v638 = vpop.f32.mrb[0].mxu0
      %639 = vmatprep.mubr.f32.mxu0 0.0
      %640 = vmatmul.mubr.f32.gmra.mrb[0].mxu0 %v460
      %v641 = vpop.f32.mrb[0].mxu0
      %v642 = vadd.f32 %v432, %v641
      %v643 = vpop.f32.mrb[0].mxu0
      %644 = vmatprep.mubr.f32.mxu0 0.0
      %645 = vmatmul.mubr.f32.gmra.mrb[0].mxu0 %v463
      %v646 = vpop.f32.mrb[0].mxu0
      %v647 = vadd.f32 %v432, %v646
      %v648 = vpop.f32.mrb[0].mxu0
      %649 = vmatprep.mubr.f32.mxu0 0.0
      %650 = vmatmul.mubr.f32.gmra.mrb[0].mxu0 %v466
      %v651 = vpop.f32.mrb[0].mxu0
      %v652 = vadd.f32 %v432, %v651
      %v653 = vpop.f32.mrb[0].mxu0
      %654 = vmatprep.mubr.f32.mxu0 0.0
      %655 = vmatmul.mubr.f32.gmra.mrb[0].mxu0 %v469
      %v656 = vpop.f32.mrb[0].mxu0
      %v657 = vadd.f32 %v432, %v656
      %v658 = vpop.f32.mrb[0].mxu0
      %659 = vmatprep.mubr.f32.mxu0 0.0
      %660 = vmatmul.mubr.f32.gmra.mrb[0].mxu0 %v472
      %v661 = vpop.f32.mrb[0].mxu0
      %v662 = vadd.f32 %v432, %v661
      %v663 = vpop.f32.mrb[0].mxu0
      %664 = vmatprep.mubr.f32.mxu0 0.0
      %665 = vmatmul.mubr.f32.gmra.mrb[0].mxu0 %v475
      %v666 = vpop.f32.mrb[0].mxu0
      %v667 = vadd.f32 %v432, %v666
      %v668 = vpop.f32.mrb[0].mxu0
      %669 = vmatprep.mubr.f32.mxu0 0.0
      %670 = vmatmul.mubr.f32.gmra.mrb[0].mxu0 %v478
      %v671 = vpop.f32.mrb[0].mxu0
      %v672 = vadd.f32 %v432, %v671
      %v673 = vpop.f32.mrb[0].mxu0
      %674 = vmatprep.mubr.f32.mxu0 0.0
      %675 = vmatmul.mubr.f32.gmra.mrb[0].mxu0 %v481
      %v676 = vpop.f32.mrb[0].mxu0
      %v677 = vadd.f32 %v432, %v676
      %v678 = vpop.f32.mrb[0].mxu0
      %679 = vmatprep.mubr.f32.mxu0 0.0
      %680 = vmatmul.mubr.f32.gmra.mrb[0].mxu0 %v484
      %v681 = vpop.f32.mrb[0].mxu0
      %v682 = vadd.f32 %v432, %v681
      %v683 = vpop.f32.mrb[0].mxu0
      %684 = vmatprep.mubr.f32.mxu0 0.0
      %685 = vmatmul.mubr.f32.gmra.mrb[0].mxu0 %v487
      %v686 = vpop.f32.mrb[0].mxu0
      %v687 = vadd.f32 %v432, %v686
      %v688 = vpop.f32.mrb[0].mxu0
      %689 = vmatprep.mubr.f32.mxu0 0.0
      %690 = vmatmul.mubr.f32.gmra.mrb[0].mxu0 %v490
      %v691 = vpop.f32.mrb[0].mxu0
      %v692 = vadd.f32 %v432, %v691
      %v693 = vpop.f32.mrb[0].mxu0
      %694 = vmatprep.mubr.f32.mxu0 0.0
      %695 = vmatmul.mubr.f32.gmra.mrb[0].mxu0 %v493
      %v696 = vpop.f32.mrb[0].mxu0
      %v697 = vadd.f32 %v432, %v696
      %v698 = vpop.f32.mrb[0].mxu0
      %699 = vmatprep.mubr.f32.mxu0 0.0
      %700 = vmatmul.mubr.f32.gmra.mrb[0].mxu0 %v496
      %v701 = vpop.f32.mrb[0].mxu0
      %v702 = vadd.f32 %v432, %v701
      %v703 = vpop.f32.mrb[0].mxu0
      %704 = vmatprep.mubr.f32.mxu0 0.0
      %705 = vmatmul.mubr.f32.gmra.mrb[0].mxu0 %v499
      %v706 = vpop.f32.mrb[0].mxu0
      %v707 = vadd.f32 %v432, %v706
      %v708 = vpop.f32.mrb[0].mxu0
      %709 = vmatprep.mubr.f32.mxu0 0.0
      %710 = vmatmul.mubr.f32.gmra.mrb[0].mxu0 %v502
      %v711 = vpop.f32.mrb[0].mxu0
      %v712 = vadd.f32 %v432, %v711
      %v713 = vpop.f32.mrb[0].mxu0
      %714 = vmatprep.mubr.f32.mxu0 0.0
      %715 = vmatmul.mubr.f32.gmra.mrb[0].mxu0 %v505
      %v716 = vpop.f32.mrb[0].mxu0
      %v717 = vadd.f32 %v432, %v716
      %v718 = vpop.f32.mrb[0].mxu0
      %719 = vmatprep.mubr.f32.mxu0 0.0
      %720 = vmatmul.mubr.f32.gmra.mrb[0].mxu0 %v508
      %v721 = vpop.f32.mrb[0].mxu0
      %v722 = vadd.f32 %v432, %v721
      %v723 = vpop.f32.mrb[0].mxu0
      %724 = vmatprep.mubr.f32.mxu0 0.0
      %725 = vmatmul.mubr.f32.gmra.mrb[0].mxu0 %v511
      %v726 = vpop.f32.mrb[0].mxu0
      %v727 = vadd.f32 %v432, %v726
      %v728 = vpop.f32.mrb[0].mxu0
      %729 = vmatprep.mubr.f32.mxu0 0.0
      %730 = vmatmul.mubr.f32.gmra.mrb[0].mxu0 %v514
      %v731 = vpop.f32.mrb[0].mxu0
      %v732 = vadd.f32 %v432, %v731
      %v733 = vpop.f32.mrb[0].mxu0
      %734 = vmatprep.mubr.f32.mxu0 0.0
      %735 = vmatmul.mubr.f32.gmra.mrb[0].mxu0 %v517
      %v736 = vpop.f32.mrb[0].mxu0
      %v737 = vadd.f32 %v432, %v736
      %v738 = vpop.f32.mrb[0].mxu0
      %739 = vmatprep.mubr.f32.mxu0 0.0
      %740 = vmatmul.mubr.f32.gmra.mrb[0].mxu0 %v520
      %v741 = vpop.f32.mrb[0].mxu0
      %v742 = vadd.f32 %v432, %v741
      %v743 = vpop.f32.mrb[0].mxu0
      %744 = vmatprep.mubr.f32.mxu0 0.0
      %745 = vmatmul.mubr.f32.gmra.mrb[0].mxu0 %v523
      %v746 = vpop.f32.mrb[0].mxu0
      %v747 = vadd.f32 %v432, %v746
      %v748 = vpop.f32.mrb[0].mxu0
      %749 = vmatprep.mubr.f32.mxu0 0.0
      %750 = vmatmul.mubr.f32.gmra.mrb[0].mxu0 %v526
      %v751 = vpop.f32.mrb[0].mxu0
      %v752 = vadd.f32 %v432, %v751
      %v753 = vpop.f32.mrb[0].mxu0
      %754 = vmatprep.mubr.f32.mxu0 0.0
      %755 = vmatmul.mubr.f32.gmra.mrb[0].mxu0 %v529
      %v756 = vpop.f32.mrb[0].mxu0
      %v757 = vadd.f32 %v432, %v756
      %v758 = vpop.f32.mrb[0].mxu0
      %759 = vdwg.mxu0
      %v760 = vmax.f32 %v602, 0.0
      %v761 = vmax.f32 %v607, 0.0
      %v762 = vmax.f32 %v612, 0.0
      %v763 = vmax.f32 %v617, 0.0
      %v764 = vmax.f32 %v622, 0.0
      %v765 = vmax.f32 %v627, 0.0
      %v766 = vmax.f32 %v632, 0.0
      %v767 = vmax.f32 %v637, 0.0
      %v768 = vmax.f32 %v642, 0.0
      %v769 = vmax.f32 %v647, 0.0
      %v770 = vmax.f32 %v652, 0.0
      %v771 = vmax.f32 %v657, 0.0
      %v772 = vmax.f32 %v662, 0.0
      %v773 = vmax.f32 %v667, 0.0
      %v774 = vmax.f32 %v672, 0.0
      %v775 = vmax.f32 %v677, 0.0
      %v776 = vmax.f32 %v682, 0.0
      %v777 = vmax.f32 %v687, 0.0
      %v778 = vmax.f32 %v692, 0.0
      %v779 = vmax.f32 %v697, 0.0
      %v780 = vmax.f32 %v702, 0.0
      %v781 = vmax.f32 %v707, 0.0
      %v782 = vmax.f32 %v712, 0.0
      %v783 = vmax.f32 %v717, 0.0
      %v784 = vmax.f32 %v722, 0.0
      %v785 = vmax.f32 %v727, 0.0
      %v786 = vmax.f32 %v732, 0.0
      %v787 = vmax.f32 %v737, 0.0
      %v788 = vmax.f32 %v742, 0.0
      %v789 = vmax.f32 %v747, 0.0
      %v790 = vmax.f32 %v752, 0.0
      %v791 = vmax.f32 %v757, 0.0
      %v792 = vld [vmem:[%s3] sm:$0x7]
      %v793 = vld [vmem:[%s3 + $0x4] sm:$0x7]
      %v794 = vld [vmem:[%s3 + $0x8] sm:$0x7]
      %v795 = vrot.slane %v760, 7
      %v796 = vrot.slane %v762, 7
      %v797 = vrot.slane %v764, 7
      %v798 = vrot.slane %v766, 7
      %v799 = vrot.slane %v768, 7
      %v800 = vrot.slane %v770, 7
      %v801 = vrot.slane %v772, 7
      %v802 = vrot.slane %v774, 7
      %v803 = vrot.slane %v776, 7
      %v804 = vrot.slane %v778, 7
      %v805 = vrot.slane %v780, 7
      %v806 = vrot.slane %v782, 7
      %v807 = vrot.slane %v784, 7
      %v808 = vrot.slane %v786, 7
      %v809 = vrot.slane %v788, 7
      %v810 = vrot.slane %v790, 7
      %v811 = vrot.slane %v761, 7
      %v812 = vrot.slane %v763, 7
      %v813 = vrot.slane %v765, 7
      %v814 = vrot.slane %v767, 7
      %v815 = vrot.slane %v769, 7
      %v816 = vrot.slane %v771, 7
      %v817 = vrot.slane %v773, 7
      %v818 = vrot.slane %v775, 7
      %v819 = vrot.slane %v777, 7
      %v820 = vrot.slane %v779, 7
      %v821 = vrot.slane %v781, 7
      %v822 = vrot.slane %v783, 7
      %v823 = vrot.slane %v785, 7
      %v824 = vrot.slane %v787, 7
      %v825 = vrot.slane %v789, 7
      %v826 = vrot.slane %v791, 7
      %vm827 = vcmp.lt.s32.totalorder %v388, 1
      %v828 = vsel %vm827, %v795, %v811
      %v829 = vsel %vm827, %v796, %v812
      %v830 = vsel %vm827, %v797, %v813
      %v831 = vsel %vm827, %v798, %v814
      %v832 = vsel %vm827, %v799, %v815
      %v833 = vsel %vm827, %v800, %v816
      %v834 = vsel %vm827, %v801, %v817
      %v835 = vsel %vm827, %v802, %v818
      %v836 = vsel %vm827, %v803, %v819
      %v837 = vsel %vm827, %v804, %v820
      %v838 = vsel %vm827, %v805, %v821
      %v839 = vsel %vm827, %v806, %v822
      %v840 = vsel %vm827, %v807, %v823
      %v841 = vsel %vm827, %v808, %v824
      %v842 = vsel %vm827, %v809, %v825
      %v843 = vsel %vm827, %v810, %v826
      %v844 = vsel %vm827, %v811, %v795
      %v845 = vsel %vm827, %v812, %v796
      %v846 = vsel %vm827, %v813, %v797
      %v847 = vsel %vm827, %v814, %v798
      %v848 = vsel %vm827, %v815, %v799
      %v849 = vsel %vm827, %v816, %v800
      %v850 = vsel %vm827, %v817, %v801
      %v851 = vsel %vm827, %v818, %v802
      %v852 = vsel %vm827, %v819, %v803
      %v853 = vsel %vm827, %v820, %v804
      %v854 = vsel %vm827, %v821, %v805
      %v855 = vsel %vm827, %v822, %v806
      %v856 = vsel %vm827, %v823, %v807
      %v857 = vsel %vm827, %v824, %v808
      %v858 = vsel %vm827, %v825, %v809
      %v859 = vsel %vm827, %v826, %v810
      %v860 = vsel %vm392, %v844, 0.0
      %v861 = vsel %vm393, %v828, 0.0
      %v862 = vsel %vm392, %v845, 0.0
      %v863 = vsel %vm393, %v829, 0.0
      %v864 = vsel %vm392, %v846, 0.0
      %v865 = vsel %vm393, %v830, 0.0
      %v866 = vsel %vm392, %v847, 0.0
      %v867 = vsel %vm393, %v831, 0.0
      %v868 = vsel %vm392, %v848, 0.0
      %v869 = vsel %vm393, %v832, 0.0
      %v870 = vsel %vm392, %v849, 0.0
      %v871 = vsel %vm393, %v833, 0.0
      %v872 = vsel %vm392, %v850, 0.0
      %v873 = vsel %vm393, %v834, 0.0
      %v874 = vsel %vm392, %v851, 0.0
      %v875 = vsel %vm393, %v835, 0.0
      %v876 = vsel %vm392, %v852, 0.0
      %v877 = vsel %vm393, %v836, 0.0
      %v878 = vsel %vm392, %v853, 0.0
      %v879 = vsel %vm393, %v837, 0.0
      %v880 = vsel %vm392, %v854, 0.0
      %v881 = vsel %vm393, %v838, 0.0
      %v882 = vsel %vm392, %v855, 0.0
      %v883 = vsel %vm393, %v839, 0.0
      %v884 = vsel %vm392, %v856, 0.0
      %v885 = vsel %vm393, %v840, 0.0
      %v886 = vsel %vm392, %v857, 0.0
      %v887 = vsel %vm393, %v841, 0.0
      %v888 = vsel %vm392, %v858, 0.0
      %v889 = vsel %vm393, %v842, 0.0
      %v890 = vsel %vm392, %v859, 0.0
      %v891 = vsel %vm393, %v843, 0.0
      %v892 = vrot.slane %v760, 1
      %v893 = vrot.slane %v762, 1
      %v894 = vrot.slane %v764, 1
      %v895 = vrot.slane %v766, 1
      %v896 = vrot.slane %v768, 1
      %v897 = vrot.slane %v770, 1
      %v898 = vrot.slane %v772, 1
      %v899 = vrot.slane %v774, 1
      %v900 = vrot.slane %v776, 1
      %v901 = vrot.slane %v778, 1
      %v902 = vrot.slane %v780, 1
      %v903 = vrot.slane %v782, 1
      %v904 = vrot.slane %v784, 1
      %v905 = vrot.slane %v786, 1
      %v906 = vrot.slane %v788, 1
      %v907 = vrot.slane %v790, 1
      %v908 = vrot.slane %v761, 1
      %v909 = vrot.slane %v763, 1
      %v910 = vrot.slane %v765, 1
      %v911 = vrot.slane %v767, 1
      %v912 = vrot.slane %v769, 1
      %v913 = vrot.slane %v771, 1
      %v914 = vrot.slane %v773, 1
      %v915 = vrot.slane %v775, 1
      %v916 = vrot.slane %v777, 1
      %v917 = vrot.slane %v779, 1
      %v918 = vrot.slane %v781, 1
      %v919 = vrot.slane %v783, 1
      %v920 = vrot.slane %v785, 1
      %v921 = vrot.slane %v787, 1
      %v922 = vrot.slane %v789, 1
      %v923 = vrot.slane %v791, 1
      %vm924 = vcmp.lt.s32.totalorder %v388, 7
      %v925 = vsel %vm924, %v892, %v908
      %v926 = vsel %vm924, %v893, %v909
      %v927 = vsel %vm924, %v894, %v910
      %v928 = vsel %vm924, %v895, %v911
      %v929 = vsel %vm924, %v896, %v912
      %v930 = vsel %vm924, %v897, %v913
      %v931 = vsel %vm924, %v898, %v914
      %v932 = vsel %vm924, %v899, %v915
      %v933 = vsel %vm924, %v900, %v916
      %v934 = vsel %vm924, %v901, %v917
      %v935 = vsel %vm924, %v902, %v918
      %v936 = vsel %vm924, %v903, %v919
      %v937 = vsel %vm924, %v904, %v920
      %v938 = vsel %vm924, %v905, %v921
      %v939 = vsel %vm924, %v906, %v922
      %v940 = vsel %vm924, %v907, %v923
      %v941 = vsel %vm924, %v908, %v892
      %v942 = vsel %vm924, %v909, %v893
      %v943 = vsel %vm924, %v910, %v894
      %v944 = vsel %vm924, %v911, %v895
      %v945 = vsel %vm924, %v912, %v896
      %v946 = vsel %vm924, %v913, %v897
      %v947 = vsel %vm924, %v914, %v898
      %v948 = vsel %vm924, %v915, %v899
      %v949 = vsel %vm924, %v916, %v900
      %v950 = vsel %vm924, %v917, %v901
      %v951 = vsel %vm924, %v918, %v902
      %v952 = vsel %vm924, %v919, %v903
      %v953 = vsel %vm924, %v920, %v904
      %v954 = vsel %vm924, %v921, %v905
      %v955 = vsel %vm924, %v922, %v906
      %v956 = vsel %vm924, %v923, %v907
      %v957 = vsel %vm390, %v925, 0.0
      %v958 = vsel %vm391, %v941, 0.0
      %v959 = vsel %vm390, %v926, 0.0
      %v960 = vsel %vm391, %v942, 0.0
      %v961 = vsel %vm390, %v927, 0.0
      %v962 = vsel %vm391, %v943, 0.0
      %v963 = vsel %vm390, %v928, 0.0
      %v964 = vsel %vm391, %v944, 0.0
      %v965 = vsel %vm390, %v929, 0.0
      %v966 = vsel %vm391, %v945, 0.0
      %v967 = vsel %vm390, %v930, 0.0
      %v968 = vsel %vm391, %v946, 0.0
      %v969 = vsel %vm390, %v931, 0.0
      %v970 = vsel %vm391, %v947, 0.0
      %v971 = vsel %vm390, %v932, 0.0
      %v972 = vsel %vm391, %v948, 0.0
      %v973 = vsel %vm390, %v933, 0.0
      %v974 = vsel %vm391, %v949, 0.0
      %v975 = vsel %vm390, %v934, 0.0
      %v976 = vsel %vm391, %v950, 0.0
      %v977 = vsel %vm390, %v935, 0.0
      %v978 = vsel %vm391, %v951, 0.0
      %v979 = vsel %vm390, %v936, 0.0
      %v980 = vsel %vm391, %v952, 0.0
      %v981 = vsel %vm390, %v937, 0.0
      %v982 = vsel %vm391, %v953, 0.0
      %v983 = vsel %vm390, %v938, 0.0
      %v984 = vsel %vm391, %v954, 0.0
      %v985 = vsel %vm390, %v939, 0.0
      %v986 = vsel %vm391, %v955, 0.0
      %v987 = vsel %vm390, %v940, 0.0
      %v988 = vsel %vm391, %v956, 0.0
      %v989 = vlaneseq
      %v990 = vshrl.u32 %v989, 7
      %v991 = vsub.s32 0, %v990
      %v992 = vrot.slane %v792, %v991
      %v993 = vmul.f32 %v860, %v992
      %v994 = vmul.f32 %v861, %v992
      %v995 = vmul.f32 %v862, %v992
      %v996 = vmul.f32 %v863, %v992
      %v997 = vmul.f32 %v864, %v992
      %v998 = vmul.f32 %v865, %v992
      %v999 = vmul.f32 %v866, %v992
      %v1000 = vmul.f32 %v867, %v992
      %v1001 = vmul.f32 %v868, %v992
      %v1002 = vmul.f32 %v869, %v992
      %v1003 = vmul.f32 %v870, %v992
      %v1004 = vmul.f32 %v871, %v992
      %v1005 = vmul.f32 %v872, %v992
      %v1006 = vmul.f32 %v873, %v992
      %v1007 = vmul.f32 %v874, %v992
      %v1008 = vmul.f32 %v875, %v992
      %v1009 = vmul.f32 %v876, %v992
      %v1010 = vmul.f32 %v877, %v992
      %v1011 = vmul.f32 %v878, %v992
      %v1012 = vmul.f32 %v879, %v992
      %v1013 = vmul.f32 %v880, %v992
      %v1014 = vmul.f32 %v881, %v992
      %v1015 = vmul.f32 %v882, %v992
      %v1016 = vmul.f32 %v883, %v992
      %v1017 = vmul.f32 %v884, %v992
      %v1018 = vmul.f32 %v885, %v992
      %v1019 = vmul.f32 %v886, %v992
      %v1020 = vmul.f32 %v887, %v992
      %v1021 = vmul.f32 %v888, %v992
      %v1022 = vmul.f32 %v889, %v992
      %v1023 = vlaneseq
      %v1024 = vshrl.u32 %v1023, 7
      %v1025 = vsub.s32 1, %v1024
      %v1026 = vrot.slane %v792, %v1025
      %v1027 = vmul.f32 %v760, %v1026
      %v1028 = vmul.f32 %v761, %v1026
      %v1029 = vmul.f32 %v762, %v1026
      %v1030 = vmul.f32 %v763, %v1026
      %v1031 = vmul.f32 %v764, %v1026
      %v1032 = vmul.f32 %v765, %v1026
      %v1033 = vmul.f32 %v766, %v1026
      %v1034 = vmul.f32 %v767, %v1026
      %v1035 = vmul.f32 %v768, %v1026
      %v1036 = vmul.f32 %v769, %v1026
      %v1037 = vmul.f32 %v770, %v1026
      %v1038 = vmul.f32 %v771, %v1026
      %v1039 = vmul.f32 %v772, %v1026
      %v1040 = vmul.f32 %v773, %v1026
      %v1041 = vmul.f32 %v774, %v1026
      %v1042 = vmul.f32 %v775, %v1026
      %v1043 = vmul.f32 %v776, %v1026
      %v1044 = vmul.f32 %v777, %v1026
      %v1045 = vmul.f32 %v778, %v1026
      %v1046 = vmul.f32 %v779, %v1026
      %v1047 = vmul.f32 %v780, %v1026
      %v1048 = vmul.f32 %v781, %v1026
      %v1049 = vmul.f32 %v782, %v1026
      %v1050 = vmul.f32 %v783, %v1026
      %v1051 = vmul.f32 %v784, %v1026
      %v1052 = vmul.f32 %v785, %v1026
      %v1053 = vmul.f32 %v786, %v1026
      %v1054 = vmul.f32 %v787, %v1026
      %v1055 = vmul.f32 %v788, %v1026
      %v1056 = vmul.f32 %v789, %v1026
      %v1057 = vadd.f32 %v993, %v1027
      %v1058 = vadd.f32 %v994, %v1028
      %v1059 = vadd.f32 %v995, %v1029
      %v1060 = vadd.f32 %v996, %v1030
      %v1061 = vadd.f32 %v997, %v1031
      %v1062 = vadd.f32 %v998, %v1032
      %v1063 = vadd.f32 %v999, %v1033
      %v1064 = vadd.f32 %v1000, %v1034
      %v1065 = vadd.f32 %v1001, %v1035
      %v1066 = vadd.f32 %v1002, %v1036
      %v1067 = vadd.f32 %v1003, %v1037
      %v1068 = vadd.f32 %v1004, %v1038
      %v1069 = vadd.f32 %v1005, %v1039
      %v1070 = vadd.f32 %v1006, %v1040
      %v1071 = vadd.f32 %v1007, %v1041
      %v1072 = vadd.f32 %v1008, %v1042
      %v1073 = vadd.f32 %v1009, %v1043
      %v1074 = vadd.f32 %v1010, %v1044
      %v1075 = vadd.f32 %v1011, %v1045
      %v1076 = vadd.f32 %v1012, %v1046
      %v1077 = vadd.f32 %v1013, %v1047
      %v1078 = vadd.f32 %v1014, %v1048
      %v1079 = vadd.f32 %v1015, %v1049
      %v1080 = vadd.f32 %v1016, %v1050
      %v1081 = vadd.f32 %v1017, %v1051
      %v1082 = vadd.f32 %v1018, %v1052
      %v1083 = vadd.f32 %v1019, %v1053
      %v1084 = vadd.f32 %v1020, %v1054
      %v1085 = vadd.f32 %v1021, %v1055
      %v1086 = vadd.f32 %v1022, %v1056
      %v1087 = vlaneseq
      %v1088 = vshrl.u32 %v1087, 7
      %v1089 = vsub.s32 2, %v1088
      %v1090 = vrot.slane %v792, %v1089
      %v1091 = vmul.f32 %v957, %v1090
      %v1092 = vmul.f32 %v958, %v1090
      %v1093 = vmul.f32 %v959, %v1090
      %v1094 = vmul.f32 %v960, %v1090
      %v1095 = vmul.f32 %v961, %v1090
      %v1096 = vmul.f32 %v962, %v1090
      %v1097 = vmul.f32 %v963, %v1090
      %v1098 = vmul.f32 %v964, %v1090
      %v1099 = vmul.f32 %v965, %v1090
      %v1100 = vmul.f32 %v966, %v1090
      %v1101 = vmul.f32 %v967, %v1090
      %v1102 = vmul.f32 %v968, %v1090
      %v1103 = vmul.f32 %v969, %v1090
      %v1104 = vmul.f32 %v970, %v1090
      %v1105 = vmul.f32 %v971, %v1090
      %v1106 = vmul.f32 %v972, %v1090
      %v1107 = vmul.f32 %v973, %v1090
      %v1108 = vmul.f32 %v974, %v1090
      %v1109 = vmul.f32 %v975, %v1090
      %v1110 = vmul.f32 %v976, %v1090
      %v1111 = vmul.f32 %v977, %v1090
      %v1112 = vmul.f32 %v978, %v1090
      %v1113 = vmul.f32 %v979, %v1090
      %v1114 = vmul.f32 %v980, %v1090
      %v1115 = vmul.f32 %v981, %v1090
      %v1116 = vmul.f32 %v982, %v1090
      %v1117 = vmul.f32 %v983, %v1090
      %v1118 = vmul.f32 %v984, %v1090
      %v1119 = vmul.f32 %v985, %v1090
      %v1120 = vmul.f32 %v986, %v1090
      %v1121 = vadd.f32 %v1057, %v1091
      %v1122 = vadd.f32 %v1058, %v1092
      %v1123 = vadd.f32 %v1059, %v1093
      %v1124 = vadd.f32 %v1060, %v1094
      %v1125 = vadd.f32 %v1061, %v1095
      %v1126 = vadd.f32 %v1062, %v1096
      %v1127 = vadd.f32 %v1063, %v1097
      %v1128 = vadd.f32 %v1064, %v1098
      %v1129 = vadd.f32 %v1065, %v1099
      %v1130 = vadd.f32 %v1066, %v1100
      %v1131 = vadd.f32 %v1067, %v1101
      %v1132 = vadd.f32 %v1068, %v1102
      %v1133 = vadd.f32 %v1069, %v1103
      %v1134 = vadd.f32 %v1070, %v1104
      %v1135 = vadd.f32 %v1071, %v1105
      %v1136 = vadd.f32 %v1072, %v1106
      %v1137 = vadd.f32 %v1073, %v1107
      %v1138 = vadd.f32 %v1074, %v1108
      %v1139 = vadd.f32 %v1075, %v1109
      %v1140 = vadd.f32 %v1076, %v1110
      %v1141 = vadd.f32 %v1077, %v1111
      %v1142 = vadd.f32 %v1078, %v1112
      %v1143 = vadd.f32 %v1079, %v1113
      %v1144 = vadd.f32 %v1080, %v1114
      %v1145 = vadd.f32 %v1081, %v1115
      %v1146 = vadd.f32 %v1082, %v1116
      %v1147 = vadd.f32 %v1083, %v1117
      %v1148 = vadd.f32 %v1084, %v1118
      %v1149 = vadd.f32 %v1085, %v1119
      %v1150 = vadd.f32 %v1086, %v1120
      %v1151 = vlaneseq
      %v1152 = vshrl.u32 %v1151, 7
      %v1153 = vsub.s32 0, %v1152
      %v1154 = vrot.slane %v793, %v1153
      %v1155 = vmul.f32 %v860, %v1154
      %v1156 = vmul.f32 %v861, %v1154
      %v1157 = vmul.f32 %v862, %v1154
      %v1158 = vmul.f32 %v863, %v1154
      %v1159 = vmul.f32 %v864, %v1154
      %v1160 = vmul.f32 %v865, %v1154
      %v1161 = vmul.f32 %v866, %v1154
      %v1162 = vmul.f32 %v867, %v1154
      %v1163 = vmul.f32 %v868, %v1154
      %v1164 = vmul.f32 %v869, %v1154
      %v1165 = vmul.f32 %v870, %v1154
      %v1166 = vmul.f32 %v871, %v1154
      %v1167 = vmul.f32 %v872, %v1154
      %v1168 = vmul.f32 %v873, %v1154
      %v1169 = vmul.f32 %v874, %v1154
      %v1170 = vmul.f32 %v875, %v1154
      %v1171 = vmul.f32 %v876, %v1154
      %v1172 = vmul.f32 %v877, %v1154
      %v1173 = vmul.f32 %v878, %v1154
      %v1174 = vmul.f32 %v879, %v1154
      %v1175 = vmul.f32 %v880, %v1154
      %v1176 = vmul.f32 %v881, %v1154
      %v1177 = vmul.f32 %v882, %v1154
      %v1178 = vmul.f32 %v883, %v1154
      %v1179 = vmul.f32 %v884, %v1154
      %v1180 = vmul.f32 %v885, %v1154
      %v1181 = vmul.f32 %v886, %v1154
      %v1182 = vmul.f32 %v887, %v1154
      %v1183 = vmul.f32 %v888, %v1154
      %v1184 = vmul.f32 %v889, %v1154
      %v1185 = vmul.f32 %v890, %v1154
      %v1186 = vmul.f32 %v891, %v1154
      %v1187 = vlaneseq
      %v1188 = vshrl.u32 %v1187, 7
      %v1189 = vsub.s32 1, %v1188
      %v1190 = vrot.slane %v793, %v1189
      %v1191 = vmul.f32 %v760, %v1190
      %v1192 = vmul.f32 %v761, %v1190
      %v1193 = vmul.f32 %v762, %v1190
      %v1194 = vmul.f32 %v763, %v1190
      %v1195 = vmul.f32 %v764, %v1190
      %v1196 = vmul.f32 %v765, %v1190
      %v1197 = vmul.f32 %v766, %v1190
      %v1198 = vmul.f32 %v767, %v1190
      %v1199 = vmul.f32 %v768, %v1190
      %v1200 = vmul.f32 %v769, %v1190
      %v1201 = vmul.f32 %v770, %v1190
      %v1202 = vmul.f32 %v771, %v1190
      %v1203 = vmul.f32 %v772, %v1190
      %v1204 = vmul.f32 %v773, %v1190
      %v1205 = vmul.f32 %v774, %v1190
      %v1206 = vmul.f32 %v775, %v1190
      %v1207 = vmul.f32 %v776, %v1190
      %v1208 = vmul.f32 %v777, %v1190
      %v1209 = vmul.f32 %v778, %v1190
      %v1210 = vmul.f32 %v779, %v1190
      %v1211 = vmul.f32 %v780, %v1190
      %v1212 = vmul.f32 %v781, %v1190
      %v1213 = vmul.f32 %v782, %v1190
      %v1214 = vmul.f32 %v783, %v1190
      %v1215 = vmul.f32 %v784, %v1190
      %v1216 = vmul.f32 %v785, %v1190
      %v1217 = vmul.f32 %v786, %v1190
      %v1218 = vmul.f32 %v787, %v1190
      %v1219 = vmul.f32 %v788, %v1190
      %v1220 = vmul.f32 %v789, %v1190
      %v1221 = vmul.f32 %v790, %v1190
      %v1222 = vmul.f32 %v791, %v1190
      %v1223 = vadd.f32 %v1155, %v1191
      %v1224 = vadd.f32 %v1156, %v1192
      %v1225 = vadd.f32 %v1157, %v1193
      %v1226 = vadd.f32 %v1158, %v1194
      %v1227 = vadd.f32 %v1159, %v1195
      %v1228 = vadd.f32 %v1160, %v1196
      %v1229 = vadd.f32 %v1161, %v1197
      %v1230 = vadd.f32 %v1162, %v1198
      %v1231 = vadd.f32 %v1163, %v1199
      %v1232 = vadd.f32 %v1164, %v1200
      %v1233 = vadd.f32 %v1165, %v1201
      %v1234 = vadd.f32 %v1166, %v1202
      %v1235 = vadd.f32 %v1167, %v1203
      %v1236 = vadd.f32 %v1168, %v1204
      %v1237 = vadd.f32 %v1169, %v1205
      %v1238 = vadd.f32 %v1170, %v1206
      %v1239 = vadd.f32 %v1171, %v1207
      %v1240 = vadd.f32 %v1172, %v1208
      %v1241 = vadd.f32 %v1173, %v1209
      %v1242 = vadd.f32 %v1174, %v1210
      %v1243 = vadd.f32 %v1175, %v1211
      %v1244 = vadd.f32 %v1176, %v1212
      %v1245 = vadd.f32 %v1177, %v1213
      %v1246 = vadd.f32 %v1178, %v1214
      %v1247 = vadd.f32 %v1179, %v1215
      %v1248 = vadd.f32 %v1180, %v1216
      %v1249 = vadd.f32 %v1181, %v1217
      %v1250 = vadd.f32 %v1182, %v1218
      %v1251 = vadd.f32 %v1183, %v1219
      %v1252 = vadd.f32 %v1184, %v1220
      %v1253 = vadd.f32 %v1185, %v1221
      %v1254 = vadd.f32 %v1186, %v1222
      %v1255 = vlaneseq
      %v1256 = vshrl.u32 %v1255, 7
      %v1257 = vsub.s32 2, %v1256
      %v1258 = vrot.slane %v793, %v1257
      %v1259 = vmul.f32 %v957, %v1258
      %v1260 = vmul.f32 %v958, %v1258
      %v1261 = vmul.f32 %v959, %v1258
      %v1262 = vmul.f32 %v960, %v1258
      %v1263 = vmul.f32 %v961, %v1258
      %v1264 = vmul.f32 %v962, %v1258
      %v1265 = vmul.f32 %v963, %v1258
      %v1266 = vmul.f32 %v964, %v1258
      %v1267 = vmul.f32 %v965, %v1258
      %v1268 = vmul.f32 %v966, %v1258
      %v1269 = vmul.f32 %v967, %v1258
      %v1270 = vmul.f32 %v968, %v1258
      %v1271 = vmul.f32 %v969, %v1258
      %v1272 = vmul.f32 %v970, %v1258
      %v1273 = vmul.f32 %v971, %v1258
      %v1274 = vmul.f32 %v972, %v1258
      %v1275 = vmul.f32 %v973, %v1258
      %v1276 = vmul.f32 %v974, %v1258
      %v1277 = vmul.f32 %v975, %v1258
      %v1278 = vmul.f32 %v976, %v1258
      %v1279 = vmul.f32 %v977, %v1258
      %v1280 = vmul.f32 %v978, %v1258
      %v1281 = vmul.f32 %v979, %v1258
      %v1282 = vmul.f32 %v980, %v1258
      %v1283 = vmul.f32 %v981, %v1258
      %v1284 = vmul.f32 %v982, %v1258
      %v1285 = vmul.f32 %v983, %v1258
      %v1286 = vmul.f32 %v984, %v1258
      %v1287 = vmul.f32 %v985, %v1258
      %v1288 = vmul.f32 %v986, %v1258
      %v1289 = vmul.f32 %v987, %v1258
      %v1290 = vmul.f32 %v988, %v1258
      %v1291 = vadd.f32 %v1223, %v1259
      %v1292 = vadd.f32 %v1224, %v1260
      %v1293 = vadd.f32 %v1225, %v1261
      %v1294 = vadd.f32 %v1226, %v1262
      %v1295 = vadd.f32 %v1227, %v1263
      %v1296 = vadd.f32 %v1228, %v1264
      %v1297 = vadd.f32 %v1229, %v1265
      %v1298 = vadd.f32 %v1230, %v1266
      %v1299 = vadd.f32 %v1231, %v1267
      %v1300 = vadd.f32 %v1232, %v1268
      %v1301 = vadd.f32 %v1233, %v1269
      %v1302 = vadd.f32 %v1234, %v1270
      %v1303 = vadd.f32 %v1235, %v1271
      %v1304 = vadd.f32 %v1236, %v1272
      %v1305 = vadd.f32 %v1237, %v1273
      %v1306 = vadd.f32 %v1238, %v1274
      %v1307 = vadd.f32 %v1239, %v1275
      %v1308 = vadd.f32 %v1240, %v1276
      %v1309 = vadd.f32 %v1241, %v1277
      %v1310 = vadd.f32 %v1242, %v1278
      %v1311 = vadd.f32 %v1243, %v1279
      %v1312 = vadd.f32 %v1244, %v1280
      %v1313 = vadd.f32 %v1245, %v1281
      %v1314 = vadd.f32 %v1246, %v1282
      %v1315 = vadd.f32 %v1247, %v1283
      %v1316 = vadd.f32 %v1248, %v1284
      %v1317 = vadd.f32 %v1249, %v1285
      %v1318 = vadd.f32 %v1250, %v1286
      %v1319 = vadd.f32 %v1251, %v1287
      %v1320 = vadd.f32 %v1252, %v1288
      %v1321 = vadd.f32 %v1253, %v1289
      %v1322 = vadd.f32 %v1254, %v1290
      %v1323 = vlaneseq
      %v1324 = vshrl.u32 %v1323, 7
      %v1325 = vsub.s32 0, %v1324
      %v1326 = vrot.slane %v794, %v1325
      %v1327 = vmul.f32 %v862, %v1326
      %v1328 = vmul.f32 %v863, %v1326
      %v1329 = vmul.f32 %v864, %v1326
      %v1330 = vmul.f32 %v865, %v1326
      %v1331 = vmul.f32 %v866, %v1326
      %v1332 = vmul.f32 %v867, %v1326
      %v1333 = vmul.f32 %v868, %v1326
      %v1334 = vmul.f32 %v869, %v1326
      %v1335 = vmul.f32 %v870, %v1326
      %v1336 = vmul.f32 %v871, %v1326
      %v1337 = vmul.f32 %v872, %v1326
      %v1338 = vmul.f32 %v873, %v1326
      %v1339 = vmul.f32 %v874, %v1326
      %v1340 = vmul.f32 %v875, %v1326
      %v1341 = vmul.f32 %v876, %v1326
      %v1342 = vmul.f32 %v877, %v1326
      %v1343 = vmul.f32 %v878, %v1326
      %v1344 = vmul.f32 %v879, %v1326
      %v1345 = vmul.f32 %v880, %v1326
      %v1346 = vmul.f32 %v881, %v1326
      %v1347 = vmul.f32 %v882, %v1326
      %v1348 = vmul.f32 %v883, %v1326
      %v1349 = vmul.f32 %v884, %v1326
      %v1350 = vmul.f32 %v885, %v1326
      %v1351 = vmul.f32 %v886, %v1326
      %v1352 = vmul.f32 %v887, %v1326
      %v1353 = vmul.f32 %v888, %v1326
      %v1354 = vmul.f32 %v889, %v1326
      %v1355 = vmul.f32 %v890, %v1326
      %v1356 = vmul.f32 %v891, %v1326
      %v1357 = vlaneseq
      %v1358 = vshrl.u32 %v1357, 7
      %v1359 = vsub.s32 1, %v1358
      %v1360 = vrot.slane %v794, %v1359
      %v1361 = vmul.f32 %v762, %v1360
      %v1362 = vmul.f32 %v763, %v1360
      %v1363 = vmul.f32 %v764, %v1360
      %v1364 = vmul.f32 %v765, %v1360
      %v1365 = vmul.f32 %v766, %v1360
      %v1366 = vmul.f32 %v767, %v1360
      %v1367 = vmul.f32 %v768, %v1360
      %v1368 = vmul.f32 %v769, %v1360
      %v1369 = vmul.f32 %v770, %v1360
      %v1370 = vmul.f32 %v771, %v1360
      %v1371 = vmul.f32 %v772, %v1360
      %v1372 = vmul.f32 %v773, %v1360
      %v1373 = vmul.f32 %v774, %v1360
      %v1374 = vmul.f32 %v775, %v1360
      %v1375 = vmul.f32 %v776, %v1360
      %v1376 = vmul.f32 %v777, %v1360
      %v1377 = vmul.f32 %v778, %v1360
      %v1378 = vmul.f32 %v779, %v1360
      %v1379 = vmul.f32 %v780, %v1360
      %v1380 = vmul.f32 %v781, %v1360
      %v1381 = vmul.f32 %v782, %v1360
      %v1382 = vmul.f32 %v783, %v1360
      %v1383 = vmul.f32 %v784, %v1360
      %v1384 = vmul.f32 %v785, %v1360
      %v1385 = vmul.f32 %v786, %v1360
      %v1386 = vmul.f32 %v787, %v1360
      %v1387 = vmul.f32 %v788, %v1360
      %v1388 = vmul.f32 %v789, %v1360
      %v1389 = vmul.f32 %v790, %v1360
      %v1390 = vmul.f32 %v791, %v1360
      %v1391 = vadd.f32 %v1327, %v1361
      %v1392 = vadd.f32 %v1328, %v1362
      %v1393 = vadd.f32 %v1329, %v1363
      %v1394 = vadd.f32 %v1330, %v1364
      %v1395 = vadd.f32 %v1331, %v1365
      %v1396 = vadd.f32 %v1332, %v1366
      %v1397 = vadd.f32 %v1333, %v1367
      %v1398 = vadd.f32 %v1334, %v1368
      %v1399 = vadd.f32 %v1335, %v1369
      %v1400 = vadd.f32 %v1336, %v1370
      %v1401 = vadd.f32 %v1337, %v1371
      %v1402 = vadd.f32 %v1338, %v1372
      %v1403 = vadd.f32 %v1339, %v1373
      %v1404 = vadd.f32 %v1340, %v1374
      %v1405 = vadd.f32 %v1341, %v1375
      %v1406 = vadd.f32 %v1342, %v1376
      %v1407 = vadd.f32 %v1343, %v1377
      %v1408 = vadd.f32 %v1344, %v1378
      %v1409 = vadd.f32 %v1345, %v1379
      %v1410 = vadd.f32 %v1346, %v1380
      %v1411 = vadd.f32 %v1347, %v1381
      %v1412 = vadd.f32 %v1348, %v1382
      %v1413 = vadd.f32 %v1349, %v1383
      %v1414 = vadd.f32 %v1350, %v1384
      %v1415 = vadd.f32 %v1351, %v1385
      %v1416 = vadd.f32 %v1352, %v1386
      %v1417 = vadd.f32 %v1353, %v1387
      %v1418 = vadd.f32 %v1354, %v1388
      %v1419 = vadd.f32 %v1355, %v1389
      %v1420 = vadd.f32 %v1356, %v1390
      %v1421 = vlaneseq
      %v1422 = vshrl.u32 %v1421, 7
      %v1423 = vsub.s32 2, %v1422
      %v1424 = vrot.slane %v794, %v1423
      %v1425 = vmul.f32 %v959, %v1424
      %v1426 = vmul.f32 %v960, %v1424
      %v1427 = vmul.f32 %v961, %v1424
      %v1428 = vmul.f32 %v962, %v1424
      %v1429 = vmul.f32 %v963, %v1424
      %v1430 = vmul.f32 %v964, %v1424
      %v1431 = vmul.f32 %v965, %v1424
      %v1432 = vmul.f32 %v966, %v1424
      %v1433 = vmul.f32 %v967, %v1424
      %v1434 = vmul.f32 %v968, %v1424
      %v1435 = vmul.f32 %v969, %v1424
      %v1436 = vmul.f32 %v970, %v1424
      %v1437 = vmul.f32 %v971, %v1424
      %v1438 = vmul.f32 %v972, %v1424
      %v1439 = vmul.f32 %v973, %v1424
      %v1440 = vmul.f32 %v974, %v1424
      %v1441 = vmul.f32 %v975, %v1424
      %v1442 = vmul.f32 %v976, %v1424
      %v1443 = vmul.f32 %v977, %v1424
      %v1444 = vmul.f32 %v978, %v1424
      %v1445 = vmul.f32 %v979, %v1424
      %v1446 = vmul.f32 %v980, %v1424
      %v1447 = vmul.f32 %v981, %v1424
      %v1448 = vmul.f32 %v982, %v1424
      %v1449 = vmul.f32 %v983, %v1424
      %v1450 = vmul.f32 %v984, %v1424
      %v1451 = vmul.f32 %v985, %v1424
      %v1452 = vmul.f32 %v986, %v1424
      %v1453 = vmul.f32 %v987, %v1424
      %v1454 = vmul.f32 %v988, %v1424
      %v1455 = vadd.f32 %v1391, %v1425
      %v1456 = vadd.f32 %v1392, %v1426
      %v1457 = vadd.f32 %v1393, %v1427
      %v1458 = vadd.f32 %v1394, %v1428
      %v1459 = vadd.f32 %v1395, %v1429
      %v1460 = vadd.f32 %v1396, %v1430
      %v1461 = vadd.f32 %v1397, %v1431
      %v1462 = vadd.f32 %v1398, %v1432
      %v1463 = vadd.f32 %v1399, %v1433
      %v1464 = vadd.f32 %v1400, %v1434
      %v1465 = vadd.f32 %v1401, %v1435
      %v1466 = vadd.f32 %v1402, %v1436
      %v1467 = vadd.f32 %v1403, %v1437
      %v1468 = vadd.f32 %v1404, %v1438
      %v1469 = vadd.f32 %v1405, %v1439
      %v1470 = vadd.f32 %v1406, %v1440
      %v1471 = vadd.f32 %v1407, %v1441
      %v1472 = vadd.f32 %v1408, %v1442
      %v1473 = vadd.f32 %v1409, %v1443
      %v1474 = vadd.f32 %v1410, %v1444
      %v1475 = vadd.f32 %v1411, %v1445
      %v1476 = vadd.f32 %v1412, %v1446
      %v1477 = vadd.f32 %v1413, %v1447
      %v1478 = vadd.f32 %v1414, %v1448
      %v1479 = vadd.f32 %v1415, %v1449
      %v1480 = vadd.f32 %v1416, %v1450
      %v1481 = vadd.f32 %v1417, %v1451
      %v1482 = vadd.f32 %v1418, %v1452
      %v1483 = vadd.f32 %v1419, %v1453
      %v1484 = vadd.f32 %v1420, %v1454
      %v1485 = vadd.f32 %v1291, 0.0
      %v1486 = vadd.f32 %v1292, 0.0
      %v1487 = vadd.f32 %v1121, %v1293
      %v1488 = vadd.f32 %v1122, %v1294
      %v1489 = vadd.f32 %v1123, %v1295
      %v1490 = vadd.f32 %v1124, %v1296
      %v1491 = vadd.f32 %v1125, %v1297
      %v1492 = vadd.f32 %v1126, %v1298
      %v1493 = vadd.f32 %v1127, %v1299
      %v1494 = vadd.f32 %v1128, %v1300
      %v1495 = vadd.f32 %v1129, %v1301
      %v1496 = vadd.f32 %v1130, %v1302
      %v1497 = vadd.f32 %v1131, %v1303
      %v1498 = vadd.f32 %v1132, %v1304
      %v1499 = vadd.f32 %v1133, %v1305
      %v1500 = vadd.f32 %v1134, %v1306
      %v1501 = vadd.f32 %v1135, %v1307
      %v1502 = vadd.f32 %v1136, %v1308
      %v1503 = vadd.f32 %v1137, %v1309
      %v1504 = vadd.f32 %v1138, %v1310
      %v1505 = vadd.f32 %v1139, %v1311
      %v1506 = vadd.f32 %v1140, %v1312
      %v1507 = vadd.f32 %v1141, %v1313
      %v1508 = vadd.f32 %v1142, %v1314
      %v1509 = vadd.f32 %v1143, %v1315
      %v1510 = vadd.f32 %v1144, %v1316
      %v1511 = vadd.f32 %v1145, %v1317
      %v1512 = vadd.f32 %v1146, %v1318
      %v1513 = vadd.f32 %v1147, %v1319
      %v1514 = vadd.f32 %v1148, %v1320
      %v1515 = vadd.f32 %v1149, %v1321
      %v1516 = vadd.f32 %v1150, %v1322
      %v1517 = vadd.f32 %v1485, %v1455
      %v1518 = vadd.f32 %v1486, %v1456
      %v1519 = vadd.f32 %v1487, %v1457
      %v1520 = vadd.f32 %v1488, %v1458
      %v1521 = vadd.f32 %v1489, %v1459
      %v1522 = vadd.f32 %v1490, %v1460
      %v1523 = vadd.f32 %v1491, %v1461
      %v1524 = vadd.f32 %v1492, %v1462
      %v1525 = vadd.f32 %v1493, %v1463
      %v1526 = vadd.f32 %v1494, %v1464
      %v1527 = vadd.f32 %v1495, %v1465
      %v1528 = vadd.f32 %v1496, %v1466
      %v1529 = vadd.f32 %v1497, %v1467
      %v1530 = vadd.f32 %v1498, %v1468
      %v1531 = vadd.f32 %v1499, %v1469
      %v1532 = vadd.f32 %v1500, %v1470
      %v1533 = vadd.f32 %v1501, %v1471
      %v1534 = vadd.f32 %v1502, %v1472
      %v1535 = vadd.f32 %v1503, %v1473
      %v1536 = vadd.f32 %v1504, %v1474
      %v1537 = vadd.f32 %v1505, %v1475
      %v1538 = vadd.f32 %v1506, %v1476
      %v1539 = vadd.f32 %v1507, %v1477
      %v1540 = vadd.f32 %v1508, %v1478
      %v1541 = vadd.f32 %v1509, %v1479
      %v1542 = vadd.f32 %v1510, %v1480
      %v1543 = vadd.f32 %v1511, %v1481
      %v1544 = vadd.f32 %v1512, %v1482
      %v1545 = vadd.f32 %v1513, %v1483
      %v1546 = vadd.f32 %v1514, %v1484
      %v1547 = vadd.f32 %v1515, 0.0
      %v1548 = vadd.f32 %v1516, 0.0
      %vm1549 = vcmp.gt.f32.partialorder %v1517, 0.0
      %vm1550 = vcmp.gt.f32.partialorder %v1518, 0.0
      %vm1551 = vcmp.gt.f32.partialorder %v1519, 0.0
      %vm1552 = vcmp.gt.f32.partialorder %v1520, 0.0
      %vm1553 = vcmp.gt.f32.partialorder %v1521, 0.0
      %vm1554 = vcmp.gt.f32.partialorder %v1522, 0.0
      %vm1555 = vcmp.gt.f32.partialorder %v1523, 0.0
      %vm1556 = vcmp.gt.f32.partialorder %v1524, 0.0
      %vm1557 = vcmp.gt.f32.partialorder %v1525, 0.0
      %vm1558 = vcmp.gt.f32.partialorder %v1526, 0.0
      %vm1559 = vcmp.gt.f32.partialorder %v1527, 0.0
      %vm1560 = vcmp.gt.f32.partialorder %v1528, 0.0
      %vm1561 = vcmp.gt.f32.partialorder %v1529, 0.0
      %vm1562 = vcmp.gt.f32.partialorder %v1530, 0.0
      %vm1563 = vcmp.gt.f32.partialorder %v1531, 0.0
      %vm1564 = vcmp.gt.f32.partialorder %v1532, 0.0
      %vm1565 = vcmp.gt.f32.partialorder %v1533, 0.0
      %vm1566 = vcmp.gt.f32.partialorder %v1534, 0.0
      %vm1567 = vcmp.gt.f32.partialorder %v1535, 0.0
      %vm1568 = vcmp.gt.f32.partialorder %v1536, 0.0
      %vm1569 = vcmp.gt.f32.partialorder %v1537, 0.0
      %vm1570 = vcmp.gt.f32.partialorder %v1538, 0.0
      %vm1571 = vcmp.gt.f32.partialorder %v1539, 0.0
      %vm1572 = vcmp.gt.f32.partialorder %v1540, 0.0
      %vm1573 = vcmp.gt.f32.partialorder %v1541, 0.0
      %vm1574 = vcmp.gt.f32.partialorder %v1542, 0.0
      %vm1575 = vcmp.gt.f32.partialorder %v1543, 0.0
      %vm1576 = vcmp.gt.f32.partialorder %v1544, 0.0
      %vm1577 = vcmp.gt.f32.partialorder %v1545, 0.0
      %vm1578 = vcmp.gt.f32.partialorder %v1546, 0.0
      %vm1579 = vcmp.gt.f32.partialorder %v1547, 0.0
      %vm1580 = vcmp.gt.f32.partialorder %v1548, 0.0
      %v1581 = vmul.f32 %v1517, 1.442695
      %v1582 = vpow.pop %v1581
      %v1583 = vmul.f32 %v1518, 1.442695
      %v1584 = vpow.pop %v1583
      %v1585 = vmul.f32 %v1519, 1.442695
      %v1586 = vpow.pop %v1585
      %v1587 = vmul.f32 %v1520, 1.442695
      %v1588 = vpow.pop %v1587
      %v1589 = vmul.f32 %v1521, 1.442695
      %v1590 = vpow.pop %v1589
      %v1591 = vmul.f32 %v1522, 1.442695
      %v1592 = vpow.pop %v1591
      %v1593 = vmul.f32 %v1523, 1.442695
      %v1594 = vpow.pop %v1593
      %v1595 = vmul.f32 %v1524, 1.442695
      %v1596 = vpow.pop %v1595
      %v1597 = vmul.f32 %v1525, 1.442695
      %v1598 = vpow.pop %v1597
      %v1599 = vmul.f32 %v1526, 1.442695
      %v1600 = vpow.pop %v1599
      %v1601 = vmul.f32 %v1527, 1.442695
      %v1602 = vpow.pop %v1601
      %v1603 = vmul.f32 %v1528, 1.442695
      %v1604 = vpow.pop %v1603
      %v1605 = vmul.f32 %v1529, 1.442695
      %v1606 = vpow.pop %v1605
      %v1607 = vmul.f32 %v1530, 1.442695
      %v1608 = vpow.pop %v1607
      %v1609 = vmul.f32 %v1531, 1.442695
      %v1610 = vpow.pop %v1609
      %v1611 = vmul.f32 %v1532, 1.442695
      %v1612 = vpow.pop %v1611
      %v1613 = vmul.f32 %v1533, 1.442695
      %v1614 = vpow.pop %v1613
      %v1615 = vmul.f32 %v1534, 1.442695
      %v1616 = vpow.pop %v1615
      %v1617 = vmul.f32 %v1535, 1.442695
      %v1618 = vpow.pop %v1617
      %v1619 = vmul.f32 %v1536, 1.442695
      %v1620 = vpow.pop %v1619
      %v1621 = vmul.f32 %v1537, 1.442695
      %v1622 = vpow.pop %v1621
      %v1623 = vmul.f32 %v1538, 1.442695
      %v1624 = vpow.pop %v1623
      %v1625 = vmul.f32 %v1539, 1.442695
      %v1626 = vpow.pop %v1625
      %v1627 = vmul.f32 %v1540, 1.442695
      %v1628 = vpow.pop %v1627
      %v1629 = vmul.f32 %v1541, 1.442695
      %v1630 = vpow.pop %v1629
      %v1631 = vmul.f32 %v1542, 1.442695
      %v1632 = vpow.pop %v1631
      %v1633 = vmul.f32 %v1543, 1.442695
      %v1634 = vpow.pop %v1633
      %v1635 = vmul.f32 %v1544, 1.442695
      %v1636 = vpow.pop %v1635
      %v1637 = vmul.f32 %v1545, 1.442695
      %v1638 = vpow.pop %v1637
      %v1639 = vmul.f32 %v1546, 1.442695
      %v1640 = vpow.pop %v1639
      %v1641 = vmul.f32 %v1547, 1.442695
      %v1642 = vpow.pop %v1641
      %v1643 = vmul.f32 %v1548, 1.442695
      %v1644 = vpow.pop %v1643
      %v1645 = vsub.f32 %v1582, 1.0
      %v1646 = vsub.f32 %v1584, 1.0
      %v1647 = vsub.f32 %v1586, 1.0
      %v1648 = vsub.f32 %v1588, 1.0
      %v1649 = vsub.f32 %v1590, 1.0
      %v1650 = vsub.f32 %v1592, 1.0
      %v1651 = vsub.f32 %v1594, 1.0
      %v1652 = vsub.f32 %v1596, 1.0
      %v1653 = vsub.f32 %v1598, 1.0
      %v1654 = vsub.f32 %v1600, 1.0
      %v1655 = vsub.f32 %v1602, 1.0
      %v1656 = vsub.f32 %v1604, 1.0
      %v1657 = vsub.f32 %v1606, 1.0
      %v1658 = vsub.f32 %v1608, 1.0
      %v1659 = vsub.f32 %v1610, 1.0
      %v1660 = vsub.f32 %v1612, 1.0
      %v1661 = vsub.f32 %v1614, 1.0
      %v1662 = vsub.f32 %v1616, 1.0
      %v1663 = vsub.f32 %v1618, 1.0
      %v1664 = vsub.f32 %v1620, 1.0
      %v1665 = vsub.f32 %v1622, 1.0
      %v1666 = vsub.f32 %v1624, 1.0
      %v1667 = vsub.f32 %v1626, 1.0
      %v1668 = vsub.f32 %v1628, 1.0
      %v1669 = vsub.f32 %v1630, 1.0
      %v1670 = vsub.f32 %v1632, 1.0
      %v1671 = vsub.f32 %v1634, 1.0
      %v1672 = vsub.f32 %v1636, 1.0
      %v1673 = vsub.f32 %v1638, 1.0
      %v1674 = vsub.f32 %v1640, 1.0
      %v1675 = vsub.f32 %v1642, 1.0
      %v1676 = vsub.f32 %v1644, 1.0
      %v1677 = vsel %vm1549, %v1517, %v1645
      %v1678 = vsel %vm1550, %v1518, %v1646
      %v1679 = vsel %vm1551, %v1519, %v1647
      %v1680 = vsel %vm1552, %v1520, %v1648
      %v1681 = vsel %vm1553, %v1521, %v1649
      %v1682 = vsel %vm1554, %v1522, %v1650
      %v1683 = vsel %vm1555, %v1523, %v1651
      %v1684 = vsel %vm1556, %v1524, %v1652
      %v1685 = vsel %vm1557, %v1525, %v1653
      %v1686 = vsel %vm1558, %v1526, %v1654
      %v1687 = vsel %vm1559, %v1527, %v1655
      %v1688 = vsel %vm1560, %v1528, %v1656
      %v1689 = vsel %vm1561, %v1529, %v1657
      %v1690 = vsel %vm1562, %v1530, %v1658
      %v1691 = vsel %vm1563, %v1531, %v1659
      %v1692 = vsel %vm1564, %v1532, %v1660
      %v1693 = vsel %vm1565, %v1533, %v1661
      %v1694 = vsel %vm1566, %v1534, %v1662
      %v1695 = vsel %vm1567, %v1535, %v1663
      %v1696 = vsel %vm1568, %v1536, %v1664
      %v1697 = vsel %vm1569, %v1537, %v1665
      %v1698 = vsel %vm1570, %v1538, %v1666
      %v1699 = vsel %vm1571, %v1539, %v1667
      %v1700 = vsel %vm1572, %v1540, %v1668
      %v1701 = vsel %vm1573, %v1541, %v1669
      %v1702 = vsel %vm1574, %v1542, %v1670
      %v1703 = vsel %vm1575, %v1543, %v1671
      %v1704 = vsel %vm1576, %v1544, %v1672
      %v1705 = vsel %vm1577, %v1545, %v1673
      %v1706 = vsel %vm1578, %v1546, %v1674
      %v1707 = vsel %vm1579, %v1547, %v1675
      %v1708 = vsel %vm1580, %v1548, %v1676
      %v1709 = vld [vmem:[%s4] sm:$0xff]
      %vm1710 = vcmask 64512
      %v1712 = vsel %vm1710, %v1677, 0
      %v1715 = vsel %vm1710, %v1678, 0
      %v1718 = vsel %vm1710, %v1679, 0
      %v1721 = vsel %vm1710, %v1680, 0
      %v1724 = vsel %vm1710, %v1681, 0
      %v1727 = vsel %vm1710, %v1682, 0
      %v1730 = vsel %vm1710, %v1683, 0
      %v1733 = vsel %vm1710, %v1684, 0
      %v1736 = vsel %vm1710, %v1685, 0
      %v1739 = vsel %vm1710, %v1686, 0
      %v1742 = vsel %vm1710, %v1687, 0
      %v1745 = vsel %vm1710, %v1688, 0
      %v1748 = vsel %vm1710, %v1689, 0
      %v1751 = vsel %vm1710, %v1690, 0
      %v1754 = vsel %vm1710, %v1691, 0
      %v1757 = vsel %vm1710, %v1692, 0
      %v1760 = vsel %vm1710, %v1693, 0
      %v1763 = vsel %vm1710, %v1694, 0
      %v1766 = vsel %vm1710, %v1695, 0
      %v1769 = vsel %vm1710, %v1696, 0
      %v1772 = vsel %vm1710, %v1697, 0
      %v1775 = vsel %vm1710, %v1698, 0
      %v1778 = vsel %vm1710, %v1699, 0
      %v1781 = vsel %vm1710, %v1700, 0
      %v1784 = vsel %vm1710, %v1701, 0
      %v1787 = vsel %vm1710, %v1702, 0
      %v1790 = vsel %vm1710, %v1703, 0
      %v1793 = vsel %vm1710, %v1704, 0
      %v1796 = vsel %vm1710, %v1705, 0
      %v1799 = vsel %vm1710, %v1706, 0
      %v1802 = vsel %vm1710, %v1707, 0
      %v1805 = vsel %vm1710, %v1708, 0
      %1807 = vmatprep.subr.mxu0 0.0
      %1808 = vmatpush1.msra.mxu0 %v1709
      %1809 = vmatprep.subr.mxu0 0.0
      %1810 = vmatpush1.msra.mxu0 0.0
      %1811 = vmatprep.subr.mxu0 0.0
      %1812 = vmatpush1.msra.mxu0 0.0
      %1813 = vmatprep.subr.mxu0 0.0
      %1814 = vmatpush1.msra.mxu0 0.0
      %1815 = vmatprep.subr.mxu0 0.0
      %1816 = vmatpush1.msra.mxu0 0.0
      %1817 = vmatprep.subr.mxu0 0.0
      %1818 = vmatpush1.msra.mxu0 0.0
      %1819 = vmatprep.subr.mxu0 0.0
      %1820 = vmatpush1.msra.mxu0 0.0
      %1821 = vmatprep.subr.mxu0 0.0
      %1822 = vmatpush1.msra.mxu0 0.0
      %1823 = vmatprep.subr.mxu0 0.0
      %1824 = vmatpush1.msra.mxu0 0.0
      %1825 = vmatprep.subr.mxu0 0.0
      %1826 = vmatpush1.msra.mxu0 0.0
      %1827 = vmatprep.subr.mxu0 0.0
      %1828 = vmatpush1.msra.mxu0 0.0
      %1829 = vmatprep.subr.mxu0 0.0
      %1830 = vmatpush1.msra.mxu0 0.0
      %1831 = vmatprep.subr.mxu0 0.0
      %1832 = vmatpush1.msra.mxu0 0.0
      %1833 = vmatprep.subr.mxu0 0.0
      %1834 = vmatpush1.msra.mxu0 0.0
      %1835 = vmatprep.subr.mxu0 0.0
      %1836 = vmatpush1.msra.mxu0 0.0
      %1837 = vmatprep.subr.mxu0 0.0
      %1838 = vmatpush1.msra.mxu0 0.0
      %1839 = vmatprep.subr.mxu0 0.0
      %1840 = vmatpush1.msra.mxu0 0.0
      %1841 = vmatprep.subr.mxu0 0.0
      %1842 = vmatpush1.msra.mxu0 0.0
      %1843 = vmatprep.subr.mxu0 0.0
      %1844 = vmatpush1.msra.mxu0 0.0
      %1845 = vmatprep.subr.mxu0 0.0
      %1846 = vmatpush1.msra.mxu0 0.0
      %1847 = vmatprep.subr.mxu0 0.0
      %1848 = vmatpush1.msra.mxu0 0.0
      %1849 = vmatprep.subr.mxu0 0.0
      %1850 = vmatpush1.msra.mxu0 0.0
      %1851 = vmatprep.subr.mxu0 0.0
      %1852 = vmatpush1.msra.mxu0 0.0
      %1853 = vmatprep.subr.mxu0 0.0
      %1854 = vmatpush1.msra.mxu0 0.0
      %1855 = vmatprep.subr.mxu0 0.0
      %1856 = vmatpush1.msra.mxu0 0.0
      %1857 = vmatprep.subr.mxu0 0.0
      %1858 = vmatpush1.msra.mxu0 0.0
      %1859 = vmatprep.subr.mxu0 0.0
      %1860 = vmatpush1.msra.mxu0 0.0
      %1861 = vmatprep.subr.mxu0 0.0
      %1862 = vmatpush1.msra.mxu0 0.0
      %1863 = vmatprep.subr.mxu0 0.0
      %1864 = vmatpush1.msra.mxu0 0.0
      %1865 = vmatprep.subr.mxu0 0.0
      %1866 = vmatpush1.msra.mxu0 0.0
      %1867 = vmatprep.subr.mxu0 0.0
      %1868 = vmatpush1.msra.mxu0 0.0
      %1869 = vmatprep.subr.mxu0 0.0
      %1870 = vmatpush1.msra.mxu0 0.0
      %1871 = vmatprep.mubr.f32.mxu0 0.0
      %1872 = vmatmul.mubr.f32.gmra.mrb[0].mxu0 %v1712
      %v1873 = vpop.f32.mrb[0].mxu0
      %v1874 = vadd.f32 0.0, %v1873
      %v1875 = vpop.f32.mrb[0].mxu0
      %1876 = vmatprep.mubr.f32.mxu0 0.0
      %1877 = vmatmul.mubr.f32.gmra.mrb[0].mxu0 %v1715
      %v1878 = vpop.f32.mrb[0].mxu0
      %v1879 = vadd.f32 0.0, %v1878
      %v1880 = vpop.f32.mrb[0].mxu0
      %1881 = vmatprep.mubr.f32.mxu0 0.0
      %1882 = vmatmul.mubr.f32.gmra.mrb[0].mxu0 %v1718
      %v1883 = vpop.f32.mrb[0].mxu0
      %v1884 = vadd.f32 0.0, %v1883
      %v1885 = vpop.f32.mrb[0].mxu0
      %1886 = vmatprep.mubr.f32.mxu0 0.0
      %1887 = vmatmul.mubr.f32.gmra.mrb[0].mxu0 %v1721
      %v1888 = vpop.f32.mrb[0].mxu0
      %v1889 = vadd.f32 0.0, %v1888
      %v1890 = vpop.f32.mrb[0].mxu0
      %1891 = vmatprep.mubr.f32.mxu0 0.0
      %1892 = vmatmul.mubr.f32.gmra.mrb[0].mxu0 %v1724
      %v1893 = vpop.f32.mrb[0].mxu0
      %v1894 = vadd.f32 0.0, %v1893
      %v1895 = vpop.f32.mrb[0].mxu0
      %1896 = vmatprep.mubr.f32.mxu0 0.0
      %1897 = vmatmul.mubr.f32.gmra.mrb[0].mxu0 %v1727
      %v1898 = vpop.f32.mrb[0].mxu0
      %v1899 = vadd.f32 0.0, %v1898
      %v1900 = vpop.f32.mrb[0].mxu0
      %1901 = vmatprep.mubr.f32.mxu0 0.0
      %1902 = vmatmul.mubr.f32.gmra.mrb[0].mxu0 %v1730
      %v1903 = vpop.f32.mrb[0].mxu0
      %v1904 = vadd.f32 0.0, %v1903
      %v1905 = vpop.f32.mrb[0].mxu0
      %1906 = vmatprep.mubr.f32.mxu0 0.0
      %1907 = vmatmul.mubr.f32.gmra.mrb[0].mxu0 %v1733
      %v1908 = vpop.f32.mrb[0].mxu0
      %v1909 = vadd.f32 0.0, %v1908
      %v1910 = vpop.f32.mrb[0].mxu0
      %1911 = vmatprep.mubr.f32.mxu0 0.0
      %1912 = vmatmul.mubr.f32.gmra.mrb[0].mxu0 %v1736
      %v1913 = vpop.f32.mrb[0].mxu0
      %v1914 = vadd.f32 0.0, %v1913
      %v1915 = vpop.f32.mrb[0].mxu0
      %1916 = vmatprep.mubr.f32.mxu0 0.0
      %1917 = vmatmul.mubr.f32.gmra.mrb[0].mxu0 %v1739
      %v1918 = vpop.f32.mrb[0].mxu0
      %v1919 = vadd.f32 0.0, %v1918
      %v1920 = vpop.f32.mrb[0].mxu0
      %1921 = vmatprep.mubr.f32.mxu0 0.0
      %1922 = vmatmul.mubr.f32.gmra.mrb[0].mxu0 %v1742
      %v1923 = vpop.f32.mrb[0].mxu0
      %v1924 = vadd.f32 0.0, %v1923
      %v1925 = vpop.f32.mrb[0].mxu0
      %1926 = vmatprep.mubr.f32.mxu0 0.0
      %1927 = vmatmul.mubr.f32.gmra.mrb[0].mxu0 %v1745
      %v1928 = vpop.f32.mrb[0].mxu0
      %v1929 = vadd.f32 0.0, %v1928
      %v1930 = vpop.f32.mrb[0].mxu0
      %1931 = vmatprep.mubr.f32.mxu0 0.0
      %1932 = vmatmul.mubr.f32.gmra.mrb[0].mxu0 %v1748
      %v1933 = vpop.f32.mrb[0].mxu0
      %v1934 = vadd.f32 0.0, %v1933
      %v1935 = vpop.f32.mrb[0].mxu0
      %1936 = vmatprep.mubr.f32.mxu0 0.0
      %1937 = vmatmul.mubr.f32.gmra.mrb[0].mxu0 %v1751
      %v1938 = vpop.f32.mrb[0].mxu0
      %v1939 = vadd.f32 0.0, %v1938
      %v1940 = vpop.f32.mrb[0].mxu0
      %1941 = vmatprep.mubr.f32.mxu0 0.0
      %1942 = vmatmul.mubr.f32.gmra.mrb[0].mxu0 %v1754
      %v1943 = vpop.f32.mrb[0].mxu0
      %v1944 = vadd.f32 0.0, %v1943
      %v1945 = vpop.f32.mrb[0].mxu0
      %1946 = vmatprep.mubr.f32.mxu0 0.0
      %1947 = vmatmul.mubr.f32.gmra.mrb[0].mxu0 %v1757
      %v1948 = vpop.f32.mrb[0].mxu0
      %v1949 = vadd.f32 0.0, %v1948
      %v1950 = vpop.f32.mrb[0].mxu0
      %1951 = vmatprep.mubr.f32.mxu0 0.0
      %1952 = vmatmul.mubr.f32.gmra.mrb[0].mxu0 %v1760
      %v1953 = vpop.f32.mrb[0].mxu0
      %v1954 = vadd.f32 0.0, %v1953
      %v1955 = vpop.f32.mrb[0].mxu0
      %1956 = vmatprep.mubr.f32.mxu0 0.0
      %1957 = vmatmul.mubr.f32.gmra.mrb[0].mxu0 %v1763
      %v1958 = vpop.f32.mrb[0].mxu0
      %v1959 = vadd.f32 0.0, %v1958
      %v1960 = vpop.f32.mrb[0].mxu0
      %1961 = vmatprep.mubr.f32.mxu0 0.0
      %1962 = vmatmul.mubr.f32.gmra.mrb[0].mxu0 %v1766
      %v1963 = vpop.f32.mrb[0].mxu0
      %v1964 = vadd.f32 0.0, %v1963
      %v1965 = vpop.f32.mrb[0].mxu0
      %1966 = vmatprep.mubr.f32.mxu0 0.0
      %1967 = vmatmul.mubr.f32.gmra.mrb[0].mxu0 %v1769
      %v1968 = vpop.f32.mrb[0].mxu0
      %v1969 = vadd.f32 0.0, %v1968
      %v1970 = vpop.f32.mrb[0].mxu0
      %1971 = vmatprep.mubr.f32.mxu0 0.0
      %1972 = vmatmul.mubr.f32.gmra.mrb[0].mxu0 %v1772
      %v1973 = vpop.f32.mrb[0].mxu0
      %v1974 = vadd.f32 0.0, %v1973
      %v1975 = vpop.f32.mrb[0].mxu0
      %1976 = vmatprep.mubr.f32.mxu0 0.0
      %1977 = vmatmul.mubr.f32.gmra.mrb[0].mxu0 %v1775
      %v1978 = vpop.f32.mrb[0].mxu0
      %v1979 = vadd.f32 0.0, %v1978
      %v1980 = vpop.f32.mrb[0].mxu0
      %1981 = vmatprep.mubr.f32.mxu0 0.0
      %1982 = vmatmul.mubr.f32.gmra.mrb[0].mxu0 %v1778
      %v1983 = vpop.f32.mrb[0].mxu0
      %v1984 = vadd.f32 0.0, %v1983
      %v1985 = vpop.f32.mrb[0].mxu0
      %1986 = vmatprep.mubr.f32.mxu0 0.0
      %1987 = vmatmul.mubr.f32.gmra.mrb[0].mxu0 %v1781
      %v1988 = vpop.f32.mrb[0].mxu0
      %v1989 = vadd.f32 0.0, %v1988
      %v1990 = vpop.f32.mrb[0].mxu0
      %1991 = vmatprep.mubr.f32.mxu0 0.0
      %1992 = vmatmul.mubr.f32.gmra.mrb[0].mxu0 %v1784
      %v1993 = vpop.f32.mrb[0].mxu0
      %v1994 = vadd.f32 0.0, %v1993
      %v1995 = vpop.f32.mrb[0].mxu0
      %1996 = vmatprep.mubr.f32.mxu0 0.0
      %1997 = vmatmul.mubr.f32.gmra.mrb[0].mxu0 %v1787
      %v1998 = vpop.f32.mrb[0].mxu0
      %v1999 = vadd.f32 0.0, %v1998
      %v2000 = vpop.f32.mrb[0].mxu0
      %2001 = vmatprep.mubr.f32.mxu0 0.0
      %2002 = vmatmul.mubr.f32.gmra.mrb[0].mxu0 %v1790
      %v2003 = vpop.f32.mrb[0].mxu0
      %v2004 = vadd.f32 0.0, %v2003
      %v2005 = vpop.f32.mrb[0].mxu0
      %2006 = vmatprep.mubr.f32.mxu0 0.0
      %2007 = vmatmul.mubr.f32.gmra.mrb[0].mxu0 %v1793
      %v2008 = vpop.f32.mrb[0].mxu0
      %v2009 = vadd.f32 0.0, %v2008
      %v2010 = vpop.f32.mrb[0].mxu0
      %2011 = vmatprep.mubr.f32.mxu0 0.0
      %2012 = vmatmul.mubr.f32.gmra.mrb[0].mxu0 %v1796
      %v2013 = vpop.f32.mrb[0].mxu0
      %v2014 = vadd.f32 0.0, %v2013
      %v2015 = vpop.f32.mrb[0].mxu0
      %2016 = vmatprep.mubr.f32.mxu0 0.0
      %2017 = vmatmul.mubr.f32.gmra.mrb[0].mxu0 %v1799
      %v2018 = vpop.f32.mrb[0].mxu0
      %v2019 = vadd.f32 0.0, %v2018
      %v2020 = vpop.f32.mrb[0].mxu0
      %2021 = vmatprep.mubr.f32.mxu0 0.0
      %2022 = vmatmul.mubr.f32.gmra.mrb[0].mxu0 %v1802
      %v2023 = vpop.f32.mrb[0].mxu0
      %v2024 = vadd.f32 0.0, %v2023
      %v2025 = vpop.f32.mrb[0].mxu0
      %2026 = vmatprep.mubr.f32.mxu0 0.0
      %2027 = vmatmul.mubr.f32.gmra.mrb[0].mxu0 %v1805
      %v2028 = vpop.f32.mrb[0].mxu0
      %v2029 = vadd.f32 0.0, %v2028
      %v2030 = vpop.f32.mrb[0].mxu0
      %2031 = vdwg.mxu0
      %vm2032 = vcmp.gt.f32.partialorder %v1874, 0.0
      %vm2033 = vcmp.gt.f32.partialorder %v1879, 0.0
      %vm2034 = vcmp.gt.f32.partialorder %v1884, 0.0
      %vm2035 = vcmp.gt.f32.partialorder %v1889, 0.0
      %vm2036 = vcmp.gt.f32.partialorder %v1894, 0.0
      %vm2037 = vcmp.gt.f32.partialorder %v1899, 0.0
      %vm2038 = vcmp.gt.f32.partialorder %v1904, 0.0
      %vm2039 = vcmp.gt.f32.partialorder %v1909, 0.0
      %vm2040 = vcmp.gt.f32.partialorder %v1914, 0.0
      %vm2041 = vcmp.gt.f32.partialorder %v1919, 0.0
      %vm2042 = vcmp.gt.f32.partialorder %v1924, 0.0
      %vm2043 = vcmp.gt.f32.partialorder %v1929, 0.0
      %vm2044 = vcmp.gt.f32.partialorder %v1934, 0.0
      %vm2045 = vcmp.gt.f32.partialorder %v1939, 0.0
      %vm2046 = vcmp.gt.f32.partialorder %v1944, 0.0
      %vm2047 = vcmp.gt.f32.partialorder %v1949, 0.0
      %vm2048 = vcmp.gt.f32.partialorder %v1954, 0.0
      %vm2049 = vcmp.gt.f32.partialorder %v1959, 0.0
      %vm2050 = vcmp.gt.f32.partialorder %v1964, 0.0
      %vm2051 = vcmp.gt.f32.partialorder %v1969, 0.0
      %vm2052 = vcmp.gt.f32.partialorder %v1974, 0.0
      %vm2053 = vcmp.gt.f32.partialorder %v1979, 0.0
      %vm2054 = vcmp.gt.f32.partialorder %v1984, 0.0
      %vm2055 = vcmp.gt.f32.partialorder %v1989, 0.0
      %vm2056 = vcmp.gt.f32.partialorder %v1994, 0.0
      %vm2057 = vcmp.gt.f32.partialorder %v1999, 0.0
      %vm2058 = vcmp.gt.f32.partialorder %v2004, 0.0
      %vm2059 = vcmp.gt.f32.partialorder %v2009, 0.0
      %vm2060 = vcmp.gt.f32.partialorder %v2014, 0.0
      %vm2061 = vcmp.gt.f32.partialorder %v2019, 0.0
      %vm2062 = vcmp.gt.f32.partialorder %v2024, 0.0
      %vm2063 = vcmp.gt.f32.partialorder %v2029, 0.0
      %v2064 = vmul.f32 %v1874, 1.442695
      %v2065 = vpow.pop %v2064
      %v2066 = vmul.f32 %v1879, 1.442695
      %v2067 = vpow.pop %v2066
      %v2068 = vmul.f32 %v1884, 1.442695
      %v2069 = vpow.pop %v2068
      %v2070 = vmul.f32 %v1889, 1.442695
      %v2071 = vpow.pop %v2070
      %v2072 = vmul.f32 %v1894, 1.442695
      %v2073 = vpow.pop %v2072
      %v2074 = vmul.f32 %v1899, 1.442695
      %v2075 = vpow.pop %v2074
      %v2076 = vmul.f32 %v1904, 1.442695
      %v2077 = vpow.pop %v2076
      %v2078 = vmul.f32 %v1909, 1.442695
      %v2079 = vpow.pop %v2078
      %v2080 = vmul.f32 %v1914, 1.442695
      %v2081 = vpow.pop %v2080
      %v2082 = vmul.f32 %v1919, 1.442695
      %v2083 = vpow.pop %v2082
      %v2084 = vmul.f32 %v1924, 1.442695
      %v2085 = vpow.pop %v2084
      %v2086 = vmul.f32 %v1929, 1.442695
      %v2087 = vpow.pop %v2086
      %v2088 = vmul.f32 %v1934, 1.442695
      %v2089 = vpow.pop %v2088
      %v2090 = vmul.f32 %v1939, 1.442695
      %v2091 = vpow.pop %v2090
      %v2092 = vmul.f32 %v1944, 1.442695
      %v2093 = vpow.pop %v2092
      %v2094 = vmul.f32 %v1949, 1.442695
      %v2095 = vpow.pop %v2094
      %v2096 = vmul.f32 %v1954, 1.442695
      %v2097 = vpow.pop %v2096
      %v2098 = vmul.f32 %v1959, 1.442695
      %v2099 = vpow.pop %v2098
      %v2100 = vmul.f32 %v1964, 1.442695
      %v2101 = vpow.pop %v2100
      %v2102 = vmul.f32 %v1969, 1.442695
      %v2103 = vpow.pop %v2102
      %v2104 = vmul.f32 %v1974, 1.442695
      %v2105 = vpow.pop %v2104
      %v2106 = vmul.f32 %v1979, 1.442695
      %v2107 = vpow.pop %v2106
      %v2108 = vmul.f32 %v1984, 1.442695
      %v2109 = vpow.pop %v2108
      %v2110 = vmul.f32 %v1989, 1.442695
      %v2111 = vpow.pop %v2110
      %v2112 = vmul.f32 %v1994, 1.442695
      %v2113 = vpow.pop %v2112
      %v2114 = vmul.f32 %v1999, 1.442695
      %v2115 = vpow.pop %v2114
      %v2116 = vmul.f32 %v2004, 1.442695
      %v2117 = vpow.pop %v2116
      %v2118 = vmul.f32 %v2009, 1.442695
      %v2119 = vpow.pop %v2118
      %v2120 = vmul.f32 %v2014, 1.442695
      %v2121 = vpow.pop %v2120
      %v2122 = vmul.f32 %v2019, 1.442695
      %v2123 = vpow.pop %v2122
      %v2124 = vmul.f32 %v2024, 1.442695
      %v2125 = vpow.pop %v2124
      %v2126 = vmul.f32 %v2029, 1.442695
      %v2127 = vpow.pop %v2126
      %v2128 = vsub.f32 %v2065, 1.0
      %v2129 = vsub.f32 %v2067, 1.0
      %v2130 = vsub.f32 %v2069, 1.0
      %v2131 = vsub.f32 %v2071, 1.0
      %v2132 = vsub.f32 %v2073, 1.0
      %v2133 = vsub.f32 %v2075, 1.0
      %v2134 = vsub.f32 %v2077, 1.0
      %v2135 = vsub.f32 %v2079, 1.0
      %v2136 = vsub.f32 %v2081, 1.0
      %v2137 = vsub.f32 %v2083, 1.0
      %v2138 = vsub.f32 %v2085, 1.0
      %v2139 = vsub.f32 %v2087, 1.0
      %v2140 = vsub.f32 %v2089, 1.0
      %v2141 = vsub.f32 %v2091, 1.0
      %v2142 = vsub.f32 %v2093, 1.0
      %v2143 = vsub.f32 %v2095, 1.0
      %v2144 = vsub.f32 %v2097, 1.0
      %v2145 = vsub.f32 %v2099, 1.0
      %v2146 = vsub.f32 %v2101, 1.0
      %v2147 = vsub.f32 %v2103, 1.0
      %v2148 = vsub.f32 %v2105, 1.0
      %v2149 = vsub.f32 %v2107, 1.0
      %v2150 = vsub.f32 %v2109, 1.0
      %v2151 = vsub.f32 %v2111, 1.0
      %v2152 = vsub.f32 %v2113, 1.0
      %v2153 = vsub.f32 %v2115, 1.0
      %v2154 = vsub.f32 %v2117, 1.0
      %v2155 = vsub.f32 %v2119, 1.0
      %v2156 = vsub.f32 %v2121, 1.0
      %v2157 = vsub.f32 %v2123, 1.0
      %v2158 = vsub.f32 %v2125, 1.0
      %v2159 = vsub.f32 %v2127, 1.0
      %v2160 = vsel %vm2032, %v1874, %v2128
      %v2161 = vsel %vm2033, %v1879, %v2129
      %v2162 = vsel %vm2034, %v1884, %v2130
      %v2163 = vsel %vm2035, %v1889, %v2131
      %v2164 = vsel %vm2036, %v1894, %v2132
      %v2165 = vsel %vm2037, %v1899, %v2133
      %v2166 = vsel %vm2038, %v1904, %v2134
      %v2167 = vsel %vm2039, %v1909, %v2135
      %v2168 = vsel %vm2040, %v1914, %v2136
      %v2169 = vsel %vm2041, %v1919, %v2137
      %v2170 = vsel %vm2042, %v1924, %v2138
      %v2171 = vsel %vm2043, %v1929, %v2139
      %v2172 = vsel %vm2044, %v1934, %v2140
      %v2173 = vsel %vm2045, %v1939, %v2141
      %v2174 = vsel %vm2046, %v1944, %v2142
      %v2175 = vsel %vm2047, %v1949, %v2143
      %v2176 = vsel %vm2048, %v1954, %v2144
      %v2177 = vsel %vm2049, %v1959, %v2145
      %v2178 = vsel %vm2050, %v1964, %v2146
      %v2179 = vsel %vm2051, %v1969, %v2147
      %v2180 = vsel %vm2052, %v1974, %v2148
      %v2181 = vsel %vm2053, %v1979, %v2149
      %v2182 = vsel %vm2054, %v1984, %v2150
      %v2183 = vsel %vm2055, %v1989, %v2151
      %v2184 = vsel %vm2056, %v1994, %v2152
      %v2185 = vsel %vm2057, %v1999, %v2153
      %v2186 = vsel %vm2058, %v2004, %v2154
      %v2187 = vsel %vm2059, %v2009, %v2155
      %v2188 = vsel %vm2060, %v2014, %v2156
      %v2189 = vsel %vm2061, %v2019, %v2157
      %v2190 = vsel %vm2062, %v2024, %v2158
      %v2191 = vsel %vm2063, %v2029, %v2159
      %v2192 = vld [vmem:[%s5] sm:$0x7]
      %v2193 = vld [vmem:[%s5 + $0x4] sm:$0x7]
      %v2194 = vld [vmem:[%s5 + $0x8] sm:$0x7]
      %v2195 = vrot.slane %v2160, 7
      %v2196 = vrot.slane %v2162, 7
      %v2197 = vrot.slane %v2164, 7
      %v2198 = vrot.slane %v2166, 7
      %v2199 = vrot.slane %v2168, 7
      %v2200 = vrot.slane %v2170, 7
      %v2201 = vrot.slane %v2172, 7
      %v2202 = vrot.slane %v2174, 7
      %v2203 = vrot.slane %v2176, 7
      %v2204 = vrot.slane %v2178, 7
      %v2205 = vrot.slane %v2180, 7
      %v2206 = vrot.slane %v2182, 7
      %v2207 = vrot.slane %v2184, 7
      %v2208 = vrot.slane %v2186, 7
      %v2209 = vrot.slane %v2188, 7
      %v2210 = vrot.slane %v2190, 7
      %v2211 = vrot.slane %v2161, 7
      %v2212 = vrot.slane %v2163, 7
      %v2213 = vrot.slane %v2165, 7
      %v2214 = vrot.slane %v2167, 7
      %v2215 = vrot.slane %v2169, 7
      %v2216 = vrot.slane %v2171, 7
      %v2217 = vrot.slane %v2173, 7
      %v2218 = vrot.slane %v2175, 7
      %v2219 = vrot.slane %v2177, 7
      %v2220 = vrot.slane %v2179, 7
      %v2221 = vrot.slane %v2181, 7
      %v2222 = vrot.slane %v2183, 7
      %v2223 = vrot.slane %v2185, 7
      %v2224 = vrot.slane %v2187, 7
      %v2225 = vrot.slane %v2189, 7
      %v2226 = vrot.slane %v2191, 7
      %v2227 = vsel %vm827, %v2195, %v2211
      %v2228 = vsel %vm827, %v2196, %v2212
      %v2229 = vsel %vm827, %v2197, %v2213
      %v2230 = vsel %vm827, %v2198, %v2214
      %v2231 = vsel %vm827, %v2199, %v2215
      %v2232 = vsel %vm827, %v2200, %v2216
      %v2233 = vsel %vm827, %v2201, %v2217
      %v2234 = vsel %vm827, %v2202, %v2218
      %v2235 = vsel %vm827, %v2203, %v2219
      %v2236 = vsel %vm827, %v2204, %v2220
      %v2237 = vsel %vm827, %v2205, %v2221
      %v2238 = vsel %vm827, %v2206, %v2222
      %v2239 = vsel %vm827, %v2207, %v2223
      %v2240 = vsel %vm827, %v2208, %v2224
      %v2241 = vsel %vm827, %v2209, %v2225
      %v2242 = vsel %vm827, %v2210, %v2226
      %v2243 = vsel %vm827, %v2211, %v2195
      %v2244 = vsel %vm827, %v2212, %v2196
      %v2245 = vsel %vm827, %v2213, %v2197
      %v2246 = vsel %vm827, %v2214, %v2198
      %v2247 = vsel %vm827, %v2215, %v2199
      %v2248 = vsel %vm827, %v2216, %v2200
      %v2249 = vsel %vm827, %v2217, %v2201
      %v2250 = vsel %vm827, %v2218, %v2202
      %v2251 = vsel %vm827, %v2219, %v2203
      %v2252 = vsel %vm827, %v2220, %v2204
      %v2253 = vsel %vm827, %v2221, %v2205
      %v2254 = vsel %vm827, %v2222, %v2206
      %v2255 = vsel %vm827, %v2223, %v2207
      %v2256 = vsel %vm827, %v2224, %v2208
      %v2257 = vsel %vm827, %v2225, %v2209
      %v2258 = vsel %vm827, %v2226, %v2210
      %v2259 = vsel %vm392, %v2243, 0.0
      %v2260 = vsel %vm393, %v2227, 0.0
      %v2261 = vsel %vm392, %v2244, 0.0
      %v2262 = vsel %vm393, %v2228, 0.0
      %v2263 = vsel %vm392, %v2245, 0.0
      %v2264 = vsel %vm393, %v2229, 0.0
      %v2265 = vsel %vm392, %v2246, 0.0
      %v2266 = vsel %vm393, %v2230, 0.0
      %v2267 = vsel %vm392, %v2247, 0.0
      %v2268 = vsel %vm393, %v2231, 0.0
      %v2269 = vsel %vm392, %v2248, 0.0
      %v2270 = vsel %vm393, %v2232, 0.0
      %v2271 = vsel %vm392, %v2249, 0.0
      %v2272 = vsel %vm393, %v2233, 0.0
      %v2273 = vsel %vm392, %v2250, 0.0
      %v2274 = vsel %vm393, %v2234, 0.0
      %v2275 = vsel %vm392, %v2251, 0.0
      %v2276 = vsel %vm393, %v2235, 0.0
      %v2277 = vsel %vm392, %v2252, 0.0
      %v2278 = vsel %vm393, %v2236, 0.0
      %v2279 = vsel %vm392, %v2253, 0.0
      %v2280 = vsel %vm393, %v2237, 0.0
      %v2281 = vsel %vm392, %v2254, 0.0
      %v2282 = vsel %vm393, %v2238, 0.0
      %v2283 = vsel %vm392, %v2255, 0.0
      %v2284 = vsel %vm393, %v2239, 0.0
      %v2285 = vsel %vm392, %v2256, 0.0
      %v2286 = vsel %vm393, %v2240, 0.0
      %v2287 = vsel %vm392, %v2257, 0.0
      %v2288 = vsel %vm393, %v2241, 0.0
      %v2289 = vsel %vm392, %v2258, 0.0
      %v2290 = vsel %vm393, %v2242, 0.0
      %v2291 = vrot.slane %v2160, 1
      %v2292 = vrot.slane %v2162, 1
      %v2293 = vrot.slane %v2164, 1
      %v2294 = vrot.slane %v2166, 1
      %v2295 = vrot.slane %v2168, 1
      %v2296 = vrot.slane %v2170, 1
      %v2297 = vrot.slane %v2172, 1
      %v2298 = vrot.slane %v2174, 1
      %v2299 = vrot.slane %v2176, 1
      %v2300 = vrot.slane %v2178, 1
      %v2301 = vrot.slane %v2180, 1
      %v2302 = vrot.slane %v2182, 1
      %v2303 = vrot.slane %v2184, 1
      %v2304 = vrot.slane %v2186, 1
      %v2305 = vrot.slane %v2188, 1
      %v2306 = vrot.slane %v2190, 1
      %v2307 = vrot.slane %v2161, 1
      %v2308 = vrot.slane %v2163, 1
      %v2309 = vrot.slane %v2165, 1
      %v2310 = vrot.slane %v2167, 1
      %v2311 = vrot.slane %v2169, 1
      %v2312 = vrot.slane %v2171, 1
      %v2313 = vrot.slane %v2173, 1
      %v2314 = vrot.slane %v2175, 1
      %v2315 = vrot.slane %v2177, 1
      %v2316 = vrot.slane %v2179, 1
      %v2317 = vrot.slane %v2181, 1
      %v2318 = vrot.slane %v2183, 1
      %v2319 = vrot.slane %v2185, 1
      %v2320 = vrot.slane %v2187, 1
      %v2321 = vrot.slane %v2189, 1
      %v2322 = vrot.slane %v2191, 1
      %v2323 = vsel %vm924, %v2291, %v2307
      %v2324 = vsel %vm924, %v2292, %v2308
      %v2325 = vsel %vm924, %v2293, %v2309
      %v2326 = vsel %vm924, %v2294, %v2310
      %v2327 = vsel %vm924, %v2295, %v2311
      %v2328 = vsel %vm924, %v2296, %v2312
      %v2329 = vsel %vm924, %v2297, %v2313
      %v2330 = vsel %vm924, %v2298, %v2314
      %v2331 = vsel %vm924, %v2299, %v2315
      %v2332 = vsel %vm924, %v2300, %v2316
      %v2333 = vsel %vm924, %v2301, %v2317
      %v2334 = vsel %vm924, %v2302, %v2318
      %v2335 = vsel %vm924, %v2303, %v2319
      %v2336 = vsel %vm924, %v2304, %v2320
      %v2337 = vsel %vm924, %v2305, %v2321
      %v2338 = vsel %vm924, %v2306, %v2322
      %v2339 = vsel %vm924, %v2307, %v2291
      %v2340 = vsel %vm924, %v2308, %v2292
      %v2341 = vsel %vm924, %v2309, %v2293
      %v2342 = vsel %vm924, %v2310, %v2294
      %v2343 = vsel %vm924, %v2311, %v2295
      %v2344 = vsel %vm924, %v2312, %v2296
      %v2345 = vsel %vm924, %v2313, %v2297
      %v2346 = vsel %vm924, %v2314, %v2298
      %v2347 = vsel %vm924, %v2315, %v2299
      %v2348 = vsel %vm924, %v2316, %v2300
      %v2349 = vsel %vm924, %v2317, %v2301
      %v2350 = vsel %vm924, %v2318, %v2302
      %v2351 = vsel %vm924, %v2319, %v2303
      %v2352 = vsel %vm924, %v2320, %v2304
      %v2353 = vsel %vm924, %v2321, %v2305
      %v2354 = vsel %vm924, %v2322, %v2306
      %v2355 = vsel %vm390, %v2323, 0.0
      %v2356 = vsel %vm391, %v2339, 0.0
      %v2357 = vsel %vm390, %v2324, 0.0
      %v2358 = vsel %vm391, %v2340, 0.0
      %v2359 = vsel %vm390, %v2325, 0.0
      %v2360 = vsel %vm391, %v2341, 0.0
      %v2361 = vsel %vm390, %v2326, 0.0
      %v2362 = vsel %vm391, %v2342, 0.0
      %v2363 = vsel %vm390, %v2327, 0.0
      %v2364 = vsel %vm391, %v2343, 0.0
      %v2365 = vsel %vm390, %v2328, 0.0
      %v2366 = vsel %vm391, %v2344, 0.0
      %v2367 = vsel %vm390, %v2329, 0.0
      %v2368 = vsel %vm391, %v2345, 0.0
      %v2369 = vsel %vm390, %v2330, 0.0
      %v2370 = vsel %vm391, %v2346, 0.0
      %v2371 = vsel %vm390, %v2331, 0.0
      %v2372 = vsel %vm391, %v2347, 0.0
      %v2373 = vsel %vm390, %v2332, 0.0
      %v2374 = vsel %vm391, %v2348, 0.0
      %v2375 = vsel %vm390, %v2333, 0.0
      %v2376 = vsel %vm391, %v2349, 0.0
      %v2377 = vsel %vm390, %v2334, 0.0
      %v2378 = vsel %vm391, %v2350, 0.0
      %v2379 = vsel %vm390, %v2335, 0.0
      %v2380 = vsel %vm391, %v2351, 0.0
      %v2381 = vsel %vm390, %v2336, 0.0
      %v2382 = vsel %vm391, %v2352, 0.0
      %v2383 = vsel %vm390, %v2337, 0.0
      %v2384 = vsel %vm391, %v2353, 0.0
      %v2385 = vsel %vm390, %v2338, 0.0
      %v2386 = vsel %vm391, %v2354, 0.0
      %v2387 = vlaneseq
      %v2388 = vshrl.u32 %v2387, 7
      %v2389 = vsub.s32 0, %v2388
      %v2390 = vrot.slane %v2192, %v2389
      %v2391 = vmul.f32 %v2259, %v2390
      %v2392 = vmul.f32 %v2260, %v2390
      %v2393 = vmul.f32 %v2261, %v2390
      %v2394 = vmul.f32 %v2262, %v2390
      %v2395 = vmul.f32 %v2263, %v2390
      %v2396 = vmul.f32 %v2264, %v2390
      %v2397 = vmul.f32 %v2265, %v2390
      %v2398 = vmul.f32 %v2266, %v2390
      %v2399 = vmul.f32 %v2267, %v2390
      %v2400 = vmul.f32 %v2268, %v2390
      %v2401 = vmul.f32 %v2269, %v2390
      %v2402 = vmul.f32 %v2270, %v2390
      %v2403 = vmul.f32 %v2271, %v2390
      %v2404 = vmul.f32 %v2272, %v2390
      %v2405 = vmul.f32 %v2273, %v2390
      %v2406 = vmul.f32 %v2274, %v2390
      %v2407 = vmul.f32 %v2275, %v2390
      %v2408 = vmul.f32 %v2276, %v2390
      %v2409 = vmul.f32 %v2277, %v2390
      %v2410 = vmul.f32 %v2278, %v2390
      %v2411 = vmul.f32 %v2279, %v2390
      %v2412 = vmul.f32 %v2280, %v2390
      %v2413 = vmul.f32 %v2281, %v2390
      %v2414 = vmul.f32 %v2282, %v2390
      %v2415 = vmul.f32 %v2283, %v2390
      %v2416 = vmul.f32 %v2284, %v2390
      %v2417 = vmul.f32 %v2285, %v2390
      %v2418 = vmul.f32 %v2286, %v2390
      %v2419 = vmul.f32 %v2287, %v2390
      %v2420 = vmul.f32 %v2288, %v2390
      %v2421 = vlaneseq
      %v2422 = vshrl.u32 %v2421, 7
      %v2423 = vsub.s32 1, %v2422
      %v2424 = vrot.slane %v2192, %v2423
      %v2425 = vmul.f32 %v2160, %v2424
      %v2426 = vmul.f32 %v2161, %v2424
      %v2427 = vmul.f32 %v2162, %v2424
      %v2428 = vmul.f32 %v2163, %v2424
      %v2429 = vmul.f32 %v2164, %v2424
      %v2430 = vmul.f32 %v2165, %v2424
      %v2431 = vmul.f32 %v2166, %v2424
      %v2432 = vmul.f32 %v2167, %v2424
      %v2433 = vmul.f32 %v2168, %v2424
      %v2434 = vmul.f32 %v2169, %v2424
      %v2435 = vmul.f32 %v2170, %v2424
      %v2436 = vmul.f32 %v2171, %v2424
      %v2437 = vmul.f32 %v2172, %v2424
      %v2438 = vmul.f32 %v2173, %v2424
      %v2439 = vmul.f32 %v2174, %v2424
      %v2440 = vmul.f32 %v2175, %v2424
      %v2441 = vmul.f32 %v2176, %v2424
      %v2442 = vmul.f32 %v2177, %v2424
      %v2443 = vmul.f32 %v2178, %v2424
      %v2444 = vmul.f32 %v2179, %v2424
      %v2445 = vmul.f32 %v2180, %v2424
      %v2446 = vmul.f32 %v2181, %v2424
      %v2447 = vmul.f32 %v2182, %v2424
      %v2448 = vmul.f32 %v2183, %v2424
      %v2449 = vmul.f32 %v2184, %v2424
      %v2450 = vmul.f32 %v2185, %v2424
      %v2451 = vmul.f32 %v2186, %v2424
      %v2452 = vmul.f32 %v2187, %v2424
      %v2453 = vmul.f32 %v2188, %v2424
      %v2454 = vmul.f32 %v2189, %v2424
      %v2455 = vadd.f32 %v2391, %v2425
      %v2456 = vadd.f32 %v2392, %v2426
      %v2457 = vadd.f32 %v2393, %v2427
      %v2458 = vadd.f32 %v2394, %v2428
      %v2459 = vadd.f32 %v2395, %v2429
      %v2460 = vadd.f32 %v2396, %v2430
      %v2461 = vadd.f32 %v2397, %v2431
      %v2462 = vadd.f32 %v2398, %v2432
      %v2463 = vadd.f32 %v2399, %v2433
      %v2464 = vadd.f32 %v2400, %v2434
      %v2465 = vadd.f32 %v2401, %v2435
      %v2466 = vadd.f32 %v2402, %v2436
      %v2467 = vadd.f32 %v2403, %v2437
      %v2468 = vadd.f32 %v2404, %v2438
      %v2469 = vadd.f32 %v2405, %v2439
      %v2470 = vadd.f32 %v2406, %v2440
      %v2471 = vadd.f32 %v2407, %v2441
      %v2472 = vadd.f32 %v2408, %v2442
      %v2473 = vadd.f32 %v2409, %v2443
      %v2474 = vadd.f32 %v2410, %v2444
      %v2475 = vadd.f32 %v2411, %v2445
      %v2476 = vadd.f32 %v2412, %v2446
      %v2477 = vadd.f32 %v2413, %v2447
      %v2478 = vadd.f32 %v2414, %v2448
      %v2479 = vadd.f32 %v2415, %v2449
      %v2480 = vadd.f32 %v2416, %v2450
      %v2481 = vadd.f32 %v2417, %v2451
      %v2482 = vadd.f32 %v2418, %v2452
      %v2483 = vadd.f32 %v2419, %v2453
      %v2484 = vadd.f32 %v2420, %v2454
      %v2485 = vlaneseq
      %v2486 = vshrl.u32 %v2485, 7
      %v2487 = vsub.s32 2, %v2486
      %v2488 = vrot.slane %v2192, %v2487
      %v2489 = vmul.f32 %v2355, %v2488
      %v2490 = vmul.f32 %v2356, %v2488
      %v2491 = vmul.f32 %v2357, %v2488
      %v2492 = vmul.f32 %v2358, %v2488
      %v2493 = vmul.f32 %v2359, %v2488
      %v2494 = vmul.f32 %v2360, %v2488
      %v2495 = vmul.f32 %v2361, %v2488
      %v2496 = vmul.f32 %v2362, %v2488
      %v2497 = vmul.f32 %v2363, %v2488
      %v2498 = vmul.f32 %v2364, %v2488
      %v2499 = vmul.f32 %v2365, %v2488
      %v2500 = vmul.f32 %v2366, %v2488
      %v2501 = vmul.f32 %v2367, %v2488
      %v2502 = vmul.f32 %v2368, %v2488
      %v2503 = vmul.f32 %v2369, %v2488
      %v2504 = vmul.f32 %v2370, %v2488
      %v2505 = vmul.f32 %v2371, %v2488
      %v2506 = vmul.f32 %v2372, %v2488
      %v2507 = vmul.f32 %v2373, %v2488
      %v2508 = vmul.f32 %v2374, %v2488
      %v2509 = vmul.f32 %v2375, %v2488
      %v2510 = vmul.f32 %v2376, %v2488
      %v2511 = vmul.f32 %v2377, %v2488
      %v2512 = vmul.f32 %v2378, %v2488
      %v2513 = vmul.f32 %v2379, %v2488
      %v2514 = vmul.f32 %v2380, %v2488
      %v2515 = vmul.f32 %v2381, %v2488
      %v2516 = vmul.f32 %v2382, %v2488
      %v2517 = vmul.f32 %v2383, %v2488
      %v2518 = vmul.f32 %v2384, %v2488
      %v2519 = vadd.f32 %v2455, %v2489
      %v2520 = vadd.f32 %v2456, %v2490
      %v2521 = vadd.f32 %v2457, %v2491
      %v2522 = vadd.f32 %v2458, %v2492
      %v2523 = vadd.f32 %v2459, %v2493
      %v2524 = vadd.f32 %v2460, %v2494
      %v2525 = vadd.f32 %v2461, %v2495
      %v2526 = vadd.f32 %v2462, %v2496
      %v2527 = vadd.f32 %v2463, %v2497
      %v2528 = vadd.f32 %v2464, %v2498
      %v2529 = vadd.f32 %v2465, %v2499
      %v2530 = vadd.f32 %v2466, %v2500
      %v2531 = vadd.f32 %v2467, %v2501
      %v2532 = vadd.f32 %v2468, %v2502
      %v2533 = vadd.f32 %v2469, %v2503
      %v2534 = vadd.f32 %v2470, %v2504
      %v2535 = vadd.f32 %v2471, %v2505
      %v2536 = vadd.f32 %v2472, %v2506
      %v2537 = vadd.f32 %v2473, %v2507
      %v2538 = vadd.f32 %v2474, %v2508
      %v2539 = vadd.f32 %v2475, %v2509
      %v2540 = vadd.f32 %v2476, %v2510
      %v2541 = vadd.f32 %v2477, %v2511
      %v2542 = vadd.f32 %v2478, %v2512
      %v2543 = vadd.f32 %v2479, %v2513
      %v2544 = vadd.f32 %v2480, %v2514
      %v2545 = vadd.f32 %v2481, %v2515
      %v2546 = vadd.f32 %v2482, %v2516
      %v2547 = vadd.f32 %v2483, %v2517
      %v2548 = vadd.f32 %v2484, %v2518
      %v2549 = vlaneseq
      %v2550 = vshrl.u32 %v2549, 7
      %v2551 = vsub.s32 0, %v2550
      %v2552 = vrot.slane %v2193, %v2551
      %v2553 = vmul.f32 %v2259, %v2552
      %v2554 = vmul.f32 %v2260, %v2552
      %v2555 = vmul.f32 %v2261, %v2552
      %v2556 = vmul.f32 %v2262, %v2552
      %v2557 = vmul.f32 %v2263, %v2552
      %v2558 = vmul.f32 %v2264, %v2552
      %v2559 = vmul.f32 %v2265, %v2552
      %v2560 = vmul.f32 %v2266, %v2552
      %v2561 = vmul.f32 %v2267, %v2552
      %v2562 = vmul.f32 %v2268, %v2552
      %v2563 = vmul.f32 %v2269, %v2552
      %v2564 = vmul.f32 %v2270, %v2552
      %v2565 = vmul.f32 %v2271, %v2552
      %v2566 = vmul.f32 %v2272, %v2552
      %v2567 = vmul.f32 %v2273, %v2552
      %v2568 = vmul.f32 %v2274, %v2552
      %v2569 = vmul.f32 %v2275, %v2552
      %v2570 = vmul.f32 %v2276, %v2552
      %v2571 = vmul.f32 %v2277, %v2552
      %v2572 = vmul.f32 %v2278, %v2552
      %v2573 = vmul.f32 %v2279, %v2552
      %v2574 = vmul.f32 %v2280, %v2552
      %v2575 = vmul.f32 %v2281, %v2552
      %v2576 = vmul.f32 %v2282, %v2552
      %v2577 = vmul.f32 %v2283, %v2552
      %v2578 = vmul.f32 %v2284, %v2552
      %v2579 = vmul.f32 %v2285, %v2552
      %v2580 = vmul.f32 %v2286, %v2552
      %v2581 = vmul.f32 %v2287, %v2552
      %v2582 = vmul.f32 %v2288, %v2552
      %v2583 = vmul.f32 %v2289, %v2552
      %v2584 = vmul.f32 %v2290, %v2552
      %v2585 = vlaneseq
      %v2586 = vshrl.u32 %v2585, 7
      %v2587 = vsub.s32 1, %v2586
      %v2588 = vrot.slane %v2193, %v2587
      %v2589 = vmul.f32 %v2160, %v2588
      %v2590 = vmul.f32 %v2161, %v2588
      %v2591 = vmul.f32 %v2162, %v2588
      %v2592 = vmul.f32 %v2163, %v2588
      %v2593 = vmul.f32 %v2164, %v2588
      %v2594 = vmul.f32 %v2165, %v2588
      %v2595 = vmul.f32 %v2166, %v2588
      %v2596 = vmul.f32 %v2167, %v2588
      %v2597 = vmul.f32 %v2168, %v2588
      %v2598 = vmul.f32 %v2169, %v2588
      %v2599 = vmul.f32 %v2170, %v2588
      %v2600 = vmul.f32 %v2171, %v2588
      %v2601 = vmul.f32 %v2172, %v2588
      %v2602 = vmul.f32 %v2173, %v2588
      %v2603 = vmul.f32 %v2174, %v2588
      %v2604 = vmul.f32 %v2175, %v2588
      %v2605 = vmul.f32 %v2176, %v2588
      %v2606 = vmul.f32 %v2177, %v2588
      %v2607 = vmul.f32 %v2178, %v2588
      %v2608 = vmul.f32 %v2179, %v2588
      %v2609 = vmul.f32 %v2180, %v2588
      %v2610 = vmul.f32 %v2181, %v2588
      %v2611 = vmul.f32 %v2182, %v2588
      %v2612 = vmul.f32 %v2183, %v2588
      %v2613 = vmul.f32 %v2184, %v2588
      %v2614 = vmul.f32 %v2185, %v2588
      %v2615 = vmul.f32 %v2186, %v2588
      %v2616 = vmul.f32 %v2187, %v2588
      %v2617 = vmul.f32 %v2188, %v2588
      %v2618 = vmul.f32 %v2189, %v2588
      %v2619 = vmul.f32 %v2190, %v2588
      %v2620 = vmul.f32 %v2191, %v2588
      %v2621 = vadd.f32 %v2553, %v2589
      %v2622 = vadd.f32 %v2554, %v2590
      %v2623 = vadd.f32 %v2555, %v2591
      %v2624 = vadd.f32 %v2556, %v2592
      %v2625 = vadd.f32 %v2557, %v2593
      %v2626 = vadd.f32 %v2558, %v2594
      %v2627 = vadd.f32 %v2559, %v2595
      %v2628 = vadd.f32 %v2560, %v2596
      %v2629 = vadd.f32 %v2561, %v2597
      %v2630 = vadd.f32 %v2562, %v2598
      %v2631 = vadd.f32 %v2563, %v2599
      %v2632 = vadd.f32 %v2564, %v2600
      %v2633 = vadd.f32 %v2565, %v2601
      %v2634 = vadd.f32 %v2566, %v2602
      %v2635 = vadd.f32 %v2567, %v2603
      %v2636 = vadd.f32 %v2568, %v2604
      %v2637 = vadd.f32 %v2569, %v2605
      %v2638 = vadd.f32 %v2570, %v2606
      %v2639 = vadd.f32 %v2571, %v2607
      %v2640 = vadd.f32 %v2572, %v2608
      %v2641 = vadd.f32 %v2573, %v2609
      %v2642 = vadd.f32 %v2574, %v2610
      %v2643 = vadd.f32 %v2575, %v2611
      %v2644 = vadd.f32 %v2576, %v2612
      %v2645 = vadd.f32 %v2577, %v2613
      %v2646 = vadd.f32 %v2578, %v2614
      %v2647 = vadd.f32 %v2579, %v2615
      %v2648 = vadd.f32 %v2580, %v2616
      %v2649 = vadd.f32 %v2581, %v2617
      %v2650 = vadd.f32 %v2582, %v2618
      %v2651 = vadd.f32 %v2583, %v2619
      %v2652 = vadd.f32 %v2584, %v2620
      %v2653 = vlaneseq
      %v2654 = vshrl.u32 %v2653, 7
      %v2655 = vsub.s32 2, %v2654
      %v2656 = vrot.slane %v2193, %v2655
      %v2657 = vmul.f32 %v2355, %v2656
      %v2658 = vmul.f32 %v2356, %v2656
      %v2659 = vmul.f32 %v2357, %v2656
      %v2660 = vmul.f32 %v2358, %v2656
      %v2661 = vmul.f32 %v2359, %v2656
      %v2662 = vmul.f32 %v2360, %v2656
      %v2663 = vmul.f32 %v2361, %v2656
      %v2664 = vmul.f32 %v2362, %v2656
      %v2665 = vmul.f32 %v2363, %v2656
      %v2666 = vmul.f32 %v2364, %v2656
      %v2667 = vmul.f32 %v2365, %v2656
      %v2668 = vmul.f32 %v2366, %v2656
      %v2669 = vmul.f32 %v2367, %v2656
      %v2670 = vmul.f32 %v2368, %v2656
      %v2671 = vmul.f32 %v2369, %v2656
      %v2672 = vmul.f32 %v2370, %v2656
      %v2673 = vmul.f32 %v2371, %v2656
      %v2674 = vmul.f32 %v2372, %v2656
      %v2675 = vmul.f32 %v2373, %v2656
      %v2676 = vmul.f32 %v2374, %v2656
      %v2677 = vmul.f32 %v2375, %v2656
      %v2678 = vmul.f32 %v2376, %v2656
      %v2679 = vmul.f32 %v2377, %v2656
      %v2680 = vmul.f32 %v2378, %v2656
      %v2681 = vmul.f32 %v2379, %v2656
      %v2682 = vmul.f32 %v2380, %v2656
      %v2683 = vmul.f32 %v2381, %v2656
      %v2684 = vmul.f32 %v2382, %v2656
      %v2685 = vmul.f32 %v2383, %v2656
      %v2686 = vmul.f32 %v2384, %v2656
      %v2687 = vmul.f32 %v2385, %v2656
      %v2688 = vmul.f32 %v2386, %v2656
      %v2689 = vadd.f32 %v2621, %v2657
      %v2690 = vadd.f32 %v2622, %v2658
      %v2691 = vadd.f32 %v2623, %v2659
      %v2692 = vadd.f32 %v2624, %v2660
      %v2693 = vadd.f32 %v2625, %v2661
      %v2694 = vadd.f32 %v2626, %v2662
      %v2695 = vadd.f32 %v2627, %v2663
      %v2696 = vadd.f32 %v2628, %v2664
      %v2697 = vadd.f32 %v2629, %v2665
      %v2698 = vadd.f32 %v2630, %v2666
      %v2699 = vadd.f32 %v2631, %v2667
      %v2700 = vadd.f32 %v2632, %v2668
      %v2701 = vadd.f32 %v2633, %v2669
      %v2702 = vadd.f32 %v2634, %v2670
      %v2703 = vadd.f32 %v2635, %v2671
      %v2704 = vadd.f32 %v2636, %v2672
      %v2705 = vadd.f32 %v2637, %v2673
      %v2706 = vadd.f32 %v2638, %v2674
      %v2707 = vadd.f32 %v2639, %v2675
      %v2708 = vadd.f32 %v2640, %v2676
      %v2709 = vadd.f32 %v2641, %v2677
      %v2710 = vadd.f32 %v2642, %v2678
      %v2711 = vadd.f32 %v2643, %v2679
      %v2712 = vadd.f32 %v2644, %v2680
      %v2713 = vadd.f32 %v2645, %v2681
      %v2714 = vadd.f32 %v2646, %v2682
      %v2715 = vadd.f32 %v2647, %v2683
      %v2716 = vadd.f32 %v2648, %v2684
      %v2717 = vadd.f32 %v2649, %v2685
      %v2718 = vadd.f32 %v2650, %v2686
      %v2719 = vadd.f32 %v2651, %v2687
      %v2720 = vadd.f32 %v2652, %v2688
      %v2721 = vlaneseq
      %v2722 = vshrl.u32 %v2721, 7
      %v2723 = vsub.s32 0, %v2722
      %v2724 = vrot.slane %v2194, %v2723
      %v2725 = vmul.f32 %v2261, %v2724
      %v2726 = vmul.f32 %v2262, %v2724
      %v2727 = vmul.f32 %v2263, %v2724
      %v2728 = vmul.f32 %v2264, %v2724
      %v2729 = vmul.f32 %v2265, %v2724
      %v2730 = vmul.f32 %v2266, %v2724
      %v2731 = vmul.f32 %v2267, %v2724
      %v2732 = vmul.f32 %v2268, %v2724
      %v2733 = vmul.f32 %v2269, %v2724
      %v2734 = vmul.f32 %v2270, %v2724
      %v2735 = vmul.f32 %v2271, %v2724
      %v2736 = vmul.f32 %v2272, %v2724
      %v2737 = vmul.f32 %v2273, %v2724
      %v2738 = vmul.f32 %v2274, %v2724
      %v2739 = vmul.f32 %v2275, %v2724
      %v2740 = vmul.f32 %v2276, %v2724
      %v2741 = vmul.f32 %v2277, %v2724
      %v2742 = vmul.f32 %v2278, %v2724
      %v2743 = vmul.f32 %v2279, %v2724
      %v2744 = vmul.f32 %v2280, %v2724
      %v2745 = vmul.f32 %v2281, %v2724
      %v2746 = vmul.f32 %v2282, %v2724
      %v2747 = vmul.f32 %v2283, %v2724
      %v2748 = vmul.f32 %v2284, %v2724
      %v2749 = vmul.f32 %v2285, %v2724
      %v2750 = vmul.f32 %v2286, %v2724
      %v2751 = vmul.f32 %v2287, %v2724
      %v2752 = vmul.f32 %v2288, %v2724
      %v2753 = vmul.f32 %v2289, %v2724
      %v2754 = vmul.f32 %v2290, %v2724
      %v2755 = vlaneseq
      %v2756 = vshrl.u32 %v2755, 7
      %v2757 = vsub.s32 1, %v2756
      %v2758 = vrot.slane %v2194, %v2757
      %v2759 = vmul.f32 %v2162, %v2758
      %v2760 = vmul.f32 %v2163, %v2758
      %v2761 = vmul.f32 %v2164, %v2758
      %v2762 = vmul.f32 %v2165, %v2758
      %v2763 = vmul.f32 %v2166, %v2758
      %v2764 = vmul.f32 %v2167, %v2758
      %v2765 = vmul.f32 %v2168, %v2758
      %v2766 = vmul.f32 %v2169, %v2758
      %v2767 = vmul.f32 %v2170, %v2758
      %v2768 = vmul.f32 %v2171, %v2758
      %v2769 = vmul.f32 %v2172, %v2758
      %v2770 = vmul.f32 %v2173, %v2758
      %v2771 = vmul.f32 %v2174, %v2758
      %v2772 = vmul.f32 %v2175, %v2758
      %v2773 = vmul.f32 %v2176, %v2758
      %v2774 = vmul.f32 %v2177, %v2758
      %v2775 = vmul.f32 %v2178, %v2758
      %v2776 = vmul.f32 %v2179, %v2758
      %v2777 = vmul.f32 %v2180, %v2758
      %v2778 = vmul.f32 %v2181, %v2758
      %v2779 = vmul.f32 %v2182, %v2758
      %v2780 = vmul.f32 %v2183, %v2758
      %v2781 = vmul.f32 %v2184, %v2758
      %v2782 = vmul.f32 %v2185, %v2758
      %v2783 = vmul.f32 %v2186, %v2758
      %v2784 = vmul.f32 %v2187, %v2758
      %v2785 = vmul.f32 %v2188, %v2758
      %v2786 = vmul.f32 %v2189, %v2758
      %v2787 = vmul.f32 %v2190, %v2758
      %v2788 = vmul.f32 %v2191, %v2758
      %v2789 = vadd.f32 %v2725, %v2759
      %v2790 = vadd.f32 %v2726, %v2760
      %v2791 = vadd.f32 %v2727, %v2761
      %v2792 = vadd.f32 %v2728, %v2762
      %v2793 = vadd.f32 %v2729, %v2763
      %v2794 = vadd.f32 %v2730, %v2764
      %v2795 = vadd.f32 %v2731, %v2765
      %v2796 = vadd.f32 %v2732, %v2766
      %v2797 = vadd.f32 %v2733, %v2767
      %v2798 = vadd.f32 %v2734, %v2768
      %v2799 = vadd.f32 %v2735, %v2769
      %v2800 = vadd.f32 %v2736, %v2770
      %v2801 = vadd.f32 %v2737, %v2771
      %v2802 = vadd.f32 %v2738, %v2772
      %v2803 = vadd.f32 %v2739, %v2773
      %v2804 = vadd.f32 %v2740, %v2774
      %v2805 = vadd.f32 %v2741, %v2775
      %v2806 = vadd.f32 %v2742, %v2776
      %v2807 = vadd.f32 %v2743, %v2777
      %v2808 = vadd.f32 %v2744, %v2778
      %v2809 = vadd.f32 %v2745, %v2779
      %v2810 = vadd.f32 %v2746, %v2780
      %v2811 = vadd.f32 %v2747, %v2781
      %v2812 = vadd.f32 %v2748, %v2782
      %v2813 = vadd.f32 %v2749, %v2783
      %v2814 = vadd.f32 %v2750, %v2784
      %v2815 = vadd.f32 %v2751, %v2785
      %v2816 = vadd.f32 %v2752, %v2786
      %v2817 = vadd.f32 %v2753, %v2787
      %v2818 = vadd.f32 %v2754, %v2788
      %v2819 = vlaneseq
      %v2820 = vshrl.u32 %v2819, 7
      %v2821 = vsub.s32 2, %v2820
      %v2822 = vrot.slane %v2194, %v2821
      %v2823 = vmul.f32 %v2357, %v2822
      %v2824 = vmul.f32 %v2358, %v2822
      %v2825 = vmul.f32 %v2359, %v2822
      %v2826 = vmul.f32 %v2360, %v2822
      %v2827 = vmul.f32 %v2361, %v2822
      %v2828 = vmul.f32 %v2362, %v2822
      %v2829 = vmul.f32 %v2363, %v2822
      %v2830 = vmul.f32 %v2364, %v2822
      %v2831 = vmul.f32 %v2365, %v2822
      %v2832 = vmul.f32 %v2366, %v2822
      %v2833 = vmul.f32 %v2367, %v2822
      %v2834 = vmul.f32 %v2368, %v2822
      %v2835 = vmul.f32 %v2369, %v2822
      %v2836 = vmul.f32 %v2370, %v2822
      %v2837 = vmul.f32 %v2371, %v2822
      %v2838 = vmul.f32 %v2372, %v2822
      %v2839 = vmul.f32 %v2373, %v2822
      %v2840 = vmul.f32 %v2374, %v2822
      %v2841 = vmul.f32 %v2375, %v2822
      %v2842 = vmul.f32 %v2376, %v2822
      %v2843 = vmul.f32 %v2377, %v2822
      %v2844 = vmul.f32 %v2378, %v2822
      %v2845 = vmul.f32 %v2379, %v2822
      %v2846 = vmul.f32 %v2380, %v2822
      %v2847 = vmul.f32 %v2381, %v2822
      %v2848 = vmul.f32 %v2382, %v2822
      %v2849 = vmul.f32 %v2383, %v2822
      %v2850 = vmul.f32 %v2384, %v2822
      %v2851 = vmul.f32 %v2385, %v2822
      %v2852 = vmul.f32 %v2386, %v2822
      %v2853 = vadd.f32 %v2789, %v2823
      %v2854 = vadd.f32 %v2790, %v2824
      %v2855 = vadd.f32 %v2791, %v2825
      %v2856 = vadd.f32 %v2792, %v2826
      %v2857 = vadd.f32 %v2793, %v2827
      %v2858 = vadd.f32 %v2794, %v2828
      %v2859 = vadd.f32 %v2795, %v2829
      %v2860 = vadd.f32 %v2796, %v2830
      %v2861 = vadd.f32 %v2797, %v2831
      %v2862 = vadd.f32 %v2798, %v2832
      %v2863 = vadd.f32 %v2799, %v2833
      %v2864 = vadd.f32 %v2800, %v2834
      %v2865 = vadd.f32 %v2801, %v2835
      %v2866 = vadd.f32 %v2802, %v2836
      %v2867 = vadd.f32 %v2803, %v2837
      %v2868 = vadd.f32 %v2804, %v2838
      %v2869 = vadd.f32 %v2805, %v2839
      %v2870 = vadd.f32 %v2806, %v2840
      %v2871 = vadd.f32 %v2807, %v2841
      %v2872 = vadd.f32 %v2808, %v2842
      %v2873 = vadd.f32 %v2809, %v2843
      %v2874 = vadd.f32 %v2810, %v2844
      %v2875 = vadd.f32 %v2811, %v2845
      %v2876 = vadd.f32 %v2812, %v2846
      %v2877 = vadd.f32 %v2813, %v2847
      %v2878 = vadd.f32 %v2814, %v2848
      %v2879 = vadd.f32 %v2815, %v2849
      %v2880 = vadd.f32 %v2816, %v2850
      %v2881 = vadd.f32 %v2817, %v2851
      %v2882 = vadd.f32 %v2818, %v2852
      %v2883 = vadd.f32 %v2689, 0.0
      %v2884 = vadd.f32 %v2690, 0.0
      %v2885 = vadd.f32 %v2519, %v2691
      %v2886 = vadd.f32 %v2520, %v2692
      %v2887 = vadd.f32 %v2521, %v2693
      %v2888 = vadd.f32 %v2522, %v2694
      %v2889 = vadd.f32 %v2523, %v2695
      %v2890 = vadd.f32 %v2524, %v2696
      %v2891 = vadd.f32 %v2525, %v2697
      %v2892 = vadd.f32 %v2526, %v2698
      %v2893 = vadd.f32 %v2527, %v2699
      %v2894 = vadd.f32 %v2528, %v2700
      %v2895 = vadd.f32 %v2529, %v2701
      %v2896 = vadd.f32 %v2530, %v2702
      %v2897 = vadd.f32 %v2531, %v2703
      %v2898 = vadd.f32 %v2532, %v2704
      %v2899 = vadd.f32 %v2533, %v2705
      %v2900 = vadd.f32 %v2534, %v2706
      %v2901 = vadd.f32 %v2535, %v2707
      %v2902 = vadd.f32 %v2536, %v2708
      %v2903 = vadd.f32 %v2537, %v2709
      %v2904 = vadd.f32 %v2538, %v2710
      %v2905 = vadd.f32 %v2539, %v2711
      %v2906 = vadd.f32 %v2540, %v2712
      %v2907 = vadd.f32 %v2541, %v2713
      %v2908 = vadd.f32 %v2542, %v2714
      %v2909 = vadd.f32 %v2543, %v2715
      %v2910 = vadd.f32 %v2544, %v2716
      %v2911 = vadd.f32 %v2545, %v2717
      %v2912 = vadd.f32 %v2546, %v2718
      %v2913 = vadd.f32 %v2547, %v2719
      %v2914 = vadd.f32 %v2548, %v2720
      %v2915 = vadd.f32 %v2883, %v2853
      %v2916 = vadd.f32 %v2884, %v2854
      %v2917 = vadd.f32 %v2885, %v2855
      %v2918 = vadd.f32 %v2886, %v2856
      %v2919 = vadd.f32 %v2887, %v2857
      %v2920 = vadd.f32 %v2888, %v2858
      %v2921 = vadd.f32 %v2889, %v2859
      %v2922 = vadd.f32 %v2890, %v2860
      %v2923 = vadd.f32 %v2891, %v2861
      %v2924 = vadd.f32 %v2892, %v2862
      %v2925 = vadd.f32 %v2893, %v2863
      %v2926 = vadd.f32 %v2894, %v2864
      %v2927 = vadd.f32 %v2895, %v2865
      %v2928 = vadd.f32 %v2896, %v2866
      %v2929 = vadd.f32 %v2897, %v2867
      %v2930 = vadd.f32 %v2898, %v2868
      %v2931 = vadd.f32 %v2899, %v2869
      %v2932 = vadd.f32 %v2900, %v2870
      %v2933 = vadd.f32 %v2901, %v2871
      %v2934 = vadd.f32 %v2902, %v2872
      %v2935 = vadd.f32 %v2903, %v2873
      %v2936 = vadd.f32 %v2904, %v2874
      %v2937 = vadd.f32 %v2905, %v2875
      %v2938 = vadd.f32 %v2906, %v2876
      %v2939 = vadd.f32 %v2907, %v2877
      %v2940 = vadd.f32 %v2908, %v2878
      %v2941 = vadd.f32 %v2909, %v2879
      %v2942 = vadd.f32 %v2910, %v2880
      %v2943 = vadd.f32 %v2911, %v2881
      %v2944 = vadd.f32 %v2912, %v2882
      %v2945 = vadd.f32 %v2913, 0.0
      %v2946 = vadd.f32 %v2914, 0.0
      %vm2947 = vcmp.gt.f32.partialorder %v2915, 0.0
      %vm2948 = vcmp.gt.f32.partialorder %v2916, 0.0
      %vm2949 = vcmp.gt.f32.partialorder %v2917, 0.0
      %vm2950 = vcmp.gt.f32.partialorder %v2918, 0.0
      %vm2951 = vcmp.gt.f32.partialorder %v2919, 0.0
      %vm2952 = vcmp.gt.f32.partialorder %v2920, 0.0
      %vm2953 = vcmp.gt.f32.partialorder %v2921, 0.0
      %vm2954 = vcmp.gt.f32.partialorder %v2922, 0.0
      %vm2955 = vcmp.gt.f32.partialorder %v2923, 0.0
      %vm2956 = vcmp.gt.f32.partialorder %v2924, 0.0
      %vm2957 = vcmp.gt.f32.partialorder %v2925, 0.0
      %vm2958 = vcmp.gt.f32.partialorder %v2926, 0.0
      %vm2959 = vcmp.gt.f32.partialorder %v2927, 0.0
      %vm2960 = vcmp.gt.f32.partialorder %v2928, 0.0
      %vm2961 = vcmp.gt.f32.partialorder %v2929, 0.0
      %vm2962 = vcmp.gt.f32.partialorder %v2930, 0.0
      %vm2963 = vcmp.gt.f32.partialorder %v2931, 0.0
      %vm2964 = vcmp.gt.f32.partialorder %v2932, 0.0
      %vm2965 = vcmp.gt.f32.partialorder %v2933, 0.0
      %vm2966 = vcmp.gt.f32.partialorder %v2934, 0.0
      %vm2967 = vcmp.gt.f32.partialorder %v2935, 0.0
      %vm2968 = vcmp.gt.f32.partialorder %v2936, 0.0
      %vm2969 = vcmp.gt.f32.partialorder %v2937, 0.0
      %vm2970 = vcmp.gt.f32.partialorder %v2938, 0.0
      %vm2971 = vcmp.gt.f32.partialorder %v2939, 0.0
      %vm2972 = vcmp.gt.f32.partialorder %v2940, 0.0
      %vm2973 = vcmp.gt.f32.partialorder %v2941, 0.0
      %vm2974 = vcmp.gt.f32.partialorder %v2942, 0.0
      %vm2975 = vcmp.gt.f32.partialorder %v2943, 0.0
      %vm2976 = vcmp.gt.f32.partialorder %v2944, 0.0
      %vm2977 = vcmp.gt.f32.partialorder %v2945, 0.0
      %vm2978 = vcmp.gt.f32.partialorder %v2946, 0.0
      %v2979 = vmul.f32 %v2915, 1.442695
      %v2980 = vpow.pop %v2979
      %v2981 = vmul.f32 %v2916, 1.442695
      %v2982 = vpow.pop %v2981
      %v2983 = vmul.f32 %v2917, 1.442695
      %v2984 = vpow.pop %v2983
      %v2985 = vmul.f32 %v2918, 1.442695
      %v2986 = vpow.pop %v2985
      %v2987 = vmul.f32 %v2919, 1.442695
      %v2988 = vpow.pop %v2987
      %v2989 = vmul.f32 %v2920, 1.442695
      %v2990 = vpow.pop %v2989
      %v2991 = vmul.f32 %v2921, 1.442695
      %v2992 = vpow.pop %v2991
      %v2993 = vmul.f32 %v2922, 1.442695
      %v2994 = vpow.pop %v2993
      %v2995 = vmul.f32 %v2923, 1.442695
      %v2996 = vpow.pop %v2995
      %v2997 = vmul.f32 %v2924, 1.442695
      %v2998 = vpow.pop %v2997
      %v2999 = vmul.f32 %v2925, 1.442695
      %v3000 = vpow.pop %v2999
      %v3001 = vmul.f32 %v2926, 1.442695
      %v3002 = vpow.pop %v3001
      %v3003 = vmul.f32 %v2927, 1.442695
      %v3004 = vpow.pop %v3003
      %v3005 = vmul.f32 %v2928, 1.442695
      %v3006 = vpow.pop %v3005
      %v3007 = vmul.f32 %v2929, 1.442695
      %v3008 = vpow.pop %v3007
      %v3009 = vmul.f32 %v2930, 1.442695
      %v3010 = vpow.pop %v3009
      %v3011 = vmul.f32 %v2931, 1.442695
      %v3012 = vpow.pop %v3011
      %v3013 = vmul.f32 %v2932, 1.442695
      %v3014 = vpow.pop %v3013
      %v3015 = vmul.f32 %v2933, 1.442695
      %v3016 = vpow.pop %v3015
      %v3017 = vmul.f32 %v2934, 1.442695
      %v3018 = vpow.pop %v3017
      %v3019 = vmul.f32 %v2935, 1.442695
      %v3020 = vpow.pop %v3019
      %v3021 = vmul.f32 %v2936, 1.442695
      %v3022 = vpow.pop %v3021
      %v3023 = vmul.f32 %v2937, 1.442695
      %v3024 = vpow.pop %v3023
      %v3025 = vmul.f32 %v2938, 1.442695
      %v3026 = vpow.pop %v3025
      %v3027 = vmul.f32 %v2939, 1.442695
      %v3028 = vpow.pop %v3027
      %v3029 = vmul.f32 %v2940, 1.442695
      %v3030 = vpow.pop %v3029
      %v3031 = vmul.f32 %v2941, 1.442695
      %v3032 = vpow.pop %v3031
      %v3033 = vmul.f32 %v2942, 1.442695
      %v3034 = vpow.pop %v3033
      %v3035 = vmul.f32 %v2943, 1.442695
      %v3036 = vpow.pop %v3035
      %v3037 = vmul.f32 %v2944, 1.442695
      %v3038 = vpow.pop %v3037
      %v3039 = vmul.f32 %v2945, 1.442695
      %v3040 = vpow.pop %v3039
      %v3041 = vmul.f32 %v2946, 1.442695
      %v3042 = vpow.pop %v3041
      %v3043 = vsub.f32 %v2980, 1.0
      %v3044 = vsub.f32 %v2982, 1.0
      %v3045 = vsub.f32 %v2984, 1.0
      %v3046 = vsub.f32 %v2986, 1.0
      %v3047 = vsub.f32 %v2988, 1.0
      %v3048 = vsub.f32 %v2990, 1.0
      %v3049 = vsub.f32 %v2992, 1.0
      %v3050 = vsub.f32 %v2994, 1.0
      %v3051 = vsub.f32 %v2996, 1.0
      %v3052 = vsub.f32 %v2998, 1.0
      %v3053 = vsub.f32 %v3000, 1.0
      %v3054 = vsub.f32 %v3002, 1.0
      %v3055 = vsub.f32 %v3004, 1.0
      %v3056 = vsub.f32 %v3006, 1.0
      %v3057 = vsub.f32 %v3008, 1.0
      %v3058 = vsub.f32 %v3010, 1.0
      %v3059 = vsub.f32 %v3012, 1.0
      %v3060 = vsub.f32 %v3014, 1.0
      %v3061 = vsub.f32 %v3016, 1.0
      %v3062 = vsub.f32 %v3018, 1.0
      %v3063 = vsub.f32 %v3020, 1.0
      %v3064 = vsub.f32 %v3022, 1.0
      %v3065 = vsub.f32 %v3024, 1.0
      %v3066 = vsub.f32 %v3026, 1.0
      %v3067 = vsub.f32 %v3028, 1.0
      %v3068 = vsub.f32 %v3030, 1.0
      %v3069 = vsub.f32 %v3032, 1.0
      %v3070 = vsub.f32 %v3034, 1.0
      %v3071 = vsub.f32 %v3036, 1.0
      %v3072 = vsub.f32 %v3038, 1.0
      %v3073 = vsub.f32 %v3040, 1.0
      %v3074 = vsub.f32 %v3042, 1.0
      %v3075 = vsel %vm2947, %v2915, %v3043
      %v3076 = vsel %vm2948, %v2916, %v3044
      %v3077 = vsel %vm2949, %v2917, %v3045
      %v3078 = vsel %vm2950, %v2918, %v3046
      %v3079 = vsel %vm2951, %v2919, %v3047
      %v3080 = vsel %vm2952, %v2920, %v3048
      %v3081 = vsel %vm2953, %v2921, %v3049
      %v3082 = vsel %vm2954, %v2922, %v3050
      %v3083 = vsel %vm2955, %v2923, %v3051
      %v3084 = vsel %vm2956, %v2924, %v3052
      %v3085 = vsel %vm2957, %v2925, %v3053
      %v3086 = vsel %vm2958, %v2926, %v3054
      %v3087 = vsel %vm2959, %v2927, %v3055
      %v3088 = vsel %vm2960, %v2928, %v3056
      %v3089 = vsel %vm2961, %v2929, %v3057
      %v3090 = vsel %vm2962, %v2930, %v3058
      %v3091 = vsel %vm2963, %v2931, %v3059
      %v3092 = vsel %vm2964, %v2932, %v3060
      %v3093 = vsel %vm2965, %v2933, %v3061
      %v3094 = vsel %vm2966, %v2934, %v3062
      %v3095 = vsel %vm2967, %v2935, %v3063
      %v3096 = vsel %vm2968, %v2936, %v3064
      %v3097 = vsel %vm2969, %v2937, %v3065
      %v3098 = vsel %vm2970, %v2938, %v3066
      %v3099 = vsel %vm2971, %v2939, %v3067
      %v3100 = vsel %vm2972, %v2940, %v3068
      %v3101 = vsel %vm2973, %v2941, %v3069
      %v3102 = vsel %vm2974, %v2942, %v3070
      %v3103 = vsel %vm2975, %v2943, %v3071
      %v3104 = vsel %vm2976, %v2944, %v3072
      %v3105 = vsel %vm2977, %v2945, %v3073
      %v3106 = vsel %vm2978, %v2946, %v3074
      %v3107 = vld [vmem:[%s6] sm:$0xff]
      %v3109 = vsel %vm1710, %v3075, 0
      %v3112 = vsel %vm1710, %v3076, 0
      %v3115 = vsel %vm1710, %v3077, 0
      %v3118 = vsel %vm1710, %v3078, 0
      %v3121 = vsel %vm1710, %v3079, 0
      %v3124 = vsel %vm1710, %v3080, 0
      %v3127 = vsel %vm1710, %v3081, 0
      %v3130 = vsel %vm1710, %v3082, 0
      %v3133 = vsel %vm1710, %v3083, 0
      %v3136 = vsel %vm1710, %v3084, 0
      %v3139 = vsel %vm1710, %v3085, 0
      %v3142 = vsel %vm1710, %v3086, 0
      %v3145 = vsel %vm1710, %v3087, 0
      %v3148 = vsel %vm1710, %v3088, 0
      %v3151 = vsel %vm1710, %v3089, 0
      %v3154 = vsel %vm1710, %v3090, 0
      %v3157 = vsel %vm1710, %v3091, 0
      %v3160 = vsel %vm1710, %v3092, 0
      %v3163 = vsel %vm1710, %v3093, 0
      %v3166 = vsel %vm1710, %v3094, 0
      %v3169 = vsel %vm1710, %v3095, 0
      %v3172 = vsel %vm1710, %v3096, 0
      %v3175 = vsel %vm1710, %v3097, 0
      %v3178 = vsel %vm1710, %v3098, 0
      %v3181 = vsel %vm1710, %v3099, 0
      %v3184 = vsel %vm1710, %v3100, 0
      %v3187 = vsel %vm1710, %v3101, 0
      %v3190 = vsel %vm1710, %v3102, 0
      %v3193 = vsel %vm1710, %v3103, 0
      %v3196 = vsel %vm1710, %v3104, 0
      %v3199 = vsel %vm1710, %v3105, 0
      %v3202 = vsel %vm1710, %v3106, 0
      %3204 = vmatprep.subr.mxu0 0.0
      %3205 = vmatpush1.msra.mxu0 %v3107
      %3206 = vmatprep.subr.mxu0 0.0
      %3207 = vmatpush1.msra.mxu0 0.0
      %3208 = vmatprep.subr.mxu0 0.0
      %3209 = vmatpush1.msra.mxu0 0.0
      %3210 = vmatprep.subr.mxu0 0.0
      %3211 = vmatpush1.msra.mxu0 0.0
      %3212 = vmatprep.subr.mxu0 0.0
      %3213 = vmatpush1.msra.mxu0 0.0
      %3214 = vmatprep.subr.mxu0 0.0
      %3215 = vmatpush1.msra.mxu0 0.0
      %3216 = vmatprep.subr.mxu0 0.0
      %3217 = vmatpush1.msra.mxu0 0.0
      %3218 = vmatprep.subr.mxu0 0.0
      %3219 = vmatpush1.msra.mxu0 0.0
      %3220 = vmatprep.subr.mxu0 0.0
      %3221 = vmatpush1.msra.mxu0 0.0
      %3222 = vmatprep.subr.mxu0 0.0
      %3223 = vmatpush1.msra.mxu0 0.0
      %3224 = vmatprep.subr.mxu0 0.0
      %3225 = vmatpush1.msra.mxu0 0.0
      %3226 = vmatprep.subr.mxu0 0.0
      %3227 = vmatpush1.msra.mxu0 0.0
      %3228 = vmatprep.subr.mxu0 0.0
      %3229 = vmatpush1.msra.mxu0 0.0
      %3230 = vmatprep.subr.mxu0 0.0
      %3231 = vmatpush1.msra.mxu0 0.0
      %3232 = vmatprep.subr.mxu0 0.0
      %3233 = vmatpush1.msra.mxu0 0.0
      %3234 = vmatprep.subr.mxu0 0.0
      %3235 = vmatpush1.msra.mxu0 0.0
      %3236 = vmatprep.subr.mxu0 0.0
      %3237 = vmatpush1.msra.mxu0 0.0
      %3238 = vmatprep.subr.mxu0 0.0
      %3239 = vmatpush1.msra.mxu0 0.0
      %3240 = vmatprep.subr.mxu0 0.0
      %3241 = vmatpush1.msra.mxu0 0.0
      %3242 = vmatprep.subr.mxu0 0.0
      %3243 = vmatpush1.msra.mxu0 0.0
      %3244 = vmatprep.subr.mxu0 0.0
      %3245 = vmatpush1.msra.mxu0 0.0
      %3246 = vmatprep.subr.mxu0 0.0
      %3247 = vmatpush1.msra.mxu0 0.0
      %3248 = vmatprep.subr.mxu0 0.0
      %3249 = vmatpush1.msra.mxu0 0.0
      %3250 = vmatprep.subr.mxu0 0.0
      %3251 = vmatpush1.msra.mxu0 0.0
      %3252 = vmatprep.subr.mxu0 0.0
      %3253 = vmatpush1.msra.mxu0 0.0
      %3254 = vmatprep.subr.mxu0 0.0
      %3255 = vmatpush1.msra.mxu0 0.0
      %3256 = vmatprep.subr.mxu0 0.0
      %3257 = vmatpush1.msra.mxu0 0.0
      %3258 = vmatprep.subr.mxu0 0.0
      %3259 = vmatpush1.msra.mxu0 0.0
      %3260 = vmatprep.subr.mxu0 0.0
      %3261 = vmatpush1.msra.mxu0 0.0
      %3262 = vmatprep.subr.mxu0 0.0
      %3263 = vmatpush1.msra.mxu0 0.0
      %3264 = vmatprep.subr.mxu0 0.0
      %3265 = vmatpush1.msra.mxu0 0.0
      %3266 = vmatprep.subr.mxu0 0.0
      %3267 = vmatpush1.msra.mxu0 0.0
      %3268 = vmatprep.mubr.f32.mxu0 0.0
      %3269 = vmatmul.mubr.f32.gmra.mrb[0].mxu0 %v3109
      %v3270 = vpop.f32.mrb[0].mxu0
      %v3271 = vadd.f32 0.0, %v3270
      %v3272 = vpop.f32.mrb[0].mxu0
      %3273 = vmatprep.mubr.f32.mxu0 0.0
      %3274 = vmatmul.mubr.f32.gmra.mrb[0].mxu0 %v3112
      %v3275 = vpop.f32.mrb[0].mxu0
      %v3276 = vadd.f32 0.0, %v3275
      %v3277 = vpop.f32.mrb[0].mxu0
      %3278 = vmatprep.mubr.f32.mxu0 0.0
      %3279 = vmatmul.mubr.f32.gmra.mrb[0].mxu0 %v3115
      %v3280 = vpop.f32.mrb[0].mxu0
      %v3281 = vadd.f32 0.0, %v3280
      %v3282 = vpop.f32.mrb[0].mxu0
      %3283 = vmatprep.mubr.f32.mxu0 0.0
      %3284 = vmatmul.mubr.f32.gmra.mrb[0].mxu0 %v3118
      %v3285 = vpop.f32.mrb[0].mxu0
      %v3286 = vadd.f32 0.0, %v3285
      %v3287 = vpop.f32.mrb[0].mxu0
      %3288 = vmatprep.mubr.f32.mxu0 0.0
      %3289 = vmatmul.mubr.f32.gmra.mrb[0].mxu0 %v3121
      %v3290 = vpop.f32.mrb[0].mxu0
      %v3291 = vadd.f32 0.0, %v3290
      %v3292 = vpop.f32.mrb[0].mxu0
      %3293 = vmatprep.mubr.f32.mxu0 0.0
      %3294 = vmatmul.mubr.f32.gmra.mrb[0].mxu0 %v3124
      %v3295 = vpop.f32.mrb[0].mxu0
      %v3296 = vadd.f32 0.0, %v3295
      %v3297 = vpop.f32.mrb[0].mxu0
      %3298 = vmatprep.mubr.f32.mxu0 0.0
      %3299 = vmatmul.mubr.f32.gmra.mrb[0].mxu0 %v3127
      %v3300 = vpop.f32.mrb[0].mxu0
      %v3301 = vadd.f32 0.0, %v3300
      %v3302 = vpop.f32.mrb[0].mxu0
      %3303 = vmatprep.mubr.f32.mxu0 0.0
      %3304 = vmatmul.mubr.f32.gmra.mrb[0].mxu0 %v3130
      %v3305 = vpop.f32.mrb[0].mxu0
      %v3306 = vadd.f32 0.0, %v3305
      %v3307 = vpop.f32.mrb[0].mxu0
      %3308 = vmatprep.mubr.f32.mxu0 0.0
      %3309 = vmatmul.mubr.f32.gmra.mrb[0].mxu0 %v3133
      %v3310 = vpop.f32.mrb[0].mxu0
      %v3311 = vadd.f32 0.0, %v3310
      %v3312 = vpop.f32.mrb[0].mxu0
      %3313 = vmatprep.mubr.f32.mxu0 0.0
      %3314 = vmatmul.mubr.f32.gmra.mrb[0].mxu0 %v3136
      %v3315 = vpop.f32.mrb[0].mxu0
      %v3316 = vadd.f32 0.0, %v3315
      %v3317 = vpop.f32.mrb[0].mxu0
      %3318 = vmatprep.mubr.f32.mxu0 0.0
      %3319 = vmatmul.mubr.f32.gmra.mrb[0].mxu0 %v3139
      %v3320 = vpop.f32.mrb[0].mxu0
      %v3321 = vadd.f32 0.0, %v3320
      %v3322 = vpop.f32.mrb[0].mxu0
      %3323 = vmatprep.mubr.f32.mxu0 0.0
      %3324 = vmatmul.mubr.f32.gmra.mrb[0].mxu0 %v3142
      %v3325 = vpop.f32.mrb[0].mxu0
      %v3326 = vadd.f32 0.0, %v3325
      %v3327 = vpop.f32.mrb[0].mxu0
      %3328 = vmatprep.mubr.f32.mxu0 0.0
      %3329 = vmatmul.mubr.f32.gmra.mrb[0].mxu0 %v3145
      %v3330 = vpop.f32.mrb[0].mxu0
      %v3331 = vadd.f32 0.0, %v3330
      %v3332 = vpop.f32.mrb[0].mxu0
      %3333 = vmatprep.mubr.f32.mxu0 0.0
      %3334 = vmatmul.mubr.f32.gmra.mrb[0].mxu0 %v3148
      %v3335 = vpop.f32.mrb[0].mxu0
      %v3336 = vadd.f32 0.0, %v3335
      %v3337 = vpop.f32.mrb[0].mxu0
      %3338 = vmatprep.mubr.f32.mxu0 0.0
      %3339 = vmatmul.mubr.f32.gmra.mrb[0].mxu0 %v3151
      %v3340 = vpop.f32.mrb[0].mxu0
      %v3341 = vadd.f32 0.0, %v3340
      %v3342 = vpop.f32.mrb[0].mxu0
      %3343 = vmatprep.mubr.f32.mxu0 0.0
      %3344 = vmatmul.mubr.f32.gmra.mrb[0].mxu0 %v3154
      %v3345 = vpop.f32.mrb[0].mxu0
      %v3346 = vadd.f32 0.0, %v3345
      %v3347 = vpop.f32.mrb[0].mxu0
      %3348 = vmatprep.mubr.f32.mxu0 0.0
      %3349 = vmatmul.mubr.f32.gmra.mrb[0].mxu0 %v3157
      %v3350 = vpop.f32.mrb[0].mxu0
      %v3351 = vadd.f32 0.0, %v3350
      %v3352 = vpop.f32.mrb[0].mxu0
      %3353 = vmatprep.mubr.f32.mxu0 0.0
      %3354 = vmatmul.mubr.f32.gmra.mrb[0].mxu0 %v3160
      %v3355 = vpop.f32.mrb[0].mxu0
      %v3356 = vadd.f32 0.0, %v3355
      %v3357 = vpop.f32.mrb[0].mxu0
      %3358 = vmatprep.mubr.f32.mxu0 0.0
      %3359 = vmatmul.mubr.f32.gmra.mrb[0].mxu0 %v3163
      %v3360 = vpop.f32.mrb[0].mxu0
      %v3361 = vadd.f32 0.0, %v3360
      %v3362 = vpop.f32.mrb[0].mxu0
      %3363 = vmatprep.mubr.f32.mxu0 0.0
      %3364 = vmatmul.mubr.f32.gmra.mrb[0].mxu0 %v3166
      %v3365 = vpop.f32.mrb[0].mxu0
      %v3366 = vadd.f32 0.0, %v3365
      %v3367 = vpop.f32.mrb[0].mxu0
      %3368 = vmatprep.mubr.f32.mxu0 0.0
      %3369 = vmatmul.mubr.f32.gmra.mrb[0].mxu0 %v3169
      %v3370 = vpop.f32.mrb[0].mxu0
      %v3371 = vadd.f32 0.0, %v3370
      %v3372 = vpop.f32.mrb[0].mxu0
      %3373 = vmatprep.mubr.f32.mxu0 0.0
      %3374 = vmatmul.mubr.f32.gmra.mrb[0].mxu0 %v3172
      %v3375 = vpop.f32.mrb[0].mxu0
      %v3376 = vadd.f32 0.0, %v3375
      %v3377 = vpop.f32.mrb[0].mxu0
      %3378 = vmatprep.mubr.f32.mxu0 0.0
      %3379 = vmatmul.mubr.f32.gmra.mrb[0].mxu0 %v3175
      %v3380 = vpop.f32.mrb[0].mxu0
      %v3381 = vadd.f32 0.0, %v3380
      %v3382 = vpop.f32.mrb[0].mxu0
      %3383 = vmatprep.mubr.f32.mxu0 0.0
      %3384 = vmatmul.mubr.f32.gmra.mrb[0].mxu0 %v3178
      %v3385 = vpop.f32.mrb[0].mxu0
      %v3386 = vadd.f32 0.0, %v3385
      %v3387 = vpop.f32.mrb[0].mxu0
      %3388 = vmatprep.mubr.f32.mxu0 0.0
      %3389 = vmatmul.mubr.f32.gmra.mrb[0].mxu0 %v3181
      %v3390 = vpop.f32.mrb[0].mxu0
      %v3391 = vadd.f32 0.0, %v3390
      %v3392 = vpop.f32.mrb[0].mxu0
      %3393 = vmatprep.mubr.f32.mxu0 0.0
      %3394 = vmatmul.mubr.f32.gmra.mrb[0].mxu0 %v3184
      %v3395 = vpop.f32.mrb[0].mxu0
      %v3396 = vadd.f32 0.0, %v3395
      %v3397 = vpop.f32.mrb[0].mxu0
      %3398 = vmatprep.mubr.f32.mxu0 0.0
      %3399 = vmatmul.mubr.f32.gmra.mrb[0].mxu0 %v3187
      %v3400 = vpop.f32.mrb[0].mxu0
      %v3401 = vadd.f32 0.0, %v3400
      %v3402 = vpop.f32.mrb[0].mxu0
      %3403 = vmatprep.mubr.f32.mxu0 0.0
      %3404 = vmatmul.mubr.f32.gmra.mrb[0].mxu0 %v3190
      %v3405 = vpop.f32.mrb[0].mxu0
      %v3406 = vadd.f32 0.0, %v3405
      %v3407 = vpop.f32.mrb[0].mxu0
      %3408 = vmatprep.mubr.f32.mxu0 0.0
      %3409 = vmatmul.mubr.f32.gmra.mrb[0].mxu0 %v3193
      %v3410 = vpop.f32.mrb[0].mxu0
      %v3411 = vadd.f32 0.0, %v3410
      %v3412 = vpop.f32.mrb[0].mxu0
      %3413 = vmatprep.mubr.f32.mxu0 0.0
      %3414 = vmatmul.mubr.f32.gmra.mrb[0].mxu0 %v3196
      %v3415 = vpop.f32.mrb[0].mxu0
      %v3416 = vadd.f32 0.0, %v3415
      %v3417 = vpop.f32.mrb[0].mxu0
      %3418 = vmatprep.mubr.f32.mxu0 0.0
      %3419 = vmatmul.mubr.f32.gmra.mrb[0].mxu0 %v3199
      %v3420 = vpop.f32.mrb[0].mxu0
      %v3421 = vadd.f32 0.0, %v3420
      %v3422 = vpop.f32.mrb[0].mxu0
      %3423 = vmatprep.mubr.f32.mxu0 0.0
      %3424 = vmatmul.mubr.f32.gmra.mrb[0].mxu0 %v3202
      %v3425 = vpop.f32.mrb[0].mxu0
      %v3426 = vadd.f32 0.0, %v3425
      %v3427 = vpop.f32.mrb[0].mxu0
      %3428 = vdwg.mxu0
      %vm3429 = vcmp.gt.f32.partialorder %v3271, 0.0
      %vm3430 = vcmp.gt.f32.partialorder %v3276, 0.0
      %vm3431 = vcmp.gt.f32.partialorder %v3281, 0.0
      %vm3432 = vcmp.gt.f32.partialorder %v3286, 0.0
      %vm3433 = vcmp.gt.f32.partialorder %v3291, 0.0
      %vm3434 = vcmp.gt.f32.partialorder %v3296, 0.0
      %vm3435 = vcmp.gt.f32.partialorder %v3301, 0.0
      %vm3436 = vcmp.gt.f32.partialorder %v3306, 0.0
      %vm3437 = vcmp.gt.f32.partialorder %v3311, 0.0
      %vm3438 = vcmp.gt.f32.partialorder %v3316, 0.0
      %vm3439 = vcmp.gt.f32.partialorder %v3321, 0.0
      %vm3440 = vcmp.gt.f32.partialorder %v3326, 0.0
      %vm3441 = vcmp.gt.f32.partialorder %v3331, 0.0
      %vm3442 = vcmp.gt.f32.partialorder %v3336, 0.0
      %vm3443 = vcmp.gt.f32.partialorder %v3341, 0.0
      %vm3444 = vcmp.gt.f32.partialorder %v3346, 0.0
      %vm3445 = vcmp.gt.f32.partialorder %v3351, 0.0
      %vm3446 = vcmp.gt.f32.partialorder %v3356, 0.0
      %vm3447 = vcmp.gt.f32.partialorder %v3361, 0.0
      %vm3448 = vcmp.gt.f32.partialorder %v3366, 0.0
      %vm3449 = vcmp.gt.f32.partialorder %v3371, 0.0
      %vm3450 = vcmp.gt.f32.partialorder %v3376, 0.0
      %vm3451 = vcmp.gt.f32.partialorder %v3381, 0.0
      %vm3452 = vcmp.gt.f32.partialorder %v3386, 0.0
      %vm3453 = vcmp.gt.f32.partialorder %v3391, 0.0
      %vm3454 = vcmp.gt.f32.partialorder %v3396, 0.0
      %vm3455 = vcmp.gt.f32.partialorder %v3401, 0.0
      %vm3456 = vcmp.gt.f32.partialorder %v3406, 0.0
      %vm3457 = vcmp.gt.f32.partialorder %v3411, 0.0
      %vm3458 = vcmp.gt.f32.partialorder %v3416, 0.0
      %vm3459 = vcmp.gt.f32.partialorder %v3421, 0.0
      %vm3460 = vcmp.gt.f32.partialorder %v3426, 0.0
      %v3461 = vmul.f32 %v3271, 1.442695
      %v3462 = vpow.pop %v3461
      %v3463 = vmul.f32 %v3276, 1.442695
      %v3464 = vpow.pop %v3463
      %v3465 = vmul.f32 %v3281, 1.442695
      %v3466 = vpow.pop %v3465
      %v3467 = vmul.f32 %v3286, 1.442695
      %v3468 = vpow.pop %v3467
      %v3469 = vmul.f32 %v3291, 1.442695
      %v3470 = vpow.pop %v3469
      %v3471 = vmul.f32 %v3296, 1.442695
      %v3472 = vpow.pop %v3471
      %v3473 = vmul.f32 %v3301, 1.442695
      %v3474 = vpow.pop %v3473
      %v3475 = vmul.f32 %v3306, 1.442695
      %v3476 = vpow.pop %v3475
      %v3477 = vmul.f32 %v3311, 1.442695
      %v3478 = vpow.pop %v3477
      %v3479 = vmul.f32 %v3316, 1.442695
      %v3480 = vpow.pop %v3479
      %v3481 = vmul.f32 %v3321, 1.442695
      %v3482 = vpow.pop %v3481
      %v3483 = vmul.f32 %v3326, 1.442695
      %v3484 = vpow.pop %v3483
      %v3485 = vmul.f32 %v3331, 1.442695
      %v3486 = vpow.pop %v3485
      %v3487 = vmul.f32 %v3336, 1.442695
      %v3488 = vpow.pop %v3487
      %v3489 = vmul.f32 %v3341, 1.442695
      %v3490 = vpow.pop %v3489
      %v3491 = vmul.f32 %v3346, 1.442695
      %v3492 = vpow.pop %v3491
      %v3493 = vmul.f32 %v3351, 1.442695
      %v3494 = vpow.pop %v3493
      %v3495 = vmul.f32 %v3356, 1.442695
      %v3496 = vpow.pop %v3495
      %v3497 = vmul.f32 %v3361, 1.442695
      %v3498 = vpow.pop %v3497
      %v3499 = vmul.f32 %v3366, 1.442695
      %v3500 = vpow.pop %v3499
      %v3501 = vmul.f32 %v3371, 1.442695
      %v3502 = vpow.pop %v3501
      %v3503 = vmul.f32 %v3376, 1.442695
      %v3504 = vpow.pop %v3503
      %v3505 = vmul.f32 %v3381, 1.442695
      %v3506 = vpow.pop %v3505
      %v3507 = vmul.f32 %v3386, 1.442695
      %v3508 = vpow.pop %v3507
      %v3509 = vmul.f32 %v3391, 1.442695
      %v3510 = vpow.pop %v3509
      %v3511 = vmul.f32 %v3396, 1.442695
      %v3512 = vpow.pop %v3511
      %v3513 = vmul.f32 %v3401, 1.442695
      %v3514 = vpow.pop %v3513
      %v3515 = vmul.f32 %v3406, 1.442695
      %v3516 = vpow.pop %v3515
      %v3517 = vmul.f32 %v3411, 1.442695
      %v3518 = vpow.pop %v3517
      %v3519 = vmul.f32 %v3416, 1.442695
      %v3520 = vpow.pop %v3519
      %v3521 = vmul.f32 %v3421, 1.442695
      %v3522 = vpow.pop %v3521
      %v3523 = vmul.f32 %v3426, 1.442695
      %v3524 = vpow.pop %v3523
      %v3525 = vsub.f32 %v3462, 1.0
      %v3526 = vsub.f32 %v3464, 1.0
      %v3527 = vsub.f32 %v3466, 1.0
      %v3528 = vsub.f32 %v3468, 1.0
      %v3529 = vsub.f32 %v3470, 1.0
      %v3530 = vsub.f32 %v3472, 1.0
      %v3531 = vsub.f32 %v3474, 1.0
      %v3532 = vsub.f32 %v3476, 1.0
      %v3533 = vsub.f32 %v3478, 1.0
      %v3534 = vsub.f32 %v3480, 1.0
      %v3535 = vsub.f32 %v3482, 1.0
      %v3536 = vsub.f32 %v3484, 1.0
      %v3537 = vsub.f32 %v3486, 1.0
      %v3538 = vsub.f32 %v3488, 1.0
      %v3539 = vsub.f32 %v3490, 1.0
      %v3540 = vsub.f32 %v3492, 1.0
      %v3541 = vsub.f32 %v3494, 1.0
      %v3542 = vsub.f32 %v3496, 1.0
      %v3543 = vsub.f32 %v3498, 1.0
      %v3544 = vsub.f32 %v3500, 1.0
      %v3545 = vsub.f32 %v3502, 1.0
      %v3546 = vsub.f32 %v3504, 1.0
      %v3547 = vsub.f32 %v3506, 1.0
      %v3548 = vsub.f32 %v3508, 1.0
      %v3549 = vsub.f32 %v3510, 1.0
      %v3550 = vsub.f32 %v3512, 1.0
      %v3551 = vsub.f32 %v3514, 1.0
      %v3552 = vsub.f32 %v3516, 1.0
      %v3553 = vsub.f32 %v3518, 1.0
      %v3554 = vsub.f32 %v3520, 1.0
      %v3555 = vsub.f32 %v3522, 1.0
      %v3556 = vsub.f32 %v3524, 1.0
      %v3557 = vsel %vm3429, %v3271, %v3525
      %v3558 = vsel %vm3430, %v3276, %v3526
      %v3559 = vsel %vm3431, %v3281, %v3527
      %v3560 = vsel %vm3432, %v3286, %v3528
      %v3561 = vsel %vm3433, %v3291, %v3529
      %v3562 = vsel %vm3434, %v3296, %v3530
      %v3563 = vsel %vm3435, %v3301, %v3531
      %v3564 = vsel %vm3436, %v3306, %v3532
      %v3565 = vsel %vm3437, %v3311, %v3533
      %v3566 = vsel %vm3438, %v3316, %v3534
      %v3567 = vsel %vm3439, %v3321, %v3535
      %v3568 = vsel %vm3440, %v3326, %v3536
      %v3569 = vsel %vm3441, %v3331, %v3537
      %v3570 = vsel %vm3442, %v3336, %v3538
      %v3571 = vsel %vm3443, %v3341, %v3539
      %v3572 = vsel %vm3444, %v3346, %v3540
      %v3573 = vsel %vm3445, %v3351, %v3541
      %v3574 = vsel %vm3446, %v3356, %v3542
      %v3575 = vsel %vm3447, %v3361, %v3543
      %v3576 = vsel %vm3448, %v3366, %v3544
      %v3577 = vsel %vm3449, %v3371, %v3545
      %v3578 = vsel %vm3450, %v3376, %v3546
      %v3579 = vsel %vm3451, %v3381, %v3547
      %v3580 = vsel %vm3452, %v3386, %v3548
      %v3581 = vsel %vm3453, %v3391, %v3549
      %v3582 = vsel %vm3454, %v3396, %v3550
      %v3583 = vsel %vm3455, %v3401, %v3551
      %v3584 = vsel %vm3456, %v3406, %v3552
      %v3585 = vsel %vm3457, %v3411, %v3553
      %v3586 = vsel %vm3458, %v3416, %v3554
      %v3587 = vsel %vm3459, %v3421, %v3555
      %v3588 = vsel %vm3460, %v3426, %v3556
      %v3589 = vld [vmem:[%s7] sm:$0x7]
      %v3590 = vld [vmem:[%s7 + $0x4] sm:$0x7]
      %v3591 = vld [vmem:[%s7 + $0x8] sm:$0x7]
      %v3592 = vrot.slane %v3557, 7
      %v3593 = vrot.slane %v3559, 7
      %v3594 = vrot.slane %v3561, 7
      %v3595 = vrot.slane %v3563, 7
      %v3596 = vrot.slane %v3565, 7
      %v3597 = vrot.slane %v3567, 7
      %v3598 = vrot.slane %v3569, 7
      %v3599 = vrot.slane %v3571, 7
      %v3600 = vrot.slane %v3573, 7
      %v3601 = vrot.slane %v3575, 7
      %v3602 = vrot.slane %v3577, 7
      %v3603 = vrot.slane %v3579, 7
      %v3604 = vrot.slane %v3581, 7
      %v3605 = vrot.slane %v3583, 7
      %v3606 = vrot.slane %v3585, 7
      %v3607 = vrot.slane %v3587, 7
      %v3608 = vrot.slane %v3558, 7
      %v3609 = vrot.slane %v3560, 7
      %v3610 = vrot.slane %v3562, 7
      %v3611 = vrot.slane %v3564, 7
      %v3612 = vrot.slane %v3566, 7
      %v3613 = vrot.slane %v3568, 7
      %v3614 = vrot.slane %v3570, 7
      %v3615 = vrot.slane %v3572, 7
      %v3616 = vrot.slane %v3574, 7
      %v3617 = vrot.slane %v3576, 7
      %v3618 = vrot.slane %v3578, 7
      %v3619 = vrot.slane %v3580, 7
      %v3620 = vrot.slane %v3582, 7
      %v3621 = vrot.slane %v3584, 7
      %v3622 = vrot.slane %v3586, 7
      %v3623 = vrot.slane %v3588, 7
      %v3624 = vsel %vm827, %v3592, %v3608
      %v3625 = vsel %vm827, %v3593, %v3609
      %v3626 = vsel %vm827, %v3594, %v3610
      %v3627 = vsel %vm827, %v3595, %v3611
      %v3628 = vsel %vm827, %v3596, %v3612
      %v3629 = vsel %vm827, %v3597, %v3613
      %v3630 = vsel %vm827, %v3598, %v3614
      %v3631 = vsel %vm827, %v3599, %v3615
      %v3632 = vsel %vm827, %v3600, %v3616
      %v3633 = vsel %vm827, %v3601, %v3617
      %v3634 = vsel %vm827, %v3602, %v3618
      %v3635 = vsel %vm827, %v3603, %v3619
      %v3636 = vsel %vm827, %v3604, %v3620
      %v3637 = vsel %vm827, %v3605, %v3621
      %v3638 = vsel %vm827, %v3606, %v3622
      %v3639 = vsel %vm827, %v3607, %v3623
      %v3640 = vsel %vm827, %v3608, %v3592
      %v3641 = vsel %vm827, %v3609, %v3593
      %v3642 = vsel %vm827, %v3610, %v3594
      %v3643 = vsel %vm827, %v3611, %v3595
      %v3644 = vsel %vm827, %v3612, %v3596
      %v3645 = vsel %vm827, %v3613, %v3597
      %v3646 = vsel %vm827, %v3614, %v3598
      %v3647 = vsel %vm827, %v3615, %v3599
      %v3648 = vsel %vm827, %v3616, %v3600
      %v3649 = vsel %vm827, %v3617, %v3601
      %v3650 = vsel %vm827, %v3618, %v3602
      %v3651 = vsel %vm827, %v3619, %v3603
      %v3652 = vsel %vm827, %v3620, %v3604
      %v3653 = vsel %vm827, %v3621, %v3605
      %v3654 = vsel %vm827, %v3622, %v3606
      %v3655 = vsel %vm827, %v3623, %v3607
      %v3656 = vsel %vm392, %v3640, 0.0
      %v3657 = vsel %vm393, %v3624, 0.0
      %v3658 = vsel %vm392, %v3641, 0.0
      %v3659 = vsel %vm393, %v3625, 0.0
      %v3660 = vsel %vm392, %v3642, 0.0
      %v3661 = vsel %vm393, %v3626, 0.0
      %v3662 = vsel %vm392, %v3643, 0.0
      %v3663 = vsel %vm393, %v3627, 0.0
      %v3664 = vsel %vm392, %v3644, 0.0
      %v3665 = vsel %vm393, %v3628, 0.0
      %v3666 = vsel %vm392, %v3645, 0.0
      %v3667 = vsel %vm393, %v3629, 0.0
      %v3668 = vsel %vm392, %v3646, 0.0
      %v3669 = vsel %vm393, %v3630, 0.0
      %v3670 = vsel %vm392, %v3647, 0.0
      %v3671 = vsel %vm393, %v3631, 0.0
      %v3672 = vsel %vm392, %v3648, 0.0
      %v3673 = vsel %vm393, %v3632, 0.0
      %v3674 = vsel %vm392, %v3649, 0.0
      %v3675 = vsel %vm393, %v3633, 0.0
      %v3676 = vsel %vm392, %v3650, 0.0
      %v3677 = vsel %vm393, %v3634, 0.0
      %v3678 = vsel %vm392, %v3651, 0.0
      %v3679 = vsel %vm393, %v3635, 0.0
      %v3680 = vsel %vm392, %v3652, 0.0
      %v3681 = vsel %vm393, %v3636, 0.0
      %v3682 = vsel %vm392, %v3653, 0.0
      %v3683 = vsel %vm393, %v3637, 0.0
      %v3684 = vsel %vm392, %v3654, 0.0
      %v3685 = vsel %vm393, %v3638, 0.0
      %v3686 = vsel %vm392, %v3655, 0.0
      %v3687 = vsel %vm393, %v3639, 0.0
      %v3688 = vrot.slane %v3557, 1
      %v3689 = vrot.slane %v3559, 1
      %v3690 = vrot.slane %v3561, 1
      %v3691 = vrot.slane %v3563, 1
      %v3692 = vrot.slane %v3565, 1
      %v3693 = vrot.slane %v3567, 1
      %v3694 = vrot.slane %v3569, 1
      %v3695 = vrot.slane %v3571, 1
      %v3696 = vrot.slane %v3573, 1
      %v3697 = vrot.slane %v3575, 1
      %v3698 = vrot.slane %v3577, 1
      %v3699 = vrot.slane %v3579, 1
      %v3700 = vrot.slane %v3581, 1
      %v3701 = vrot.slane %v3583, 1
      %v3702 = vrot.slane %v3585, 1
      %v3703 = vrot.slane %v3587, 1
      %v3704 = vrot.slane %v3558, 1
      %v3705 = vrot.slane %v3560, 1
      %v3706 = vrot.slane %v3562, 1
      %v3707 = vrot.slane %v3564, 1
      %v3708 = vrot.slane %v3566, 1
      %v3709 = vrot.slane %v3568, 1
      %v3710 = vrot.slane %v3570, 1
      %v3711 = vrot.slane %v3572, 1
      %v3712 = vrot.slane %v3574, 1
      %v3713 = vrot.slane %v3576, 1
      %v3714 = vrot.slane %v3578, 1
      %v3715 = vrot.slane %v3580, 1
      %v3716 = vrot.slane %v3582, 1
      %v3717 = vrot.slane %v3584, 1
      %v3718 = vrot.slane %v3586, 1
      %v3719 = vrot.slane %v3588, 1
      %v3720 = vsel %vm924, %v3688, %v3704
      %v3721 = vsel %vm924, %v3689, %v3705
      %v3722 = vsel %vm924, %v3690, %v3706
      %v3723 = vsel %vm924, %v3691, %v3707
      %v3724 = vsel %vm924, %v3692, %v3708
      %v3725 = vsel %vm924, %v3693, %v3709
      %v3726 = vsel %vm924, %v3694, %v3710
      %v3727 = vsel %vm924, %v3695, %v3711
      %v3728 = vsel %vm924, %v3696, %v3712
      %v3729 = vsel %vm924, %v3697, %v3713
      %v3730 = vsel %vm924, %v3698, %v3714
      %v3731 = vsel %vm924, %v3699, %v3715
      %v3732 = vsel %vm924, %v3700, %v3716
      %v3733 = vsel %vm924, %v3701, %v3717
      %v3734 = vsel %vm924, %v3702, %v3718
      %v3735 = vsel %vm924, %v3703, %v3719
      %v3736 = vsel %vm924, %v3704, %v3688
      %v3737 = vsel %vm924, %v3705, %v3689
      %v3738 = vsel %vm924, %v3706, %v3690
      %v3739 = vsel %vm924, %v3707, %v3691
      %v3740 = vsel %vm924, %v3708, %v3692
      %v3741 = vsel %vm924, %v3709, %v3693
      %v3742 = vsel %vm924, %v3710, %v3694
      %v3743 = vsel %vm924, %v3711, %v3695
      %v3744 = vsel %vm924, %v3712, %v3696
      %v3745 = vsel %vm924, %v3713, %v3697
      %v3746 = vsel %vm924, %v3714, %v3698
      %v3747 = vsel %vm924, %v3715, %v3699
      %v3748 = vsel %vm924, %v3716, %v3700
      %v3749 = vsel %vm924, %v3717, %v3701
      %v3750 = vsel %vm924, %v3718, %v3702
      %v3751 = vsel %vm924, %v3719, %v3703
      %v3752 = vsel %vm390, %v3720, 0.0
      %v3753 = vsel %vm391, %v3736, 0.0
      %v3754 = vsel %vm390, %v3721, 0.0
      %v3755 = vsel %vm391, %v3737, 0.0
      %v3756 = vsel %vm390, %v3722, 0.0
      %v3757 = vsel %vm391, %v3738, 0.0
      %v3758 = vsel %vm390, %v3723, 0.0
      %v3759 = vsel %vm391, %v3739, 0.0
      %v3760 = vsel %vm390, %v3724, 0.0
      %v3761 = vsel %vm391, %v3740, 0.0
      %v3762 = vsel %vm390, %v3725, 0.0
      %v3763 = vsel %vm391, %v3741, 0.0
      %v3764 = vsel %vm390, %v3726, 0.0
      %v3765 = vsel %vm391, %v3742, 0.0
      %v3766 = vsel %vm390, %v3727, 0.0
      %v3767 = vsel %vm391, %v3743, 0.0
      %v3768 = vsel %vm390, %v3728, 0.0
      %v3769 = vsel %vm391, %v3744, 0.0
      %v3770 = vsel %vm390, %v3729, 0.0
      %v3771 = vsel %vm391, %v3745, 0.0
      %v3772 = vsel %vm390, %v3730, 0.0
      %v3773 = vsel %vm391, %v3746, 0.0
      %v3774 = vsel %vm390, %v3731, 0.0
      %v3775 = vsel %vm391, %v3747, 0.0
      %v3776 = vsel %vm390, %v3732, 0.0
      %v3777 = vsel %vm391, %v3748, 0.0
      %v3778 = vsel %vm390, %v3733, 0.0
      %v3779 = vsel %vm391, %v3749, 0.0
      %v3780 = vsel %vm390, %v3734, 0.0
      %v3781 = vsel %vm391, %v3750, 0.0
      %v3782 = vsel %vm390, %v3735, 0.0
      %v3783 = vsel %vm391, %v3751, 0.0
      %v3784 = vlaneseq
      %v3785 = vshrl.u32 %v3784, 7
      %v3786 = vsub.s32 0, %v3785
      %v3787 = vrot.slane %v3589, %v3786
      %v3788 = vmul.f32 %v3656, %v3787
      %v3789 = vmul.f32 %v3657, %v3787
      %v3790 = vmul.f32 %v3658, %v3787
      %v3791 = vmul.f32 %v3659, %v3787
      %v3792 = vmul.f32 %v3660, %v3787
      %v3793 = vmul.f32 %v3661, %v3787
      %v3794 = vmul.f32 %v3662, %v3787
      %v3795 = vmul.f32 %v3663, %v3787
      %v3796 = vmul.f32 %v3664, %v3787
      %v3797 = vmul.f32 %v3665, %v3787
      %v3798 = vmul.f32 %v3666, %v3787
      %v3799 = vmul.f32 %v3667, %v3787
      %v3800 = vmul.f32 %v3668, %v3787
      %v3801 = vmul.f32 %v3669, %v3787
      %v3802 = vmul.f32 %v3670, %v3787
      %v3803 = vmul.f32 %v3671, %v3787
      %v3804 = vmul.f32 %v3672, %v3787
      %v3805 = vmul.f32 %v3673, %v3787
      %v3806 = vmul.f32 %v3674, %v3787
      %v3807 = vmul.f32 %v3675, %v3787
      %v3808 = vmul.f32 %v3676, %v3787
      %v3809 = vmul.f32 %v3677, %v3787
      %v3810 = vmul.f32 %v3678, %v3787
      %v3811 = vmul.f32 %v3679, %v3787
      %v3812 = vmul.f32 %v3680, %v3787
      %v3813 = vmul.f32 %v3681, %v3787
      %v3814 = vmul.f32 %v3682, %v3787
      %v3815 = vmul.f32 %v3683, %v3787
      %v3816 = vmul.f32 %v3684, %v3787
      %v3817 = vmul.f32 %v3685, %v3787
      %v3818 = vlaneseq
      %v3819 = vshrl.u32 %v3818, 7
      %v3820 = vsub.s32 1, %v3819
      %v3821 = vrot.slane %v3589, %v3820
      %v3822 = vmul.f32 %v3557, %v3821
      %v3823 = vmul.f32 %v3558, %v3821
      %v3824 = vmul.f32 %v3559, %v3821
      %v3825 = vmul.f32 %v3560, %v3821
      %v3826 = vmul.f32 %v3561, %v3821
      %v3827 = vmul.f32 %v3562, %v3821
      %v3828 = vmul.f32 %v3563, %v3821
      %v3829 = vmul.f32 %v3564, %v3821
      %v3830 = vmul.f32 %v3565, %v3821
      %v3831 = vmul.f32 %v3566, %v3821
      %v3832 = vmul.f32 %v3567, %v3821
      %v3833 = vmul.f32 %v3568, %v3821
      %v3834 = vmul.f32 %v3569, %v3821
      %v3835 = vmul.f32 %v3570, %v3821
      %v3836 = vmul.f32 %v3571, %v3821
      %v3837 = vmul.f32 %v3572, %v3821
      %v3838 = vmul.f32 %v3573, %v3821
      %v3839 = vmul.f32 %v3574, %v3821
      %v3840 = vmul.f32 %v3575, %v3821
      %v3841 = vmul.f32 %v3576, %v3821
      %v3842 = vmul.f32 %v3577, %v3821
      %v3843 = vmul.f32 %v3578, %v3821
      %v3844 = vmul.f32 %v3579, %v3821
      %v3845 = vmul.f32 %v3580, %v3821
      %v3846 = vmul.f32 %v3581, %v3821
      %v3847 = vmul.f32 %v3582, %v3821
      %v3848 = vmul.f32 %v3583, %v3821
      %v3849 = vmul.f32 %v3584, %v3821
      %v3850 = vmul.f32 %v3585, %v3821
      %v3851 = vmul.f32 %v3586, %v3821
      %v3852 = vadd.f32 %v3788, %v3822
      %v3853 = vadd.f32 %v3789, %v3823
      %v3854 = vadd.f32 %v3790, %v3824
      %v3855 = vadd.f32 %v3791, %v3825
      %v3856 = vadd.f32 %v3792, %v3826
      %v3857 = vadd.f32 %v3793, %v3827
      %v3858 = vadd.f32 %v3794, %v3828
      %v3859 = vadd.f32 %v3795, %v3829
      %v3860 = vadd.f32 %v3796, %v3830
      %v3861 = vadd.f32 %v3797, %v3831
      %v3862 = vadd.f32 %v3798, %v3832
      %v3863 = vadd.f32 %v3799, %v3833
      %v3864 = vadd.f32 %v3800, %v3834
      %v3865 = vadd.f32 %v3801, %v3835
      %v3866 = vadd.f32 %v3802, %v3836
      %v3867 = vadd.f32 %v3803, %v3837
      %v3868 = vadd.f32 %v3804, %v3838
      %v3869 = vadd.f32 %v3805, %v3839
      %v3870 = vadd.f32 %v3806, %v3840
      %v3871 = vadd.f32 %v3807, %v3841
      %v3872 = vadd.f32 %v3808, %v3842
      %v3873 = vadd.f32 %v3809, %v3843
      %v3874 = vadd.f32 %v3810, %v3844
      %v3875 = vadd.f32 %v3811, %v3845
      %v3876 = vadd.f32 %v3812, %v3846
      %v3877 = vadd.f32 %v3813, %v3847
      %v3878 = vadd.f32 %v3814, %v3848
      %v3879 = vadd.f32 %v3815, %v3849
      %v3880 = vadd.f32 %v3816, %v3850
      %v3881 = vadd.f32 %v3817, %v3851
      %v3882 = vlaneseq
      %v3883 = vshrl.u32 %v3882, 7
      %v3884 = vsub.s32 2, %v3883
      %v3885 = vrot.slane %v3589, %v3884
      %v3886 = vmul.f32 %v3752, %v3885
      %v3887 = vmul.f32 %v3753, %v3885
      %v3888 = vmul.f32 %v3754, %v3885
      %v3889 = vmul.f32 %v3755, %v3885
      %v3890 = vmul.f32 %v3756, %v3885
      %v3891 = vmul.f32 %v3757, %v3885
      %v3892 = vmul.f32 %v3758, %v3885
      %v3893 = vmul.f32 %v3759, %v3885
      %v3894 = vmul.f32 %v3760, %v3885
      %v3895 = vmul.f32 %v3761, %v3885
      %v3896 = vmul.f32 %v3762, %v3885
      %v3897 = vmul.f32 %v3763, %v3885
      %v3898 = vmul.f32 %v3764, %v3885
      %v3899 = vmul.f32 %v3765, %v3885
      %v3900 = vmul.f32 %v3766, %v3885
      %v3901 = vmul.f32 %v3767, %v3885
      %v3902 = vmul.f32 %v3768, %v3885
      %v3903 = vmul.f32 %v3769, %v3885
      %v3904 = vmul.f32 %v3770, %v3885
      %v3905 = vmul.f32 %v3771, %v3885
      %v3906 = vmul.f32 %v3772, %v3885
      %v3907 = vmul.f32 %v3773, %v3885
      %v3908 = vmul.f32 %v3774, %v3885
      %v3909 = vmul.f32 %v3775, %v3885
      %v3910 = vmul.f32 %v3776, %v3885
      %v3911 = vmul.f32 %v3777, %v3885
      %v3912 = vmul.f32 %v3778, %v3885
      %v3913 = vmul.f32 %v3779, %v3885
      %v3914 = vmul.f32 %v3780, %v3885
      %v3915 = vmul.f32 %v3781, %v3885
      %v3916 = vadd.f32 %v3852, %v3886
      %v3917 = vadd.f32 %v3853, %v3887
      %v3918 = vadd.f32 %v3854, %v3888
      %v3919 = vadd.f32 %v3855, %v3889
      %v3920 = vadd.f32 %v3856, %v3890
      %v3921 = vadd.f32 %v3857, %v3891
      %v3922 = vadd.f32 %v3858, %v3892
      %v3923 = vadd.f32 %v3859, %v3893
      %v3924 = vadd.f32 %v3860, %v3894
      %v3925 = vadd.f32 %v3861, %v3895
      %v3926 = vadd.f32 %v3862, %v3896
      %v3927 = vadd.f32 %v3863, %v3897
      %v3928 = vadd.f32 %v3864, %v3898
      %v3929 = vadd.f32 %v3865, %v3899
      %v3930 = vadd.f32 %v3866, %v3900
      %v3931 = vadd.f32 %v3867, %v3901
      %v3932 = vadd.f32 %v3868, %v3902
      %v3933 = vadd.f32 %v3869, %v3903
      %v3934 = vadd.f32 %v3870, %v3904
      %v3935 = vadd.f32 %v3871, %v3905
      %v3936 = vadd.f32 %v3872, %v3906
      %v3937 = vadd.f32 %v3873, %v3907
      %v3938 = vadd.f32 %v3874, %v3908
      %v3939 = vadd.f32 %v3875, %v3909
      %v3940 = vadd.f32 %v3876, %v3910
      %v3941 = vadd.f32 %v3877, %v3911
      %v3942 = vadd.f32 %v3878, %v3912
      %v3943 = vadd.f32 %v3879, %v3913
      %v3944 = vadd.f32 %v3880, %v3914
      %v3945 = vadd.f32 %v3881, %v3915
      %v3946 = vlaneseq
      %v3947 = vshrl.u32 %v3946, 7
      %v3948 = vsub.s32 0, %v3947
      %v3949 = vrot.slane %v3590, %v3948
      %v3950 = vmul.f32 %v3656, %v3949
      %v3951 = vmul.f32 %v3657, %v3949
      %v3952 = vmul.f32 %v3658, %v3949
      %v3953 = vmul.f32 %v3659, %v3949
      %v3954 = vmul.f32 %v3660, %v3949
      %v3955 = vmul.f32 %v3661, %v3949
      %v3956 = vmul.f32 %v3662, %v3949
      %v3957 = vmul.f32 %v3663, %v3949
      %v3958 = vmul.f32 %v3664, %v3949
      %v3959 = vmul.f32 %v3665, %v3949
      %v3960 = vmul.f32 %v3666, %v3949
      %v3961 = vmul.f32 %v3667, %v3949
      %v3962 = vmul.f32 %v3668, %v3949
      %v3963 = vmul.f32 %v3669, %v3949
      %v3964 = vmul.f32 %v3670, %v3949
      %v3965 = vmul.f32 %v3671, %v3949
      %v3966 = vmul.f32 %v3672, %v3949
      %v3967 = vmul.f32 %v3673, %v3949
      %v3968 = vmul.f32 %v3674, %v3949
      %v3969 = vmul.f32 %v3675, %v3949
      %v3970 = vmul.f32 %v3676, %v3949
      %v3971 = vmul.f32 %v3677, %v3949
      %v3972 = vmul.f32 %v3678, %v3949
      %v3973 = vmul.f32 %v3679, %v3949
      %v3974 = vmul.f32 %v3680, %v3949
      %v3975 = vmul.f32 %v3681, %v3949
      %v3976 = vmul.f32 %v3682, %v3949
      %v3977 = vmul.f32 %v3683, %v3949
      %v3978 = vmul.f32 %v3684, %v3949
      %v3979 = vmul.f32 %v3685, %v3949
      %v3980 = vmul.f32 %v3686, %v3949
      %v3981 = vmul.f32 %v3687, %v3949
      %v3982 = vlaneseq
      %v3983 = vshrl.u32 %v3982, 7
      %v3984 = vsub.s32 1, %v3983
      %v3985 = vrot.slane %v3590, %v3984
      %v3986 = vmul.f32 %v3557, %v3985
      %v3987 = vmul.f32 %v3558, %v3985
      %v3988 = vmul.f32 %v3559, %v3985
      %v3989 = vmul.f32 %v3560, %v3985
      %v3990 = vmul.f32 %v3561, %v3985
      %v3991 = vmul.f32 %v3562, %v3985
      %v3992 = vmul.f32 %v3563, %v3985
      %v3993 = vmul.f32 %v3564, %v3985
      %v3994 = vmul.f32 %v3565, %v3985
      %v3995 = vmul.f32 %v3566, %v3985
      %v3996 = vmul.f32 %v3567, %v3985
      %v3997 = vmul.f32 %v3568, %v3985
      %v3998 = vmul.f32 %v3569, %v3985
      %v3999 = vmul.f32 %v3570, %v3985
      %v4000 = vmul.f32 %v3571, %v3985
      %v4001 = vmul.f32 %v3572, %v3985
      %v4002 = vmul.f32 %v3573, %v3985
      %v4003 = vmul.f32 %v3574, %v3985
      %v4004 = vmul.f32 %v3575, %v3985
      %v4005 = vmul.f32 %v3576, %v3985
      %v4006 = vmul.f32 %v3577, %v3985
      %v4007 = vmul.f32 %v3578, %v3985
      %v4008 = vmul.f32 %v3579, %v3985
      %v4009 = vmul.f32 %v3580, %v3985
      %v4010 = vmul.f32 %v3581, %v3985
      %v4011 = vmul.f32 %v3582, %v3985
      %v4012 = vmul.f32 %v3583, %v3985
      %v4013 = vmul.f32 %v3584, %v3985
      %v4014 = vmul.f32 %v3585, %v3985
      %v4015 = vmul.f32 %v3586, %v3985
      %v4016 = vmul.f32 %v3587, %v3985
      %v4017 = vmul.f32 %v3588, %v3985
      %v4018 = vadd.f32 %v3950, %v3986
      %v4019 = vadd.f32 %v3951, %v3987
      %v4020 = vadd.f32 %v3952, %v3988
      %v4021 = vadd.f32 %v3953, %v3989
      %v4022 = vadd.f32 %v3954, %v3990
      %v4023 = vadd.f32 %v3955, %v3991
      %v4024 = vadd.f32 %v3956, %v3992
      %v4025 = vadd.f32 %v3957, %v3993
      %v4026 = vadd.f32 %v3958, %v3994
      %v4027 = vadd.f32 %v3959, %v3995
      %v4028 = vadd.f32 %v3960, %v3996
      %v4029 = vadd.f32 %v3961, %v3997
      %v4030 = vadd.f32 %v3962, %v3998
      %v4031 = vadd.f32 %v3963, %v3999
      %v4032 = vadd.f32 %v3964, %v4000
      %v4033 = vadd.f32 %v3965, %v4001
      %v4034 = vadd.f32 %v3966, %v4002
      %v4035 = vadd.f32 %v3967, %v4003
      %v4036 = vadd.f32 %v3968, %v4004
      %v4037 = vadd.f32 %v3969, %v4005
      %v4038 = vadd.f32 %v3970, %v4006
      %v4039 = vadd.f32 %v3971, %v4007
      %v4040 = vadd.f32 %v3972, %v4008
      %v4041 = vadd.f32 %v3973, %v4009
      %v4042 = vadd.f32 %v3974, %v4010
      %v4043 = vadd.f32 %v3975, %v4011
      %v4044 = vadd.f32 %v3976, %v4012
      %v4045 = vadd.f32 %v3977, %v4013
      %v4046 = vadd.f32 %v3978, %v4014
      %v4047 = vadd.f32 %v3979, %v4015
      %v4048 = vadd.f32 %v3980, %v4016
      %v4049 = vadd.f32 %v3981, %v4017
      %v4050 = vlaneseq
      %v4051 = vshrl.u32 %v4050, 7
      %v4052 = vsub.s32 2, %v4051
      %v4053 = vrot.slane %v3590, %v4052
      %v4054 = vmul.f32 %v3752, %v4053
      %v4055 = vmul.f32 %v3753, %v4053
      %v4056 = vmul.f32 %v3754, %v4053
      %v4057 = vmul.f32 %v3755, %v4053
      %v4058 = vmul.f32 %v3756, %v4053
      %v4059 = vmul.f32 %v3757, %v4053
      %v4060 = vmul.f32 %v3758, %v4053
      %v4061 = vmul.f32 %v3759, %v4053
      %v4062 = vmul.f32 %v3760, %v4053
      %v4063 = vmul.f32 %v3761, %v4053
      %v4064 = vmul.f32 %v3762, %v4053
      %v4065 = vmul.f32 %v3763, %v4053
      %v4066 = vmul.f32 %v3764, %v4053
      %v4067 = vmul.f32 %v3765, %v4053
      %v4068 = vmul.f32 %v3766, %v4053
      %v4069 = vmul.f32 %v3767, %v4053
      %v4070 = vmul.f32 %v3768, %v4053
      %v4071 = vmul.f32 %v3769, %v4053
      %v4072 = vmul.f32 %v3770, %v4053
      %v4073 = vmul.f32 %v3771, %v4053
      %v4074 = vmul.f32 %v3772, %v4053
      %v4075 = vmul.f32 %v3773, %v4053
      %v4076 = vmul.f32 %v3774, %v4053
      %v4077 = vmul.f32 %v3775, %v4053
      %v4078 = vmul.f32 %v3776, %v4053
      %v4079 = vmul.f32 %v3777, %v4053
      %v4080 = vmul.f32 %v3778, %v4053
      %v4081 = vmul.f32 %v3779, %v4053
      %v4082 = vmul.f32 %v3780, %v4053
      %v4083 = vmul.f32 %v3781, %v4053
      %v4084 = vmul.f32 %v3782, %v4053
      %v4085 = vmul.f32 %v3783, %v4053
      %v4086 = vadd.f32 %v4018, %v4054
      %v4087 = vadd.f32 %v4019, %v4055
      %v4088 = vadd.f32 %v4020, %v4056
      %v4089 = vadd.f32 %v4021, %v4057
      %v4090 = vadd.f32 %v4022, %v4058
      %v4091 = vadd.f32 %v4023, %v4059
      %v4092 = vadd.f32 %v4024, %v4060
      %v4093 = vadd.f32 %v4025, %v4061
      %v4094 = vadd.f32 %v4026, %v4062
      %v4095 = vadd.f32 %v4027, %v4063
      %v4096 = vadd.f32 %v4028, %v4064
      %v4097 = vadd.f32 %v4029, %v4065
      %v4098 = vadd.f32 %v4030, %v4066
      %v4099 = vadd.f32 %v4031, %v4067
      %v4100 = vadd.f32 %v4032, %v4068
      %v4101 = vadd.f32 %v4033, %v4069
      %v4102 = vadd.f32 %v4034, %v4070
      %v4103 = vadd.f32 %v4035, %v4071
      %v4104 = vadd.f32 %v4036, %v4072
      %v4105 = vadd.f32 %v4037, %v4073
      %v4106 = vadd.f32 %v4038, %v4074
      %v4107 = vadd.f32 %v4039, %v4075
      %v4108 = vadd.f32 %v4040, %v4076
      %v4109 = vadd.f32 %v4041, %v4077
      %v4110 = vadd.f32 %v4042, %v4078
      %v4111 = vadd.f32 %v4043, %v4079
      %v4112 = vadd.f32 %v4044, %v4080
      %v4113 = vadd.f32 %v4045, %v4081
      %v4114 = vadd.f32 %v4046, %v4082
      %v4115 = vadd.f32 %v4047, %v4083
      %v4116 = vadd.f32 %v4048, %v4084
      %v4117 = vadd.f32 %v4049, %v4085
      %v4118 = vlaneseq
      %v4119 = vshrl.u32 %v4118, 7
      %v4120 = vsub.s32 0, %v4119
      %v4121 = vrot.slane %v3591, %v4120
      %v4122 = vmul.f32 %v3658, %v4121
      %v4123 = vmul.f32 %v3659, %v4121
      %v4124 = vmul.f32 %v3660, %v4121
      %v4125 = vmul.f32 %v3661, %v4121
      %v4126 = vmul.f32 %v3662, %v4121
      %v4127 = vmul.f32 %v3663, %v4121
      %v4128 = vmul.f32 %v3664, %v4121
      %v4129 = vmul.f32 %v3665, %v4121
      %v4130 = vmul.f32 %v3666, %v4121
      %v4131 = vmul.f32 %v3667, %v4121
      %v4132 = vmul.f32 %v3668, %v4121
      %v4133 = vmul.f32 %v3669, %v4121
      %v4134 = vmul.f32 %v3670, %v4121
      %v4135 = vmul.f32 %v3671, %v4121
      %v4136 = vmul.f32 %v3672, %v4121
      %v4137 = vmul.f32 %v3673, %v4121
      %v4138 = vmul.f32 %v3674, %v4121
      %v4139 = vmul.f32 %v3675, %v4121
      %v4140 = vmul.f32 %v3676, %v4121
      %v4141 = vmul.f32 %v3677, %v4121
      %v4142 = vmul.f32 %v3678, %v4121
      %v4143 = vmul.f32 %v3679, %v4121
      %v4144 = vmul.f32 %v3680, %v4121
      %v4145 = vmul.f32 %v3681, %v4121
      %v4146 = vmul.f32 %v3682, %v4121
      %v4147 = vmul.f32 %v3683, %v4121
      %v4148 = vmul.f32 %v3684, %v4121
      %v4149 = vmul.f32 %v3685, %v4121
      %v4150 = vmul.f32 %v3686, %v4121
      %v4151 = vmul.f32 %v3687, %v4121
      %v4152 = vlaneseq
      %v4153 = vshrl.u32 %v4152, 7
      %v4154 = vsub.s32 1, %v4153
      %v4155 = vrot.slane %v3591, %v4154
      %v4156 = vmul.f32 %v3559, %v4155
      %v4157 = vmul.f32 %v3560, %v4155
      %v4158 = vmul.f32 %v3561, %v4155
      %v4159 = vmul.f32 %v3562, %v4155
      %v4160 = vmul.f32 %v3563, %v4155
      %v4161 = vmul.f32 %v3564, %v4155
      %v4162 = vmul.f32 %v3565, %v4155
      %v4163 = vmul.f32 %v3566, %v4155
      %v4164 = vmul.f32 %v3567, %v4155
      %v4165 = vmul.f32 %v3568, %v4155
      %v4166 = vmul.f32 %v3569, %v4155
      %v4167 = vmul.f32 %v3570, %v4155
      %v4168 = vmul.f32 %v3571, %v4155
      %v4169 = vmul.f32 %v3572, %v4155
      %v4170 = vmul.f32 %v3573, %v4155
      %v4171 = vmul.f32 %v3574, %v4155
      %v4172 = vmul.f32 %v3575, %v4155
      %v4173 = vmul.f32 %v3576, %v4155
      %v4174 = vmul.f32 %v3577, %v4155
      %v4175 = vmul.f32 %v3578, %v4155
      %v4176 = vmul.f32 %v3579, %v4155
      %v4177 = vmul.f32 %v3580, %v4155
      %v4178 = vmul.f32 %v3581, %v4155
      %v4179 = vmul.f32 %v3582, %v4155
      %v4180 = vmul.f32 %v3583, %v4155
      %v4181 = vmul.f32 %v3584, %v4155
      %v4182 = vmul.f32 %v3585, %v4155
      %v4183 = vmul.f32 %v3586, %v4155
      %v4184 = vmul.f32 %v3587, %v4155
      %v4185 = vmul.f32 %v3588, %v4155
      %v4186 = vadd.f32 %v4122, %v4156
      %v4187 = vadd.f32 %v4123, %v4157
      %v4188 = vadd.f32 %v4124, %v4158
      %v4189 = vadd.f32 %v4125, %v4159
      %v4190 = vadd.f32 %v4126, %v4160
      %v4191 = vadd.f32 %v4127, %v4161
      %v4192 = vadd.f32 %v4128, %v4162
      %v4193 = vadd.f32 %v4129, %v4163
      %v4194 = vadd.f32 %v4130, %v4164
      %v4195 = vadd.f32 %v4131, %v4165
      %v4196 = vadd.f32 %v4132, %v4166
      %v4197 = vadd.f32 %v4133, %v4167
      %v4198 = vadd.f32 %v4134, %v4168
      %v4199 = vadd.f32 %v4135, %v4169
      %v4200 = vadd.f32 %v4136, %v4170
      %v4201 = vadd.f32 %v4137, %v4171
      %v4202 = vadd.f32 %v4138, %v4172
      %v4203 = vadd.f32 %v4139, %v4173
      %v4204 = vadd.f32 %v4140, %v4174
      %v4205 = vadd.f32 %v4141, %v4175
      %v4206 = vadd.f32 %v4142, %v4176
      %v4207 = vadd.f32 %v4143, %v4177
      %v4208 = vadd.f32 %v4144, %v4178
      %v4209 = vadd.f32 %v4145, %v4179
      %v4210 = vadd.f32 %v4146, %v4180
      %v4211 = vadd.f32 %v4147, %v4181
      %v4212 = vadd.f32 %v4148, %v4182
      %v4213 = vadd.f32 %v4149, %v4183
      %v4214 = vadd.f32 %v4150, %v4184
      %v4215 = vadd.f32 %v4151, %v4185
      %v4216 = vlaneseq
      %v4217 = vshrl.u32 %v4216, 7
      %v4218 = vsub.s32 2, %v4217
      %v4219 = vrot.slane %v3591, %v4218
      %v4220 = vmul.f32 %v3754, %v4219
      %v4221 = vmul.f32 %v3755, %v4219
      %v4222 = vmul.f32 %v3756, %v4219
      %v4223 = vmul.f32 %v3757, %v4219
      %v4224 = vmul.f32 %v3758, %v4219
      %v4225 = vmul.f32 %v3759, %v4219
      %v4226 = vmul.f32 %v3760, %v4219
      %v4227 = vmul.f32 %v3761, %v4219
      %v4228 = vmul.f32 %v3762, %v4219
      %v4229 = vmul.f32 %v3763, %v4219
      %v4230 = vmul.f32 %v3764, %v4219
      %v4231 = vmul.f32 %v3765, %v4219
      %v4232 = vmul.f32 %v3766, %v4219
      %v4233 = vmul.f32 %v3767, %v4219
      %v4234 = vmul.f32 %v3768, %v4219
      %v4235 = vmul.f32 %v3769, %v4219
      %v4236 = vmul.f32 %v3770, %v4219
      %v4237 = vmul.f32 %v3771, %v4219
      %v4238 = vmul.f32 %v3772, %v4219
      %v4239 = vmul.f32 %v3773, %v4219
      %v4240 = vmul.f32 %v3774, %v4219
      %v4241 = vmul.f32 %v3775, %v4219
      %v4242 = vmul.f32 %v3776, %v4219
      %v4243 = vmul.f32 %v3777, %v4219
      %v4244 = vmul.f32 %v3778, %v4219
      %v4245 = vmul.f32 %v3779, %v4219
      %v4246 = vmul.f32 %v3780, %v4219
      %v4247 = vmul.f32 %v3781, %v4219
      %v4248 = vmul.f32 %v3782, %v4219
      %v4249 = vmul.f32 %v3783, %v4219
      %v4250 = vadd.f32 %v4186, %v4220
      %v4251 = vadd.f32 %v4187, %v4221
      %v4252 = vadd.f32 %v4188, %v4222
      %v4253 = vadd.f32 %v4189, %v4223
      %v4254 = vadd.f32 %v4190, %v4224
      %v4255 = vadd.f32 %v4191, %v4225
      %v4256 = vadd.f32 %v4192, %v4226
      %v4257 = vadd.f32 %v4193, %v4227
      %v4258 = vadd.f32 %v4194, %v4228
      %v4259 = vadd.f32 %v4195, %v4229
      %v4260 = vadd.f32 %v4196, %v4230
      %v4261 = vadd.f32 %v4197, %v4231
      %v4262 = vadd.f32 %v4198, %v4232
      %v4263 = vadd.f32 %v4199, %v4233
      %v4264 = vadd.f32 %v4200, %v4234
      %v4265 = vadd.f32 %v4201, %v4235
      %v4266 = vadd.f32 %v4202, %v4236
      %v4267 = vadd.f32 %v4203, %v4237
      %v4268 = vadd.f32 %v4204, %v4238
      %v4269 = vadd.f32 %v4205, %v4239
      %v4270 = vadd.f32 %v4206, %v4240
      %v4271 = vadd.f32 %v4207, %v4241
      %v4272 = vadd.f32 %v4208, %v4242
      %v4273 = vadd.f32 %v4209, %v4243
      %v4274 = vadd.f32 %v4210, %v4244
      %v4275 = vadd.f32 %v4211, %v4245
      %v4276 = vadd.f32 %v4212, %v4246
      %v4277 = vadd.f32 %v4213, %v4247
      %v4278 = vadd.f32 %v4214, %v4248
      %v4279 = vadd.f32 %v4215, %v4249
      %v4280 = vadd.f32 %v4086, 0.0
      %v4281 = vadd.f32 %v4087, 0.0
      %v4282 = vadd.f32 %v3916, %v4088
      %v4283 = vadd.f32 %v3917, %v4089
      %v4284 = vadd.f32 %v3918, %v4090
      %v4285 = vadd.f32 %v3919, %v4091
      %v4286 = vadd.f32 %v3920, %v4092
      %v4287 = vadd.f32 %v3921, %v4093
      %v4288 = vadd.f32 %v3922, %v4094
      %v4289 = vadd.f32 %v3923, %v4095
      %v4290 = vadd.f32 %v3924, %v4096
      %v4291 = vadd.f32 %v3925, %v4097
      %v4292 = vadd.f32 %v3926, %v4098
      %v4293 = vadd.f32 %v3927, %v4099
      %v4294 = vadd.f32 %v3928, %v4100
      %v4295 = vadd.f32 %v3929, %v4101
      %v4296 = vadd.f32 %v3930, %v4102
      %v4297 = vadd.f32 %v3931, %v4103
      %v4298 = vadd.f32 %v3932, %v4104
      %v4299 = vadd.f32 %v3933, %v4105
      %v4300 = vadd.f32 %v3934, %v4106
      %v4301 = vadd.f32 %v3935, %v4107
      %v4302 = vadd.f32 %v3936, %v4108
      %v4303 = vadd.f32 %v3937, %v4109
      %v4304 = vadd.f32 %v3938, %v4110
      %v4305 = vadd.f32 %v3939, %v4111
      %v4306 = vadd.f32 %v3940, %v4112
      %v4307 = vadd.f32 %v3941, %v4113
      %v4308 = vadd.f32 %v3942, %v4114
      %v4309 = vadd.f32 %v3943, %v4115
      %v4310 = vadd.f32 %v3944, %v4116
      %v4311 = vadd.f32 %v3945, %v4117
      %v4312 = vadd.f32 %v4280, %v4250
      %v4313 = vadd.f32 %v4281, %v4251
      %v4314 = vadd.f32 %v4282, %v4252
      %v4315 = vadd.f32 %v4283, %v4253
      %v4316 = vadd.f32 %v4284, %v4254
      %v4317 = vadd.f32 %v4285, %v4255
      %v4318 = vadd.f32 %v4286, %v4256
      %v4319 = vadd.f32 %v4287, %v4257
      %v4320 = vadd.f32 %v4288, %v4258
      %v4321 = vadd.f32 %v4289, %v4259
      %v4322 = vadd.f32 %v4290, %v4260
      %v4323 = vadd.f32 %v4291, %v4261
      %v4324 = vadd.f32 %v4292, %v4262
      %v4325 = vadd.f32 %v4293, %v4263
      %v4326 = vadd.f32 %v4294, %v4264
      %v4327 = vadd.f32 %v4295, %v4265
      %v4328 = vadd.f32 %v4296, %v4266
      %v4329 = vadd.f32 %v4297, %v4267
      %v4330 = vadd.f32 %v4298, %v4268
      %v4331 = vadd.f32 %v4299, %v4269
      %v4332 = vadd.f32 %v4300, %v4270
      %v4333 = vadd.f32 %v4301, %v4271
      %v4334 = vadd.f32 %v4302, %v4272
      %v4335 = vadd.f32 %v4303, %v4273
      %v4336 = vadd.f32 %v4304, %v4274
      %v4337 = vadd.f32 %v4305, %v4275
      %v4338 = vadd.f32 %v4306, %v4276
      %v4339 = vadd.f32 %v4307, %v4277
      %v4340 = vadd.f32 %v4308, %v4278
      %v4341 = vadd.f32 %v4309, %v4279
      %v4342 = vadd.f32 %v4310, 0.0
      %v4343 = vadd.f32 %v4311, 0.0
      %vm4344 = vcmp.gt.f32.partialorder %v4312, 0.0
      %vm4345 = vcmp.gt.f32.partialorder %v4313, 0.0
      %vm4346 = vcmp.gt.f32.partialorder %v4314, 0.0
      %vm4347 = vcmp.gt.f32.partialorder %v4315, 0.0
      %vm4348 = vcmp.gt.f32.partialorder %v4316, 0.0
      %vm4349 = vcmp.gt.f32.partialorder %v4317, 0.0
      %vm4350 = vcmp.gt.f32.partialorder %v4318, 0.0
      %vm4351 = vcmp.gt.f32.partialorder %v4319, 0.0
      %vm4352 = vcmp.gt.f32.partialorder %v4320, 0.0
      %vm4353 = vcmp.gt.f32.partialorder %v4321, 0.0
      %vm4354 = vcmp.gt.f32.partialorder %v4322, 0.0
      %vm4355 = vcmp.gt.f32.partialorder %v4323, 0.0
      %vm4356 = vcmp.gt.f32.partialorder %v4324, 0.0
      %vm4357 = vcmp.gt.f32.partialorder %v4325, 0.0
      %vm4358 = vcmp.gt.f32.partialorder %v4326, 0.0
      %vm4359 = vcmp.gt.f32.partialorder %v4327, 0.0
      %vm4360 = vcmp.gt.f32.partialorder %v4328, 0.0
      %vm4361 = vcmp.gt.f32.partialorder %v4329, 0.0
      %vm4362 = vcmp.gt.f32.partialorder %v4330, 0.0
      %vm4363 = vcmp.gt.f32.partialorder %v4331, 0.0
      %vm4364 = vcmp.gt.f32.partialorder %v4332, 0.0
      %vm4365 = vcmp.gt.f32.partialorder %v4333, 0.0
      %vm4366 = vcmp.gt.f32.partialorder %v4334, 0.0
      %vm4367 = vcmp.gt.f32.partialorder %v4335, 0.0
      %vm4368 = vcmp.gt.f32.partialorder %v4336, 0.0
      %vm4369 = vcmp.gt.f32.partialorder %v4337, 0.0
      %vm4370 = vcmp.gt.f32.partialorder %v4338, 0.0
      %vm4371 = vcmp.gt.f32.partialorder %v4339, 0.0
      %vm4372 = vcmp.gt.f32.partialorder %v4340, 0.0
      %vm4373 = vcmp.gt.f32.partialorder %v4341, 0.0
      %vm4374 = vcmp.gt.f32.partialorder %v4342, 0.0
      %vm4375 = vcmp.gt.f32.partialorder %v4343, 0.0
      %v4376 = vmul.f32 %v4312, 1.442695
      %v4377 = vpow.pop %v4376
      %v4378 = vmul.f32 %v4313, 1.442695
      %v4379 = vpow.pop %v4378
      %v4380 = vmul.f32 %v4314, 1.442695
      %v4381 = vpow.pop %v4380
      %v4382 = vmul.f32 %v4315, 1.442695
      %v4383 = vpow.pop %v4382
      %v4384 = vmul.f32 %v4316, 1.442695
      %v4385 = vpow.pop %v4384
      %v4386 = vmul.f32 %v4317, 1.442695
      %v4387 = vpow.pop %v4386
      %v4388 = vmul.f32 %v4318, 1.442695
      %v4389 = vpow.pop %v4388
      %v4390 = vmul.f32 %v4319, 1.442695
      %v4391 = vpow.pop %v4390
      %v4392 = vmul.f32 %v4320, 1.442695
      %v4393 = vpow.pop %v4392
      %v4394 = vmul.f32 %v4321, 1.442695
      %v4395 = vpow.pop %v4394
      %v4396 = vmul.f32 %v4322, 1.442695
      %v4397 = vpow.pop %v4396
      %v4398 = vmul.f32 %v4323, 1.442695
      %v4399 = vpow.pop %v4398
      %v4400 = vmul.f32 %v4324, 1.442695
      %v4401 = vpow.pop %v4400
      %v4402 = vmul.f32 %v4325, 1.442695
      %v4403 = vpow.pop %v4402
      %v4404 = vmul.f32 %v4326, 1.442695
      %v4405 = vpow.pop %v4404
      %v4406 = vmul.f32 %v4327, 1.442695
      %v4407 = vpow.pop %v4406
      %v4408 = vmul.f32 %v4328, 1.442695
      %v4409 = vpow.pop %v4408
      %v4410 = vmul.f32 %v4329, 1.442695
      %v4411 = vpow.pop %v4410
      %v4412 = vmul.f32 %v4330, 1.442695
      %v4413 = vpow.pop %v4412
      %v4414 = vmul.f32 %v4331, 1.442695
      %v4415 = vpow.pop %v4414
      %v4416 = vmul.f32 %v4332, 1.442695
      %v4417 = vpow.pop %v4416
      %v4418 = vmul.f32 %v4333, 1.442695
      %v4419 = vpow.pop %v4418
      %v4420 = vmul.f32 %v4334, 1.442695
      %v4421 = vpow.pop %v4420
      %v4422 = vmul.f32 %v4335, 1.442695
      %v4423 = vpow.pop %v4422
      %v4424 = vmul.f32 %v4336, 1.442695
      %v4425 = vpow.pop %v4424
      %v4426 = vmul.f32 %v4337, 1.442695
      %v4427 = vpow.pop %v4426
      %v4428 = vmul.f32 %v4338, 1.442695
      %v4429 = vpow.pop %v4428
      %v4430 = vmul.f32 %v4339, 1.442695
      %v4431 = vpow.pop %v4430
      %v4432 = vmul.f32 %v4340, 1.442695
      %v4433 = vpow.pop %v4432
      %v4434 = vmul.f32 %v4341, 1.442695
      %v4435 = vpow.pop %v4434
      %v4436 = vmul.f32 %v4342, 1.442695
      %v4437 = vpow.pop %v4436
      %v4438 = vmul.f32 %v4343, 1.442695
      %v4439 = vpow.pop %v4438
      %v4440 = vsub.f32 %v4377, 1.0
      %v4441 = vsub.f32 %v4379, 1.0
      %v4442 = vsub.f32 %v4381, 1.0
      %v4443 = vsub.f32 %v4383, 1.0
      %v4444 = vsub.f32 %v4385, 1.0
      %v4445 = vsub.f32 %v4387, 1.0
      %v4446 = vsub.f32 %v4389, 1.0
      %v4447 = vsub.f32 %v4391, 1.0
      %v4448 = vsub.f32 %v4393, 1.0
      %v4449 = vsub.f32 %v4395, 1.0
      %v4450 = vsub.f32 %v4397, 1.0
      %v4451 = vsub.f32 %v4399, 1.0
      %v4452 = vsub.f32 %v4401, 1.0
      %v4453 = vsub.f32 %v4403, 1.0
      %v4454 = vsub.f32 %v4405, 1.0
      %v4455 = vsub.f32 %v4407, 1.0
      %v4456 = vsub.f32 %v4409, 1.0
      %v4457 = vsub.f32 %v4411, 1.0
      %v4458 = vsub.f32 %v4413, 1.0
      %v4459 = vsub.f32 %v4415, 1.0
      %v4460 = vsub.f32 %v4417, 1.0
      %v4461 = vsub.f32 %v4419, 1.0
      %v4462 = vsub.f32 %v4421, 1.0
      %v4463 = vsub.f32 %v4423, 1.0
      %v4464 = vsub.f32 %v4425, 1.0
      %v4465 = vsub.f32 %v4427, 1.0
      %v4466 = vsub.f32 %v4429, 1.0
      %v4467 = vsub.f32 %v4431, 1.0
      %v4468 = vsub.f32 %v4433, 1.0
      %v4469 = vsub.f32 %v4435, 1.0
      %v4470 = vsub.f32 %v4437, 1.0
      %v4471 = vsub.f32 %v4439, 1.0
      %v4472 = vsel %vm4344, %v4312, %v4440
      %v4473 = vsel %vm4345, %v4313, %v4441
      %v4474 = vsel %vm4346, %v4314, %v4442
      %v4475 = vsel %vm4347, %v4315, %v4443
      %v4476 = vsel %vm4348, %v4316, %v4444
      %v4477 = vsel %vm4349, %v4317, %v4445
      %v4478 = vsel %vm4350, %v4318, %v4446
      %v4479 = vsel %vm4351, %v4319, %v4447
      %v4480 = vsel %vm4352, %v4320, %v4448
      %v4481 = vsel %vm4353, %v4321, %v4449
      %v4482 = vsel %vm4354, %v4322, %v4450
      %v4483 = vsel %vm4355, %v4323, %v4451
      %v4484 = vsel %vm4356, %v4324, %v4452
      %v4485 = vsel %vm4357, %v4325, %v4453
      %v4486 = vsel %vm4358, %v4326, %v4454
      %v4487 = vsel %vm4359, %v4327, %v4455
      %v4488 = vsel %vm4360, %v4328, %v4456
      %v4489 = vsel %vm4361, %v4329, %v4457
      %v4490 = vsel %vm4362, %v4330, %v4458
      %v4491 = vsel %vm4363, %v4331, %v4459
      %v4492 = vsel %vm4364, %v4332, %v4460
      %v4493 = vsel %vm4365, %v4333, %v4461
      %v4494 = vsel %vm4366, %v4334, %v4462
      %v4495 = vsel %vm4367, %v4335, %v4463
      %v4496 = vsel %vm4368, %v4336, %v4464
      %v4497 = vsel %vm4369, %v4337, %v4465
      %v4498 = vsel %vm4370, %v4338, %v4466
      %v4499 = vsel %vm4371, %v4339, %v4467
      %v4500 = vsel %vm4372, %v4340, %v4468
      %v4501 = vsel %vm4373, %v4341, %v4469
      %v4502 = vsel %vm4374, %v4342, %v4470
      %v4503 = vsel %vm4375, %v4343, %v4471
      %v4504 = vld [vmem:[%s8] sm:$0xff]
      %v4506 = vsel %vm1710, %v4472, 0
      %v4509 = vsel %vm1710, %v4473, 0
      %v4512 = vsel %vm1710, %v4474, 0
      %v4515 = vsel %vm1710, %v4475, 0
      %v4518 = vsel %vm1710, %v4476, 0
      %v4521 = vsel %vm1710, %v4477, 0
      %v4524 = vsel %vm1710, %v4478, 0
      %v4527 = vsel %vm1710, %v4479, 0
      %v4530 = vsel %vm1710, %v4480, 0
      %v4533 = vsel %vm1710, %v4481, 0
      %v4536 = vsel %vm1710, %v4482, 0
      %v4539 = vsel %vm1710, %v4483, 0
      %v4542 = vsel %vm1710, %v4484, 0
      %v4545 = vsel %vm1710, %v4485, 0
      %v4548 = vsel %vm1710, %v4486, 0
      %v4551 = vsel %vm1710, %v4487, 0
      %v4554 = vsel %vm1710, %v4488, 0
      %v4557 = vsel %vm1710, %v4489, 0
      %v4560 = vsel %vm1710, %v4490, 0
      %v4563 = vsel %vm1710, %v4491, 0
      %v4566 = vsel %vm1710, %v4492, 0
      %v4569 = vsel %vm1710, %v4493, 0
      %v4572 = vsel %vm1710, %v4494, 0
      %v4575 = vsel %vm1710, %v4495, 0
      %v4578 = vsel %vm1710, %v4496, 0
      %v4581 = vsel %vm1710, %v4497, 0
      %v4584 = vsel %vm1710, %v4498, 0
      %v4587 = vsel %vm1710, %v4499, 0
      %v4590 = vsel %vm1710, %v4500, 0
      %v4593 = vsel %vm1710, %v4501, 0
      %v4596 = vsel %vm1710, %v4502, 0
      %v4599 = vsel %vm1710, %v4503, 0
      %4601 = vmatprep.subr.mxu0 0.0
      %4602 = vmatpush1.msra.mxu0 %v4504
      %4603 = vmatprep.subr.mxu0 0.0
      %4604 = vmatpush1.msra.mxu0 0.0
      %4605 = vmatprep.subr.mxu0 0.0
      %4606 = vmatpush1.msra.mxu0 0.0
      %4607 = vmatprep.subr.mxu0 0.0
      %4608 = vmatpush1.msra.mxu0 0.0
      %4609 = vmatprep.subr.mxu0 0.0
      %4610 = vmatpush1.msra.mxu0 0.0
      %4611 = vmatprep.subr.mxu0 0.0
      %4612 = vmatpush1.msra.mxu0 0.0
      %4613 = vmatprep.subr.mxu0 0.0
      %4614 = vmatpush1.msra.mxu0 0.0
      %4615 = vmatprep.subr.mxu0 0.0
      %4616 = vmatpush1.msra.mxu0 0.0
      %4617 = vmatprep.subr.mxu0 0.0
      %4618 = vmatpush1.msra.mxu0 0.0
      %4619 = vmatprep.subr.mxu0 0.0
      %4620 = vmatpush1.msra.mxu0 0.0
      %4621 = vmatprep.subr.mxu0 0.0
      %4622 = vmatpush1.msra.mxu0 0.0
      %4623 = vmatprep.subr.mxu0 0.0
      %4624 = vmatpush1.msra.mxu0 0.0
      %4625 = vmatprep.subr.mxu0 0.0
      %4626 = vmatpush1.msra.mxu0 0.0
      %4627 = vmatprep.subr.mxu0 0.0
      %4628 = vmatpush1.msra.mxu0 0.0
      %4629 = vmatprep.subr.mxu0 0.0
      %4630 = vmatpush1.msra.mxu0 0.0
      %4631 = vmatprep.subr.mxu0 0.0
      %4632 = vmatpush1.msra.mxu0 0.0
      %4633 = vmatprep.subr.mxu0 0.0
      %4634 = vmatpush1.msra.mxu0 0.0
      %4635 = vmatprep.subr.mxu0 0.0
      %4636 = vmatpush1.msra.mxu0 0.0
      %4637 = vmatprep.subr.mxu0 0.0
      %4638 = vmatpush1.msra.mxu0 0.0
      %4639 = vmatprep.subr.mxu0 0.0
      %4640 = vmatpush1.msra.mxu0 0.0
      %4641 = vmatprep.subr.mxu0 0.0
      %4642 = vmatpush1.msra.mxu0 0.0
      %4643 = vmatprep.subr.mxu0 0.0
      %4644 = vmatpush1.msra.mxu0 0.0
      %4645 = vmatprep.subr.mxu0 0.0
      %4646 = vmatpush1.msra.mxu0 0.0
      %4647 = vmatprep.subr.mxu0 0.0
      %4648 = vmatpush1.msra.mxu0 0.0
      %4649 = vmatprep.subr.mxu0 0.0
      %4650 = vmatpush1.msra.mxu0 0.0
      %4651 = vmatprep.subr.mxu0 0.0
      %4652 = vmatpush1.msra.mxu0 0.0
      %4653 = vmatprep.subr.mxu0 0.0
      %4654 = vmatpush1.msra.mxu0 0.0
      %4655 = vmatprep.subr.mxu0 0.0
      %4656 = vmatpush1.msra.mxu0 0.0
      %4657 = vmatprep.subr.mxu0 0.0
      %4658 = vmatpush1.msra.mxu0 0.0
      %4659 = vmatprep.subr.mxu0 0.0
      %4660 = vmatpush1.msra.mxu0 0.0
      %4661 = vmatprep.subr.mxu0 0.0
      %4662 = vmatpush1.msra.mxu0 0.0
      %4663 = vmatprep.subr.mxu0 0.0
      %4664 = vmatpush1.msra.mxu0 0.0
      %4665 = vmatprep.mubr.f32.mxu0 0.0
      %4666 = vmatmul.mubr.f32.gmra.mrb[0].mxu0 %v4506
      %v4667 = vpop.f32.mrb[0].mxu0
      %v4668 = vadd.f32 0.0, %v4667
      %v4669 = vpop.f32.mrb[0].mxu0
      %4670 = vmatprep.mubr.f32.mxu0 0.0
      %4671 = vmatmul.mubr.f32.gmra.mrb[0].mxu0 %v4509
      %v4672 = vpop.f32.mrb[0].mxu0
      %v4673 = vadd.f32 0.0, %v4672
      %v4674 = vpop.f32.mrb[0].mxu0
      %4675 = vmatprep.mubr.f32.mxu0 0.0
      %4676 = vmatmul.mubr.f32.gmra.mrb[0].mxu0 %v4512
      %v4677 = vpop.f32.mrb[0].mxu0
      %v4678 = vadd.f32 0.0, %v4677
      %v4679 = vpop.f32.mrb[0].mxu0
      %4680 = vmatprep.mubr.f32.mxu0 0.0
      %4681 = vmatmul.mubr.f32.gmra.mrb[0].mxu0 %v4515
      %v4682 = vpop.f32.mrb[0].mxu0
      %v4683 = vadd.f32 0.0, %v4682
      %v4684 = vpop.f32.mrb[0].mxu0
      %4685 = vmatprep.mubr.f32.mxu0 0.0
      %4686 = vmatmul.mubr.f32.gmra.mrb[0].mxu0 %v4518
      %v4687 = vpop.f32.mrb[0].mxu0
      %v4688 = vadd.f32 0.0, %v4687
      %v4689 = vpop.f32.mrb[0].mxu0
      %4690 = vmatprep.mubr.f32.mxu0 0.0
      %4691 = vmatmul.mubr.f32.gmra.mrb[0].mxu0 %v4521
      %v4692 = vpop.f32.mrb[0].mxu0
      %v4693 = vadd.f32 0.0, %v4692
      %v4694 = vpop.f32.mrb[0].mxu0
      %4695 = vmatprep.mubr.f32.mxu0 0.0
      %4696 = vmatmul.mubr.f32.gmra.mrb[0].mxu0 %v4524
      %v4697 = vpop.f32.mrb[0].mxu0
      %v4698 = vadd.f32 0.0, %v4697
      %v4699 = vpop.f32.mrb[0].mxu0
      %4700 = vmatprep.mubr.f32.mxu0 0.0
      %4701 = vmatmul.mubr.f32.gmra.mrb[0].mxu0 %v4527
      %v4702 = vpop.f32.mrb[0].mxu0
      %v4703 = vadd.f32 0.0, %v4702
      %v4704 = vpop.f32.mrb[0].mxu0
      %4705 = vmatprep.mubr.f32.mxu0 0.0
      %4706 = vmatmul.mubr.f32.gmra.mrb[0].mxu0 %v4530
      %v4707 = vpop.f32.mrb[0].mxu0
      %v4708 = vadd.f32 0.0, %v4707
      %v4709 = vpop.f32.mrb[0].mxu0
      %4710 = vmatprep.mubr.f32.mxu0 0.0
      %4711 = vmatmul.mubr.f32.gmra.mrb[0].mxu0 %v4533
      %v4712 = vpop.f32.mrb[0].mxu0
      %v4713 = vadd.f32 0.0, %v4712
      %v4714 = vpop.f32.mrb[0].mxu0
      %4715 = vmatprep.mubr.f32.mxu0 0.0
      %4716 = vmatmul.mubr.f32.gmra.mrb[0].mxu0 %v4536
      %v4717 = vpop.f32.mrb[0].mxu0
      %v4718 = vadd.f32 0.0, %v4717
      %v4719 = vpop.f32.mrb[0].mxu0
      %4720 = vmatprep.mubr.f32.mxu0 0.0
      %4721 = vmatmul.mubr.f32.gmra.mrb[0].mxu0 %v4539
      %v4722 = vpop.f32.mrb[0].mxu0
      %v4723 = vadd.f32 0.0, %v4722
      %v4724 = vpop.f32.mrb[0].mxu0
      %4725 = vmatprep.mubr.f32.mxu0 0.0
      %4726 = vmatmul.mubr.f32.gmra.mrb[0].mxu0 %v4542
      %v4727 = vpop.f32.mrb[0].mxu0
      %v4728 = vadd.f32 0.0, %v4727
      %v4729 = vpop.f32.mrb[0].mxu0
      %4730 = vmatprep.mubr.f32.mxu0 0.0
      %4731 = vmatmul.mubr.f32.gmra.mrb[0].mxu0 %v4545
      %v4732 = vpop.f32.mrb[0].mxu0
      %v4733 = vadd.f32 0.0, %v4732
      %v4734 = vpop.f32.mrb[0].mxu0
      %4735 = vmatprep.mubr.f32.mxu0 0.0
      %4736 = vmatmul.mubr.f32.gmra.mrb[0].mxu0 %v4548
      %v4737 = vpop.f32.mrb[0].mxu0
      %v4738 = vadd.f32 0.0, %v4737
      %v4739 = vpop.f32.mrb[0].mxu0
      %4740 = vmatprep.mubr.f32.mxu0 0.0
      %4741 = vmatmul.mubr.f32.gmra.mrb[0].mxu0 %v4551
      %v4742 = vpop.f32.mrb[0].mxu0
      %v4743 = vadd.f32 0.0, %v4742
      %v4744 = vpop.f32.mrb[0].mxu0
      %4745 = vmatprep.mubr.f32.mxu0 0.0
      %4746 = vmatmul.mubr.f32.gmra.mrb[0].mxu0 %v4554
      %v4747 = vpop.f32.mrb[0].mxu0
      %v4748 = vadd.f32 0.0, %v4747
      %v4749 = vpop.f32.mrb[0].mxu0
      %4750 = vmatprep.mubr.f32.mxu0 0.0
      %4751 = vmatmul.mubr.f32.gmra.mrb[0].mxu0 %v4557
      %v4752 = vpop.f32.mrb[0].mxu0
      %v4753 = vadd.f32 0.0, %v4752
      %v4754 = vpop.f32.mrb[0].mxu0
      %4755 = vmatprep.mubr.f32.mxu0 0.0
      %4756 = vmatmul.mubr.f32.gmra.mrb[0].mxu0 %v4560
      %v4757 = vpop.f32.mrb[0].mxu0
      %v4758 = vadd.f32 0.0, %v4757
      %v4759 = vpop.f32.mrb[0].mxu0
      %4760 = vmatprep.mubr.f32.mxu0 0.0
      %4761 = vmatmul.mubr.f32.gmra.mrb[0].mxu0 %v4563
      %v4762 = vpop.f32.mrb[0].mxu0
      %v4763 = vadd.f32 0.0, %v4762
      %v4764 = vpop.f32.mrb[0].mxu0
      %4765 = vmatprep.mubr.f32.mxu0 0.0
      %4766 = vmatmul.mubr.f32.gmra.mrb[0].mxu0 %v4566
      %v4767 = vpop.f32.mrb[0].mxu0
      %v4768 = vadd.f32 0.0, %v4767
      %v4769 = vpop.f32.mrb[0].mxu0
      %4770 = vmatprep.mubr.f32.mxu0 0.0
      %4771 = vmatmul.mubr.f32.gmra.mrb[0].mxu0 %v4569
      %v4772 = vpop.f32.mrb[0].mxu0
      %v4773 = vadd.f32 0.0, %v4772
      %v4774 = vpop.f32.mrb[0].mxu0
      %4775 = vmatprep.mubr.f32.mxu0 0.0
      %4776 = vmatmul.mubr.f32.gmra.mrb[0].mxu0 %v4572
      %v4777 = vpop.f32.mrb[0].mxu0
      %v4778 = vadd.f32 0.0, %v4777
      %v4779 = vpop.f32.mrb[0].mxu0
      %4780 = vmatprep.mubr.f32.mxu0 0.0
      %4781 = vmatmul.mubr.f32.gmra.mrb[0].mxu0 %v4575
      %v4782 = vpop.f32.mrb[0].mxu0
      %v4783 = vadd.f32 0.0, %v4782
      %v4784 = vpop.f32.mrb[0].mxu0
      %4785 = vmatprep.mubr.f32.mxu0 0.0
      %4786 = vmatmul.mubr.f32.gmra.mrb[0].mxu0 %v4578
      %v4787 = vpop.f32.mrb[0].mxu0
      %v4788 = vadd.f32 0.0, %v4787
      %v4789 = vpop.f32.mrb[0].mxu0
      %4790 = vmatprep.mubr.f32.mxu0 0.0
      %4791 = vmatmul.mubr.f32.gmra.mrb[0].mxu0 %v4581
      %v4792 = vpop.f32.mrb[0].mxu0
      %v4793 = vadd.f32 0.0, %v4792
      %v4794 = vpop.f32.mrb[0].mxu0
      %4795 = vmatprep.mubr.f32.mxu0 0.0
      %4796 = vmatmul.mubr.f32.gmra.mrb[0].mxu0 %v4584
      %v4797 = vpop.f32.mrb[0].mxu0
      %v4798 = vadd.f32 0.0, %v4797
      %v4799 = vpop.f32.mrb[0].mxu0
      %4800 = vmatprep.mubr.f32.mxu0 0.0
      %4801 = vmatmul.mubr.f32.gmra.mrb[0].mxu0 %v4587
      %v4802 = vpop.f32.mrb[0].mxu0
      %v4803 = vadd.f32 0.0, %v4802
      %v4804 = vpop.f32.mrb[0].mxu0
      %4805 = vmatprep.mubr.f32.mxu0 0.0
      %4806 = vmatmul.mubr.f32.gmra.mrb[0].mxu0 %v4590
      %v4807 = vpop.f32.mrb[0].mxu0
      %v4808 = vadd.f32 0.0, %v4807
      %v4809 = vpop.f32.mrb[0].mxu0
      %4810 = vmatprep.mubr.f32.mxu0 0.0
      %4811 = vmatmul.mubr.f32.gmra.mrb[0].mxu0 %v4593
      %v4812 = vpop.f32.mrb[0].mxu0
      %v4813 = vadd.f32 0.0, %v4812
      %v4814 = vpop.f32.mrb[0].mxu0
      %4815 = vmatprep.mubr.f32.mxu0 0.0
      %4816 = vmatmul.mubr.f32.gmra.mrb[0].mxu0 %v4596
      %v4817 = vpop.f32.mrb[0].mxu0
      %v4818 = vadd.f32 0.0, %v4817
      %v4819 = vpop.f32.mrb[0].mxu0
      %4820 = vmatprep.mubr.f32.mxu0 0.0
      %4821 = vmatmul.mubr.f32.gmra.mrb[0].mxu0 %v4599
      %v4822 = vpop.f32.mrb[0].mxu0
      %v4823 = vadd.f32 0.0, %v4822
      %v4824 = vpop.f32.mrb[0].mxu0
      %4825 = vdwg.mxu0
      %vm4826 = vcmp.gt.f32.partialorder %v4668, 0.0
      %vm4827 = vcmp.gt.f32.partialorder %v4673, 0.0
      %vm4828 = vcmp.gt.f32.partialorder %v4678, 0.0
      %vm4829 = vcmp.gt.f32.partialorder %v4683, 0.0
      %vm4830 = vcmp.gt.f32.partialorder %v4688, 0.0
      %vm4831 = vcmp.gt.f32.partialorder %v4693, 0.0
      %vm4832 = vcmp.gt.f32.partialorder %v4698, 0.0
      %vm4833 = vcmp.gt.f32.partialorder %v4703, 0.0
      %vm4834 = vcmp.gt.f32.partialorder %v4708, 0.0
      %vm4835 = vcmp.gt.f32.partialorder %v4713, 0.0
      %vm4836 = vcmp.gt.f32.partialorder %v4718, 0.0
      %vm4837 = vcmp.gt.f32.partialorder %v4723, 0.0
      %vm4838 = vcmp.gt.f32.partialorder %v4728, 0.0
      %vm4839 = vcmp.gt.f32.partialorder %v4733, 0.0
      %vm4840 = vcmp.gt.f32.partialorder %v4738, 0.0
      %vm4841 = vcmp.gt.f32.partialorder %v4743, 0.0
      %vm4842 = vcmp.gt.f32.partialorder %v4748, 0.0
      %vm4843 = vcmp.gt.f32.partialorder %v4753, 0.0
      %vm4844 = vcmp.gt.f32.partialorder %v4758, 0.0
      %vm4845 = vcmp.gt.f32.partialorder %v4763, 0.0
      %vm4846 = vcmp.gt.f32.partialorder %v4768, 0.0
      %vm4847 = vcmp.gt.f32.partialorder %v4773, 0.0
      %vm4848 = vcmp.gt.f32.partialorder %v4778, 0.0
      %vm4849 = vcmp.gt.f32.partialorder %v4783, 0.0
      %vm4850 = vcmp.gt.f32.partialorder %v4788, 0.0
      %vm4851 = vcmp.gt.f32.partialorder %v4793, 0.0
      %vm4852 = vcmp.gt.f32.partialorder %v4798, 0.0
      %vm4853 = vcmp.gt.f32.partialorder %v4803, 0.0
      %vm4854 = vcmp.gt.f32.partialorder %v4808, 0.0
      %vm4855 = vcmp.gt.f32.partialorder %v4813, 0.0
      %vm4856 = vcmp.gt.f32.partialorder %v4818, 0.0
      %vm4857 = vcmp.gt.f32.partialorder %v4823, 0.0
      %v4858 = vmul.f32 %v4668, 1.442695
      %v4859 = vpow.pop %v4858
      %v4860 = vmul.f32 %v4673, 1.442695
      %v4861 = vpow.pop %v4860
      %v4862 = vmul.f32 %v4678, 1.442695
      %v4863 = vpow.pop %v4862
      %v4864 = vmul.f32 %v4683, 1.442695
      %v4865 = vpow.pop %v4864
      %v4866 = vmul.f32 %v4688, 1.442695
      %v4867 = vpow.pop %v4866
      %v4868 = vmul.f32 %v4693, 1.442695
      %v4869 = vpow.pop %v4868
      %v4870 = vmul.f32 %v4698, 1.442695
      %v4871 = vpow.pop %v4870
      %v4872 = vmul.f32 %v4703, 1.442695
      %v4873 = vpow.pop %v4872
      %v4874 = vmul.f32 %v4708, 1.442695
      %v4875 = vpow.pop %v4874
      %v4876 = vmul.f32 %v4713, 1.442695
      %v4877 = vpow.pop %v4876
      %v4878 = vmul.f32 %v4718, 1.442695
      %v4879 = vpow.pop %v4878
      %v4880 = vmul.f32 %v4723, 1.442695
      %v4881 = vpow.pop %v4880
      %v4882 = vmul.f32 %v4728, 1.442695
      %v4883 = vpow.pop %v4882
      %v4884 = vmul.f32 %v4733, 1.442695
      %v4885 = vpow.pop %v4884
      %v4886 = vmul.f32 %v4738, 1.442695
      %v4887 = vpow.pop %v4886
      %v4888 = vmul.f32 %v4743, 1.442695
      %v4889 = vpow.pop %v4888
      %v4890 = vmul.f32 %v4748, 1.442695
      %v4891 = vpow.pop %v4890
      %v4892 = vmul.f32 %v4753, 1.442695
      %v4893 = vpow.pop %v4892
      %v4894 = vmul.f32 %v4758, 1.442695
      %v4895 = vpow.pop %v4894
      %v4896 = vmul.f32 %v4763, 1.442695
      %v4897 = vpow.pop %v4896
      %v4898 = vmul.f32 %v4768, 1.442695
      %v4899 = vpow.pop %v4898
      %v4900 = vmul.f32 %v4773, 1.442695
      %v4901 = vpow.pop %v4900
      %v4902 = vmul.f32 %v4778, 1.442695
      %v4903 = vpow.pop %v4902
      %v4904 = vmul.f32 %v4783, 1.442695
      %v4905 = vpow.pop %v4904
      %v4906 = vmul.f32 %v4788, 1.442695
      %v4907 = vpow.pop %v4906
      %v4908 = vmul.f32 %v4793, 1.442695
      %v4909 = vpow.pop %v4908
      %v4910 = vmul.f32 %v4798, 1.442695
      %v4911 = vpow.pop %v4910
      %v4912 = vmul.f32 %v4803, 1.442695
      %v4913 = vpow.pop %v4912
      %v4914 = vmul.f32 %v4808, 1.442695
      %v4915 = vpow.pop %v4914
      %v4916 = vmul.f32 %v4813, 1.442695
      %v4917 = vpow.pop %v4916
      %v4918 = vmul.f32 %v4818, 1.442695
      %v4919 = vpow.pop %v4918
      %v4920 = vmul.f32 %v4823, 1.442695
      %v4921 = vpow.pop %v4920
      %v4922 = vsub.f32 %v4859, 1.0
      %v4923 = vsub.f32 %v4861, 1.0
      %v4924 = vsub.f32 %v4863, 1.0
      %v4925 = vsub.f32 %v4865, 1.0
      %v4926 = vsub.f32 %v4867, 1.0
      %v4927 = vsub.f32 %v4869, 1.0
      %v4928 = vsub.f32 %v4871, 1.0
      %v4929 = vsub.f32 %v4873, 1.0
      %v4930 = vsub.f32 %v4875, 1.0
      %v4931 = vsub.f32 %v4877, 1.0
      %v4932 = vsub.f32 %v4879, 1.0
      %v4933 = vsub.f32 %v4881, 1.0
      %v4934 = vsub.f32 %v4883, 1.0
      %v4935 = vsub.f32 %v4885, 1.0
      %v4936 = vsub.f32 %v4887, 1.0
      %v4937 = vsub.f32 %v4889, 1.0
      %v4938 = vsub.f32 %v4891, 1.0
      %v4939 = vsub.f32 %v4893, 1.0
      %v4940 = vsub.f32 %v4895, 1.0
      %v4941 = vsub.f32 %v4897, 1.0
      %v4942 = vsub.f32 %v4899, 1.0
      %v4943 = vsub.f32 %v4901, 1.0
      %v4944 = vsub.f32 %v4903, 1.0
      %v4945 = vsub.f32 %v4905, 1.0
      %v4946 = vsub.f32 %v4907, 1.0
      %v4947 = vsub.f32 %v4909, 1.0
      %v4948 = vsub.f32 %v4911, 1.0
      %v4949 = vsub.f32 %v4913, 1.0
      %v4950 = vsub.f32 %v4915, 1.0
      %v4951 = vsub.f32 %v4917, 1.0
      %v4952 = vsub.f32 %v4919, 1.0
      %v4953 = vsub.f32 %v4921, 1.0
      %v4954 = vsel %vm4826, %v4668, %v4922
      %v4955 = vsel %vm4827, %v4673, %v4923
      %v4956 = vsel %vm4828, %v4678, %v4924
      %v4957 = vsel %vm4829, %v4683, %v4925
      %v4958 = vsel %vm4830, %v4688, %v4926
      %v4959 = vsel %vm4831, %v4693, %v4927
      %v4960 = vsel %vm4832, %v4698, %v4928
      %v4961 = vsel %vm4833, %v4703, %v4929
      %v4962 = vsel %vm4834, %v4708, %v4930
      %v4963 = vsel %vm4835, %v4713, %v4931
      %v4964 = vsel %vm4836, %v4718, %v4932
      %v4965 = vsel %vm4837, %v4723, %v4933
      %v4966 = vsel %vm4838, %v4728, %v4934
      %v4967 = vsel %vm4839, %v4733, %v4935
      %v4968 = vsel %vm4840, %v4738, %v4936
      %v4969 = vsel %vm4841, %v4743, %v4937
      %v4970 = vsel %vm4842, %v4748, %v4938
      %v4971 = vsel %vm4843, %v4753, %v4939
      %v4972 = vsel %vm4844, %v4758, %v4940
      %v4973 = vsel %vm4845, %v4763, %v4941
      %v4974 = vsel %vm4846, %v4768, %v4942
      %v4975 = vsel %vm4847, %v4773, %v4943
      %v4976 = vsel %vm4848, %v4778, %v4944
      %v4977 = vsel %vm4849, %v4783, %v4945
      %v4978 = vsel %vm4850, %v4788, %v4946
      %v4979 = vsel %vm4851, %v4793, %v4947
      %v4980 = vsel %vm4852, %v4798, %v4948
      %v4981 = vsel %vm4853, %v4803, %v4949
      %v4982 = vsel %vm4854, %v4808, %v4950
      %v4983 = vsel %vm4855, %v4813, %v4951
      %v4984 = vsel %vm4856, %v4818, %v4952
      %v4985 = vsel %vm4857, %v4823, %v4953
      %v4986 = vadd.f32 %v760, %v4954
      %v4987 = vadd.f32 %v761, %v4955
      %v4988 = vadd.f32 %v762, %v4956
      %v4989 = vadd.f32 %v763, %v4957
      %v4990 = vadd.f32 %v764, %v4958
      %v4991 = vadd.f32 %v765, %v4959
      %v4992 = vadd.f32 %v766, %v4960
      %v4993 = vadd.f32 %v767, %v4961
      %v4994 = vadd.f32 %v768, %v4962
      %v4995 = vadd.f32 %v769, %v4963
      %v4996 = vadd.f32 %v770, %v4964
      %v4997 = vadd.f32 %v771, %v4965
      %v4998 = vadd.f32 %v772, %v4966
      %v4999 = vadd.f32 %v773, %v4967
      %v5000 = vadd.f32 %v774, %v4968
      %v5001 = vadd.f32 %v775, %v4969
      %v5002 = vadd.f32 %v776, %v4970
      %v5003 = vadd.f32 %v777, %v4971
      %v5004 = vadd.f32 %v778, %v4972
      %v5005 = vadd.f32 %v779, %v4973
      %v5006 = vadd.f32 %v780, %v4974
      %v5007 = vadd.f32 %v781, %v4975
      %v5008 = vadd.f32 %v782, %v4976
      %v5009 = vadd.f32 %v783, %v4977
      %v5010 = vadd.f32 %v784, %v4978
      %v5011 = vadd.f32 %v785, %v4979
      %v5012 = vadd.f32 %v786, %v4980
      %v5013 = vadd.f32 %v787, %v4981
      %v5014 = vadd.f32 %v788, %v4982
      %v5015 = vadd.f32 %v789, %v4983
      %v5016 = vadd.f32 %v790, %v4984
      %v5017 = vadd.f32 %v791, %v4985
      %v5018 = vrot.slane %v4986, 7
      %v5019 = vrot.slane %v4988, 7
      %v5020 = vrot.slane %v4990, 7
      %v5021 = vrot.slane %v4992, 7
      %v5022 = vrot.slane %v4994, 7
      %v5023 = vrot.slane %v4996, 7
      %v5024 = vrot.slane %v4998, 7
      %v5025 = vrot.slane %v5000, 7
      %v5026 = vrot.slane %v5002, 7
      %v5027 = vrot.slane %v5004, 7
      %v5028 = vrot.slane %v5006, 7
      %v5029 = vrot.slane %v5008, 7
      %v5030 = vrot.slane %v5010, 7
      %v5031 = vrot.slane %v5012, 7
      %v5032 = vrot.slane %v5014, 7
      %v5033 = vrot.slane %v5016, 7
      %v5034 = vrot.slane %v4987, 7
      %v5035 = vrot.slane %v4989, 7
      %v5036 = vrot.slane %v4991, 7
      %v5037 = vrot.slane %v4993, 7
      %v5038 = vrot.slane %v4995, 7
      %v5039 = vrot.slane %v4997, 7
      %v5040 = vrot.slane %v4999, 7
      %v5041 = vrot.slane %v5001, 7
      %v5042 = vrot.slane %v5003, 7
      %v5043 = vrot.slane %v5005, 7
      %v5044 = vrot.slane %v5007, 7
      %v5045 = vrot.slane %v5009, 7
      %v5046 = vrot.slane %v5011, 7
      %v5047 = vrot.slane %v5013, 7
      %v5048 = vrot.slane %v5015, 7
      %v5049 = vrot.slane %v5017, 7
      %v5050 = vsel %vm827, %v5018, %v5034
      %v5051 = vsel %vm827, %v5019, %v5035
      %v5052 = vsel %vm827, %v5020, %v5036
      %v5053 = vsel %vm827, %v5021, %v5037
      %v5054 = vsel %vm827, %v5022, %v5038
      %v5055 = vsel %vm827, %v5023, %v5039
      %v5056 = vsel %vm827, %v5024, %v5040
      %v5057 = vsel %vm827, %v5025, %v5041
      %v5058 = vsel %vm827, %v5026, %v5042
      %v5059 = vsel %vm827, %v5027, %v5043
      %v5060 = vsel %vm827, %v5028, %v5044
      %v5061 = vsel %vm827, %v5029, %v5045
      %v5062 = vsel %vm827, %v5030, %v5046
      %v5063 = vsel %vm827, %v5031, %v5047
      %v5064 = vsel %vm827, %v5032, %v5048
      %v5065 = vsel %vm827, %v5033, %v5049
      %v5066 = vsel %vm827, %v5034, %v5018
      %v5067 = vsel %vm827, %v5035, %v5019
      %v5068 = vsel %vm827, %v5036, %v5020
      %v5069 = vsel %vm827, %v5037, %v5021
      %v5070 = vsel %vm827, %v5038, %v5022
      %v5071 = vsel %vm827, %v5039, %v5023
      %v5072 = vsel %vm827, %v5040, %v5024
      %v5073 = vsel %vm827, %v5041, %v5025
      %v5074 = vsel %vm827, %v5042, %v5026
      %v5075 = vsel %vm827, %v5043, %v5027
      %v5076 = vsel %vm827, %v5044, %v5028
      %v5077 = vsel %vm827, %v5045, %v5029
      %v5078 = vsel %vm827, %v5046, %v5030
      %v5079 = vsel %vm827, %v5047, %v5031
      %v5080 = vsel %vm827, %v5048, %v5032
      %v5081 = vsel %vm827, %v5049, %v5033
      %v5082 = vsel %vm392, %v5066, 0.0
      %v5083 = vsel %vm393, %v5050, 0.0
      %v5084 = vsel %vm392, %v5067, 0.0
      %v5085 = vsel %vm393, %v5051, 0.0
      %v5086 = vsel %vm392, %v5068, 0.0
      %v5087 = vsel %vm393, %v5052, 0.0
      %v5088 = vsel %vm392, %v5069, 0.0
      %v5089 = vsel %vm393, %v5053, 0.0
      %v5090 = vsel %vm392, %v5070, 0.0
      %v5091 = vsel %vm393, %v5054, 0.0
      %v5092 = vsel %vm392, %v5071, 0.0
      %v5093 = vsel %vm393, %v5055, 0.0
      %v5094 = vsel %vm392, %v5072, 0.0
      %v5095 = vsel %vm393, %v5056, 0.0
      %v5096 = vsel %vm392, %v5073, 0.0
      %v5097 = vsel %vm393, %v5057, 0.0
      %v5098 = vsel %vm392, %v5074, 0.0
      %v5099 = vsel %vm393, %v5058, 0.0
      %v5100 = vsel %vm392, %v5075, 0.0
      %v5101 = vsel %vm393, %v5059, 0.0
      %v5102 = vsel %vm392, %v5076, 0.0
      %v5103 = vsel %vm393, %v5060, 0.0
      %v5104 = vsel %vm392, %v5077, 0.0
      %v5105 = vsel %vm393, %v5061, 0.0
      %v5106 = vsel %vm392, %v5078, 0.0
      %v5107 = vsel %vm393, %v5062, 0.0
      %v5108 = vsel %vm392, %v5079, 0.0
      %v5109 = vsel %vm393, %v5063, 0.0
      %v5110 = vsel %vm392, %v5080, 0.0
      %v5111 = vsel %vm393, %v5064, 0.0
      %v5112 = vsel %vm392, %v5081, 0.0
      %v5113 = vsel %vm393, %v5065, 0.0
      %v5114 = vrot.slane %v4986, 1
      %v5115 = vrot.slane %v4988, 1
      %v5116 = vrot.slane %v4990, 1
      %v5117 = vrot.slane %v4992, 1
      %v5118 = vrot.slane %v4994, 1
      %v5119 = vrot.slane %v4996, 1
      %v5120 = vrot.slane %v4998, 1
      %v5121 = vrot.slane %v5000, 1
      %v5122 = vrot.slane %v5002, 1
      %v5123 = vrot.slane %v5004, 1
      %v5124 = vrot.slane %v5006, 1
      %v5125 = vrot.slane %v5008, 1
      %v5126 = vrot.slane %v5010, 1
      %v5127 = vrot.slane %v5012, 1
      %v5128 = vrot.slane %v5014, 1
      %v5129 = vrot.slane %v5016, 1
      %v5130 = vrot.slane %v4987, 1
      %v5131 = vrot.slane %v4989, 1
      %v5132 = vrot.slane %v4991, 1
      %v5133 = vrot.slane %v4993, 1
      %v5134 = vrot.slane %v4995, 1
      %v5135 = vrot.slane %v4997, 1
      %v5136 = vrot.slane %v4999, 1
      %v5137 = vrot.slane %v5001, 1
      %v5138 = vrot.slane %v5003, 1
      %v5139 = vrot.slane %v5005, 1
      %v5140 = vrot.slane %v5007, 1
      %v5141 = vrot.slane %v5009, 1
      %v5142 = vrot.slane %v5011, 1
      %v5143 = vrot.slane %v5013, 1
      %v5144 = vrot.slane %v5015, 1
      %v5145 = vrot.slane %v5017, 1
      %v5146 = vsel %vm924, %v5114, %v5130
      %v5147 = vsel %vm924, %v5115, %v5131
      %v5148 = vsel %vm924, %v5116, %v5132
      %v5149 = vsel %vm924, %v5117, %v5133
      %v5150 = vsel %vm924, %v5118, %v5134
      %v5151 = vsel %vm924, %v5119, %v5135
      %v5152 = vsel %vm924, %v5120, %v5136
      %v5153 = vsel %vm924, %v5121, %v5137
      %v5154 = vsel %vm924, %v5122, %v5138
      %v5155 = vsel %vm924, %v5123, %v5139
      %v5156 = vsel %vm924, %v5124, %v5140
      %v5157 = vsel %vm924, %v5125, %v5141
      %v5158 = vsel %vm924, %v5126, %v5142
      %v5159 = vsel %vm924, %v5127, %v5143
      %v5160 = vsel %vm924, %v5128, %v5144
      %v5161 = vsel %vm924, %v5129, %v5145
      %v5162 = vsel %vm924, %v5130, %v5114
      %v5163 = vsel %vm924, %v5131, %v5115
      %v5164 = vsel %vm924, %v5132, %v5116
      %v5165 = vsel %vm924, %v5133, %v5117
      %v5166 = vsel %vm924, %v5134, %v5118
      %v5167 = vsel %vm924, %v5135, %v5119
      %v5168 = vsel %vm924, %v5136, %v5120
      %v5169 = vsel %vm924, %v5137, %v5121
      %v5170 = vsel %vm924, %v5138, %v5122
      %v5171 = vsel %vm924, %v5139, %v5123
      %v5172 = vsel %vm924, %v5140, %v5124
      %v5173 = vsel %vm924, %v5141, %v5125
      %v5174 = vsel %vm924, %v5142, %v5126
      %v5175 = vsel %vm924, %v5143, %v5127
      %v5176 = vsel %vm924, %v5144, %v5128
      %v5177 = vsel %vm924, %v5145, %v5129
      %v5178 = vsel %vm390, %v5146, 0.0
      %v5179 = vsel %vm391, %v5162, 0.0
      %v5180 = vsel %vm390, %v5147, 0.0
      %v5181 = vsel %vm391, %v5163, 0.0
      %v5182 = vsel %vm390, %v5148, 0.0
      %v5183 = vsel %vm391, %v5164, 0.0
      %v5184 = vsel %vm390, %v5149, 0.0
      %v5185 = vsel %vm391, %v5165, 0.0
      %v5186 = vsel %vm390, %v5150, 0.0
      %v5187 = vsel %vm391, %v5166, 0.0
      %v5188 = vsel %vm390, %v5151, 0.0
      %v5189 = vsel %vm391, %v5167, 0.0
      %v5190 = vsel %vm390, %v5152, 0.0
      %v5191 = vsel %vm391, %v5168, 0.0
      %v5192 = vsel %vm390, %v5153, 0.0
      %v5193 = vsel %vm391, %v5169, 0.0
      %v5194 = vsel %vm390, %v5154, 0.0
      %v5195 = vsel %vm391, %v5170, 0.0
      %v5196 = vsel %vm390, %v5155, 0.0
      %v5197 = vsel %vm391, %v5171, 0.0
      %v5198 = vsel %vm390, %v5156, 0.0
      %v5199 = vsel %vm391, %v5172, 0.0
      %v5200 = vsel %vm390, %v5157, 0.0
      %v5201 = vsel %vm391, %v5173, 0.0
      %v5202 = vsel %vm390, %v5158, 0.0
      %v5203 = vsel %vm391, %v5174, 0.0
      %v5204 = vsel %vm390, %v5159, 0.0
      %v5205 = vsel %vm391, %v5175, 0.0
      %v5206 = vsel %vm390, %v5160, 0.0
      %v5207 = vsel %vm391, %v5176, 0.0
      %v5208 = vsel %vm390, %v5161, 0.0
      %v5209 = vsel %vm391, %v5177, 0.0
      %5242 = vrot.lane.b32.xlu0 %v4986, 8
      %v5243 = vpop.permute.xlu0 %5242
      %5244 = vrot.lane.b32.xlu0 %v4987, 8
      %v5245 = vpop.permute.xlu0 %5244
      %5246 = vrot.lane.b32.xlu0 %v4988, 8
      %v5247 = vpop.permute.xlu0 %5246
      %5248 = vrot.lane.b32.xlu0 %v4989, 8
      %v5249 = vpop.permute.xlu0 %5248
      %5250 = vrot.lane.b32.xlu0 %v4990, 8
      %v5251 = vpop.permute.xlu0 %5250
      %5252 = vrot.lane.b32.xlu0 %v4991, 8
      %v5253 = vpop.permute.xlu0 %5252
      %5254 = vrot.lane.b32.xlu0 %v4992, 8
      %v5255 = vpop.permute.xlu0 %5254
      %5256 = vrot.lane.b32.xlu0 %v4993, 8
      %v5257 = vpop.permute.xlu0 %5256
      %5258 = vrot.lane.b32.xlu0 %v4994, 8
      %v5259 = vpop.permute.xlu0 %5258
      %5260 = vrot.lane.b32.xlu0 %v4995, 8
      %v5261 = vpop.permute.xlu0 %5260
      %5262 = vrot.lane.b32.xlu0 %v4996, 8
      %v5263 = vpop.permute.xlu0 %5262
      %5264 = vrot.lane.b32.xlu0 %v4997, 8
      %v5265 = vpop.permute.xlu0 %5264
      %5266 = vrot.lane.b32.xlu0 %v4998, 8
      %v5267 = vpop.permute.xlu0 %5266
      %5268 = vrot.lane.b32.xlu0 %v4999, 8
      %v5269 = vpop.permute.xlu0 %5268
      %5270 = vrot.lane.b32.xlu0 %v5000, 8
      %v5271 = vpop.permute.xlu0 %5270
      %5272 = vrot.lane.b32.xlu0 %v5001, 8
      %v5273 = vpop.permute.xlu0 %5272
      %5274 = vrot.lane.b32.xlu0 %v5002, 8
      %v5275 = vpop.permute.xlu0 %5274
      %5276 = vrot.lane.b32.xlu0 %v5003, 8
      %v5277 = vpop.permute.xlu0 %5276
      %5278 = vrot.lane.b32.xlu0 %v5004, 8
      %v5279 = vpop.permute.xlu0 %5278
      %5280 = vrot.lane.b32.xlu0 %v5005, 8
      %v5281 = vpop.permute.xlu0 %5280
      %5282 = vrot.lane.b32.xlu0 %v5006, 8
      %v5283 = vpop.permute.xlu0 %5282
      %5284 = vrot.lane.b32.xlu0 %v5007, 8
      %v5285 = vpop.permute.xlu0 %5284
      %5286 = vrot.lane.b32.xlu0 %v5008, 8
      %v5287 = vpop.permute.xlu0 %5286
      %5288 = vrot.lane.b32.xlu0 %v5009, 8
      %v5289 = vpop.permute.xlu0 %5288
      %5290 = vrot.lane.b32.xlu0 %v5010, 8
      %v5291 = vpop.permute.xlu0 %5290
      %5292 = vrot.lane.b32.xlu0 %v5011, 8
      %v5293 = vpop.permute.xlu0 %5292
      %5294 = vrot.lane.b32.xlu0 %v5012, 8
      %v5295 = vpop.permute.xlu0 %5294
      %5296 = vrot.lane.b32.xlu0 %v5013, 8
      %v5297 = vpop.permute.xlu0 %5296
      %5298 = vrot.lane.b32.xlu0 %v5014, 8
      %v5299 = vpop.permute.xlu0 %5298
      %5300 = vrot.lane.b32.xlu0 %v5015, 8
      %v5301 = vpop.permute.xlu0 %5300
      %5302 = vrot.lane.b32.xlu0 %v5016, 8
      %v5303 = vpop.permute.xlu0 %5302
      %5304 = vrot.lane.b32.xlu0 %v5017, 8
      %v5305 = vpop.permute.xlu0 %5304
      %5370 = vrot.lane.b32.xlu0 %v5178, 16
      %v5371 = vpop.permute.xlu0 %5370
      %5372 = vrot.lane.b32.xlu0 %v5179, 16
      %v5373 = vpop.permute.xlu0 %5372
      %5374 = vrot.lane.b32.xlu0 %v5180, 16
      %v5375 = vpop.permute.xlu0 %5374
      %5376 = vrot.lane.b32.xlu0 %v5181, 16
      %v5377 = vpop.permute.xlu0 %5376
      %5378 = vrot.lane.b32.xlu0 %v5182, 16
      %v5379 = vpop.permute.xlu0 %5378
      %5380 = vrot.lane.b32.xlu0 %v5183, 16
      %v5381 = vpop.permute.xlu0 %5380
      %5382 = vrot.lane.b32.xlu0 %v5184, 16
      %v5383 = vpop.permute.xlu0 %5382
      %5384 = vrot.lane.b32.xlu0 %v5185, 16
      %v5385 = vpop.permute.xlu0 %5384
      %5386 = vrot.lane.b32.xlu0 %v5186, 16
      %v5387 = vpop.permute.xlu0 %5386
      %5388 = vrot.lane.b32.xlu0 %v5187, 16
      %v5389 = vpop.permute.xlu0 %5388
      %5390 = vrot.lane.b32.xlu0 %v5188, 16
      %v5391 = vpop.permute.xlu0 %5390
      %5392 = vrot.lane.b32.xlu0 %v5189, 16
      %v5393 = vpop.permute.xlu0 %5392
      %5394 = vrot.lane.b32.xlu0 %v5190, 16
      %v5395 = vpop.permute.xlu0 %5394
      %5396 = vrot.lane.b32.xlu0 %v5191, 16
      %v5397 = vpop.permute.xlu0 %5396
      %5398 = vrot.lane.b32.xlu0 %v5192, 16
      %v5399 = vpop.permute.xlu0 %5398
      %5400 = vrot.lane.b32.xlu0 %v5193, 16
      %v5401 = vpop.permute.xlu0 %5400
      %5402 = vrot.lane.b32.xlu0 %v5194, 16
      %v5403 = vpop.permute.xlu0 %5402
      %5404 = vrot.lane.b32.xlu0 %v5195, 16
      %v5405 = vpop.permute.xlu0 %5404
      %5406 = vrot.lane.b32.xlu0 %v5196, 16
      %v5407 = vpop.permute.xlu0 %5406
      %5408 = vrot.lane.b32.xlu0 %v5197, 16
      %v5409 = vpop.permute.xlu0 %5408
      %5410 = vrot.lane.b32.xlu0 %v5198, 16
      %v5411 = vpop.permute.xlu0 %5410
      %5412 = vrot.lane.b32.xlu0 %v5199, 16
      %v5413 = vpop.permute.xlu0 %5412
      %5414 = vrot.lane.b32.xlu0 %v5200, 16
      %v5415 = vpop.permute.xlu0 %5414
      %5416 = vrot.lane.b32.xlu0 %v5201, 16
      %v5417 = vpop.permute.xlu0 %5416
      %5418 = vrot.lane.b32.xlu0 %v5202, 16
      %v5419 = vpop.permute.xlu0 %5418
      %5420 = vrot.lane.b32.xlu0 %v5203, 16
      %v5421 = vpop.permute.xlu0 %5420
      %5422 = vrot.lane.b32.xlu0 %v5204, 16
      %v5423 = vpop.permute.xlu0 %5422
      %5424 = vrot.lane.b32.xlu0 %v5205, 16
      %v5425 = vpop.permute.xlu0 %5424
      %5426 = vrot.lane.b32.xlu0 %v5206, 16
      %v5427 = vpop.permute.xlu0 %5426
      %5428 = vrot.lane.b32.xlu0 %v5207, 16
      %v5429 = vpop.permute.xlu0 %5428
      %5430 = vrot.lane.b32.xlu0 %v5208, 16
      %v5431 = vpop.permute.xlu0 %5430
      %5432 = vrot.lane.b32.xlu0 %v5209, 16
      %v5433 = vpop.permute.xlu0 %5432
      %v5466 = vsel %vm1710, %v5082, %v5243
      %v5467 = vsel %vm1710, %v5083, %v5245
      %v5468 = vsel %vm1710, %v5084, %v5247
      %v5469 = vsel %vm1710, %v5085, %v5249
      %v5470 = vsel %vm1710, %v5086, %v5251
      %v5471 = vsel %vm1710, %v5087, %v5253
      %v5472 = vsel %vm1710, %v5088, %v5255
      %v5473 = vsel %vm1710, %v5089, %v5257
      %v5474 = vsel %vm1710, %v5090, %v5259
      %v5475 = vsel %vm1710, %v5091, %v5261
      %v5476 = vsel %vm1710, %v5092, %v5263
      %v5477 = vsel %vm1710, %v5093, %v5265
      %v5478 = vsel %vm1710, %v5094, %v5267
      %v5479 = vsel %vm1710, %v5095, %v5269
      %v5480 = vsel %vm1710, %v5096, %v5271
      %v5481 = vsel %vm1710, %v5097, %v5273
      %v5482 = vsel %vm1710, %v5098, %v5275
      %v5483 = vsel %vm1710, %v5099, %v5277
      %v5484 = vsel %vm1710, %v5100, %v5279
      %v5485 = vsel %vm1710, %v5101, %v5281
      %v5486 = vsel %vm1710, %v5102, %v5283
      %v5487 = vsel %vm1710, %v5103, %v5285
      %v5488 = vsel %vm1710, %v5104, %v5287
      %v5489 = vsel %vm1710, %v5105, %v5289
      %v5490 = vsel %vm1710, %v5106, %v5291
      %v5491 = vsel %vm1710, %v5107, %v5293
      %v5492 = vsel %vm1710, %v5108, %v5295
      %v5493 = vsel %vm1710, %v5109, %v5297
      %v5494 = vsel %vm1710, %v5110, %v5299
      %v5495 = vsel %vm1710, %v5111, %v5301
      %v5496 = vsel %vm1710, %v5112, %v5303
      %v5497 = vsel %vm1710, %v5113, %v5305
      %vm5498 = vcmask 130048
      %v5499 = vsel %vm5498, %v5466, %v5371
      %v5500 = vsel %vm5498, %v5467, %v5373
      %v5501 = vsel %vm5498, %v5468, %v5375
      %v5502 = vsel %vm5498, %v5469, %v5377
      %v5503 = vsel %vm5498, %v5470, %v5379
      %v5504 = vsel %vm5498, %v5471, %v5381
      %v5505 = vsel %vm5498, %v5472, %v5383
      %v5506 = vsel %vm5498, %v5473, %v5385
      %v5507 = vsel %vm5498, %v5474, %v5387
      %v5508 = vsel %vm5498, %v5475, %v5389
      %v5509 = vsel %vm5498, %v5476, %v5391
      %v5510 = vsel %vm5498, %v5477, %v5393
      %v5511 = vsel %vm5498, %v5478, %v5395
      %v5512 = vsel %vm5498, %v5479, %v5397
      %v5513 = vsel %vm5498, %v5480, %v5399
      %v5514 = vsel %vm5498, %v5481, %v5401
      %v5515 = vsel %vm5498, %v5482, %v5403
      %v5516 = vsel %vm5498, %v5483, %v5405
      %v5517 = vsel %vm5498, %v5484, %v5407
      %v5518 = vsel %vm5498, %v5485, %v5409
      %v5519 = vsel %vm5498, %v5486, %v5411
      %v5520 = vsel %vm5498, %v5487, %v5413
      %v5521 = vsel %vm5498, %v5488, %v5415
      %v5522 = vsel %vm5498, %v5489, %v5417
      %v5523 = vsel %vm5498, %v5490, %v5419
      %v5524 = vsel %vm5498, %v5491, %v5421
      %v5525 = vsel %vm5498, %v5492, %v5423
      %v5526 = vsel %vm5498, %v5493, %v5425
      %v5527 = vsel %vm5498, %v5494, %v5427
      %v5528 = vsel %vm5498, %v5495, %v5429
      %v5529 = vsel %vm5498, %v5496, %v5431
      %v5530 = vsel %vm5498, %v5497, %v5433
      %v5531 = vld [vmem:[%s9] sm:$0xff]
      %v5532 = vld [vmem:[%s9 + $0x8] sm:$0xff]
      %v5533 = vld [vmem:[%s9 + $0x10] sm:$0xff]
      %vm5534 = vcmask 195584
      %v5536 = vsel %vm5534, %v5499, 0
      %v5539 = vsel %vm5534, %v5500, 0
      %v5542 = vsel %vm5534, %v5501, 0
      %v5545 = vsel %vm5534, %v5502, 0
      %v5548 = vsel %vm5534, %v5503, 0
      %v5551 = vsel %vm5534, %v5504, 0
      %v5554 = vsel %vm5534, %v5505, 0
      %v5557 = vsel %vm5534, %v5506, 0
      %v5560 = vsel %vm5534, %v5507, 0
      %v5563 = vsel %vm5534, %v5508, 0
      %v5566 = vsel %vm5534, %v5509, 0
      %v5569 = vsel %vm5534, %v5510, 0
      %v5572 = vsel %vm5534, %v5511, 0
      %v5575 = vsel %vm5534, %v5512, 0
      %v5578 = vsel %vm5534, %v5513, 0
      %v5581 = vsel %vm5534, %v5514, 0
      %v5584 = vsel %vm5534, %v5515, 0
      %v5587 = vsel %vm5534, %v5516, 0
      %v5590 = vsel %vm5534, %v5517, 0
      %v5593 = vsel %vm5534, %v5518, 0
      %v5596 = vsel %vm5534, %v5519, 0
      %v5599 = vsel %vm5534, %v5520, 0
      %v5602 = vsel %vm5534, %v5521, 0
      %v5605 = vsel %vm5534, %v5522, 0
      %v5608 = vsel %vm5534, %v5523, 0
      %v5611 = vsel %vm5534, %v5524, 0
      %v5614 = vsel %vm5534, %v5525, 0
      %v5617 = vsel %vm5534, %v5526, 0
      %v5620 = vsel %vm5534, %v5527, 0
      %v5623 = vsel %vm5534, %v5528, 0
      %v5626 = vsel %vm5534, %v5529, 0
      %v5629 = vsel %vm5534, %v5530, 0
      %5631 = vmatprep.subr.mxu0 0.0
      %5632 = vmatpush1.msra.mxu0 %v5531
      %5633 = vmatprep.subr.mxu0 0.0
      %5634 = vmatpush1.msra.mxu0 %v5532
      %5635 = vmatprep.subr.mxu0 0.0
      %5636 = vmatpush1.msra.mxu0 %v5533
      %5637 = vmatprep.subr.mxu0 0.0
      %5638 = vmatpush1.msra.mxu0 0.0
      %5639 = vmatprep.subr.mxu0 0.0
      %5640 = vmatpush1.msra.mxu0 0.0
      %5641 = vmatprep.subr.mxu0 0.0
      %5642 = vmatpush1.msra.mxu0 0.0
      %5643 = vmatprep.subr.mxu0 0.0
      %5644 = vmatpush1.msra.mxu0 0.0
      %5645 = vmatprep.subr.mxu0 0.0
      %5646 = vmatpush1.msra.mxu0 0.0
      %5647 = vmatprep.subr.mxu0 0.0
      %5648 = vmatpush1.msra.mxu0 0.0
      %5649 = vmatprep.subr.mxu0 0.0
      %5650 = vmatpush1.msra.mxu0 0.0
      %5651 = vmatprep.subr.mxu0 0.0
      %5652 = vmatpush1.msra.mxu0 0.0
      %5653 = vmatprep.subr.mxu0 0.0
      %5654 = vmatpush1.msra.mxu0 0.0
      %5655 = vmatprep.subr.mxu0 0.0
      %5656 = vmatpush1.msra.mxu0 0.0
      %5657 = vmatprep.subr.mxu0 0.0
      %5658 = vmatpush1.msra.mxu0 0.0
      %5659 = vmatprep.subr.mxu0 0.0
      %5660 = vmatpush1.msra.mxu0 0.0
      %5661 = vmatprep.subr.mxu0 0.0
      %5662 = vmatpush1.msra.mxu0 0.0
      %5663 = vmatprep.subr.mxu0 0.0
      %5664 = vmatpush1.msra.mxu0 0.0
      %5665 = vmatprep.subr.mxu0 0.0
      %5666 = vmatpush1.msra.mxu0 0.0
      %5667 = vmatprep.subr.mxu0 0.0
      %5668 = vmatpush1.msra.mxu0 0.0
      %5669 = vmatprep.subr.mxu0 0.0
      %5670 = vmatpush1.msra.mxu0 0.0
      %5671 = vmatprep.subr.mxu0 0.0
      %5672 = vmatpush1.msra.mxu0 0.0
      %5673 = vmatprep.subr.mxu0 0.0
      %5674 = vmatpush1.msra.mxu0 0.0
      %5675 = vmatprep.subr.mxu0 0.0
      %5676 = vmatpush1.msra.mxu0 0.0
      %5677 = vmatprep.subr.mxu0 0.0
      %5678 = vmatpush1.msra.mxu0 0.0
      %5679 = vmatprep.subr.mxu0 0.0
      %5680 = vmatpush1.msra.mxu0 0.0
      %5681 = vmatprep.subr.mxu0 0.0
      %5682 = vmatpush1.msra.mxu0 0.0
      %5683 = vmatprep.subr.mxu0 0.0
      %5684 = vmatpush1.msra.mxu0 0.0
      %5685 = vmatprep.subr.mxu0 0.0
      %5686 = vmatpush1.msra.mxu0 0.0
      %5687 = vmatprep.subr.mxu0 0.0
      %5688 = vmatpush1.msra.mxu0 0.0
      %5689 = vmatprep.subr.mxu0 0.0
      %5690 = vmatpush1.msra.mxu0 0.0
      %5691 = vmatprep.subr.mxu0 0.0
      %5692 = vmatpush1.msra.mxu0 0.0
      %5693 = vmatprep.subr.mxu0 0.0
      %5694 = vmatpush1.msra.mxu0 0.0
      %5695 = vmatprep.mubr.f32.mxu0 0.0
      %5696 = vmatmul.mubr.f32.gmra.mrb[0].mxu0 %v5536
      %v5697 = vpop.f32.mrb[0].mxu0
      %v5698 = vadd.f32 0.0, %v5697
      %v5699 = vpop.f32.mrb[0].mxu0
      %5700 = vmatprep.mubr.f32.mxu0 0.0
      %5701 = vmatmul.mubr.f32.gmra.mrb[0].mxu0 %v5539
      %v5702 = vpop.f32.mrb[0].mxu0
      %v5703 = vadd.f32 0.0, %v5702
      %v5704 = vpop.f32.mrb[0].mxu0
      %5705 = vmatprep.mubr.f32.mxu0 0.0
      %5706 = vmatmul.mubr.f32.gmra.mrb[0].mxu0 %v5542
      %v5707 = vpop.f32.mrb[0].mxu0
      %v5708 = vadd.f32 0.0, %v5707
      %v5709 = vpop.f32.mrb[0].mxu0
      %5710 = vmatprep.mubr.f32.mxu0 0.0
      %5711 = vmatmul.mubr.f32.gmra.mrb[0].mxu0 %v5545
      %v5712 = vpop.f32.mrb[0].mxu0
      %v5713 = vadd.f32 0.0, %v5712
      %v5714 = vpop.f32.mrb[0].mxu0
      %5715 = vmatprep.mubr.f32.mxu0 0.0
      %5716 = vmatmul.mubr.f32.gmra.mrb[0].mxu0 %v5548
      %v5717 = vpop.f32.mrb[0].mxu0
      %v5718 = vadd.f32 0.0, %v5717
      %v5719 = vpop.f32.mrb[0].mxu0
      %5720 = vmatprep.mubr.f32.mxu0 0.0
      %5721 = vmatmul.mubr.f32.gmra.mrb[0].mxu0 %v5551
      %v5722 = vpop.f32.mrb[0].mxu0
      %v5723 = vadd.f32 0.0, %v5722
      %v5724 = vpop.f32.mrb[0].mxu0
      %5725 = vmatprep.mubr.f32.mxu0 0.0
      %5726 = vmatmul.mubr.f32.gmra.mrb[0].mxu0 %v5554
      %v5727 = vpop.f32.mrb[0].mxu0
      %v5728 = vadd.f32 0.0, %v5727
      %v5729 = vpop.f32.mrb[0].mxu0
      %5730 = vmatprep.mubr.f32.mxu0 0.0
      %5731 = vmatmul.mubr.f32.gmra.mrb[0].mxu0 %v5557
      %v5732 = vpop.f32.mrb[0].mxu0
      %v5733 = vadd.f32 0.0, %v5732
      %v5734 = vpop.f32.mrb[0].mxu0
      %5735 = vmatprep.mubr.f32.mxu0 0.0
      %5736 = vmatmul.mubr.f32.gmra.mrb[0].mxu0 %v5560
      %v5737 = vpop.f32.mrb[0].mxu0
      %v5738 = vadd.f32 0.0, %v5737
      %v5739 = vpop.f32.mrb[0].mxu0
      %5740 = vmatprep.mubr.f32.mxu0 0.0
      %5741 = vmatmul.mubr.f32.gmra.mrb[0].mxu0 %v5563
      %v5742 = vpop.f32.mrb[0].mxu0
      %v5743 = vadd.f32 0.0, %v5742
      %v5744 = vpop.f32.mrb[0].mxu0
      %5745 = vmatprep.mubr.f32.mxu0 0.0
      %5746 = vmatmul.mubr.f32.gmra.mrb[0].mxu0 %v5566
      %v5747 = vpop.f32.mrb[0].mxu0
      %v5748 = vadd.f32 0.0, %v5747
      %v5749 = vpop.f32.mrb[0].mxu0
      %5750 = vmatprep.mubr.f32.mxu0 0.0
      %5751 = vmatmul.mubr.f32.gmra.mrb[0].mxu0 %v5569
      %v5752 = vpop.f32.mrb[0].mxu0
      %v5753 = vadd.f32 0.0, %v5752
      %v5754 = vpop.f32.mrb[0].mxu0
      %5755 = vmatprep.mubr.f32.mxu0 0.0
      %5756 = vmatmul.mubr.f32.gmra.mrb[0].mxu0 %v5572
      %v5757 = vpop.f32.mrb[0].mxu0
      %v5758 = vadd.f32 0.0, %v5757
      %v5759 = vpop.f32.mrb[0].mxu0
      %5760 = vmatprep.mubr.f32.mxu0 0.0
      %5761 = vmatmul.mubr.f32.gmra.mrb[0].mxu0 %v5575
      %v5762 = vpop.f32.mrb[0].mxu0
      %v5763 = vadd.f32 0.0, %v5762
      %v5764 = vpop.f32.mrb[0].mxu0
      %5765 = vmatprep.mubr.f32.mxu0 0.0
      %5766 = vmatmul.mubr.f32.gmra.mrb[0].mxu0 %v5578
      %v5767 = vpop.f32.mrb[0].mxu0
      %v5768 = vadd.f32 0.0, %v5767
      %v5769 = vpop.f32.mrb[0].mxu0
      %5770 = vmatprep.mubr.f32.mxu0 0.0
      %5771 = vmatmul.mubr.f32.gmra.mrb[0].mxu0 %v5581
      %v5772 = vpop.f32.mrb[0].mxu0
      %v5773 = vadd.f32 0.0, %v5772
      %v5774 = vpop.f32.mrb[0].mxu0
      %5775 = vmatprep.mubr.f32.mxu0 0.0
      %5776 = vmatmul.mubr.f32.gmra.mrb[0].mxu0 %v5584
      %v5777 = vpop.f32.mrb[0].mxu0
      %v5778 = vadd.f32 0.0, %v5777
      %v5779 = vpop.f32.mrb[0].mxu0
      %5780 = vmatprep.mubr.f32.mxu0 0.0
      %5781 = vmatmul.mubr.f32.gmra.mrb[0].mxu0 %v5587
      %v5782 = vpop.f32.mrb[0].mxu0
      %v5783 = vadd.f32 0.0, %v5782
      %v5784 = vpop.f32.mrb[0].mxu0
      %5785 = vmatprep.mubr.f32.mxu0 0.0
      %5786 = vmatmul.mubr.f32.gmra.mrb[0].mxu0 %v5590
      %v5787 = vpop.f32.mrb[0].mxu0
      %v5788 = vadd.f32 0.0, %v5787
      %v5789 = vpop.f32.mrb[0].mxu0
      %5790 = vmatprep.mubr.f32.mxu0 0.0
      %5791 = vmatmul.mubr.f32.gmra.mrb[0].mxu0 %v5593
      %v5792 = vpop.f32.mrb[0].mxu0
      %v5793 = vadd.f32 0.0, %v5792
      %v5794 = vpop.f32.mrb[0].mxu0
      %5795 = vmatprep.mubr.f32.mxu0 0.0
      %5796 = vmatmul.mubr.f32.gmra.mrb[0].mxu0 %v5596
      %v5797 = vpop.f32.mrb[0].mxu0
      %v5798 = vadd.f32 0.0, %v5797
      %v5799 = vpop.f32.mrb[0].mxu0
      %5800 = vmatprep.mubr.f32.mxu0 0.0
      %5801 = vmatmul.mubr.f32.gmra.mrb[0].mxu0 %v5599
      %v5802 = vpop.f32.mrb[0].mxu0
      %v5803 = vadd.f32 0.0, %v5802
      %v5804 = vpop.f32.mrb[0].mxu0
      %5805 = vmatprep.mubr.f32.mxu0 0.0
      %5806 = vmatmul.mubr.f32.gmra.mrb[0].mxu0 %v5602
      %v5807 = vpop.f32.mrb[0].mxu0
      %v5808 = vadd.f32 0.0, %v5807
      %v5809 = vpop.f32.mrb[0].mxu0
      %5810 = vmatprep.mubr.f32.mxu0 0.0
      %5811 = vmatmul.mubr.f32.gmra.mrb[0].mxu0 %v5605
      %v5812 = vpop.f32.mrb[0].mxu0
      %v5813 = vadd.f32 0.0, %v5812
      %v5814 = vpop.f32.mrb[0].mxu0
      %5815 = vmatprep.mubr.f32.mxu0 0.0
      %5816 = vmatmul.mubr.f32.gmra.mrb[0].mxu0 %v5608
      %v5817 = vpop.f32.mrb[0].mxu0
      %v5818 = vadd.f32 0.0, %v5817
      %v5819 = vpop.f32.mrb[0].mxu0
      %5820 = vmatprep.mubr.f32.mxu0 0.0
      %5821 = vmatmul.mubr.f32.gmra.mrb[0].mxu0 %v5611
      %v5822 = vpop.f32.mrb[0].mxu0
      %v5823 = vadd.f32 0.0, %v5822
      %v5824 = vpop.f32.mrb[0].mxu0
      %5825 = vmatprep.mubr.f32.mxu0 0.0
      %5826 = vmatmul.mubr.f32.gmra.mrb[0].mxu0 %v5614
      %v5827 = vpop.f32.mrb[0].mxu0
      %v5828 = vadd.f32 0.0, %v5827
      %v5829 = vpop.f32.mrb[0].mxu0
      %5830 = vmatprep.mubr.f32.mxu0 0.0
      %5831 = vmatmul.mubr.f32.gmra.mrb[0].mxu0 %v5617
      %v5832 = vpop.f32.mrb[0].mxu0
      %v5833 = vadd.f32 0.0, %v5832
      %v5834 = vpop.f32.mrb[0].mxu0
      %5835 = vmatprep.mubr.f32.mxu0 0.0
      %5836 = vmatmul.mubr.f32.gmra.mrb[0].mxu0 %v5620
      %v5837 = vpop.f32.mrb[0].mxu0
      %v5838 = vadd.f32 0.0, %v5837
      %v5839 = vpop.f32.mrb[0].mxu0
      %5840 = vmatprep.mubr.f32.mxu0 0.0
      %5841 = vmatmul.mubr.f32.gmra.mrb[0].mxu0 %v5623
      %v5842 = vpop.f32.mrb[0].mxu0
      %v5843 = vadd.f32 0.0, %v5842
      %v5844 = vpop.f32.mrb[0].mxu0
      %5845 = vmatprep.mubr.f32.mxu0 0.0
      %5846 = vmatmul.mubr.f32.gmra.mrb[0].mxu0 %v5626
      %v5847 = vpop.f32.mrb[0].mxu0
      %v5848 = vadd.f32 0.0, %v5847
      %v5849 = vpop.f32.mrb[0].mxu0
      %5850 = vmatprep.mubr.f32.mxu0 0.0
      %5851 = vmatmul.mubr.f32.gmra.mrb[0].mxu0 %v5629
      %v5852 = vpop.f32.mrb[0].mxu0
      %v5853 = vadd.f32 0.0, %v5852
      %v5854 = vpop.f32.mrb[0].mxu0
      %5855 = vdwg.mxu0
      %5888 = vrot.lane.b32.xlu0 %v5698, 120
      %v5889 = vpop.permute.xlu0 %5888
      %5890 = vrot.lane.b32.xlu0 %v5703, 120
      %v5891 = vpop.permute.xlu0 %5890
      %5892 = vrot.lane.b32.xlu0 %v5708, 120
      %v5893 = vpop.permute.xlu0 %5892
      %5894 = vrot.lane.b32.xlu0 %v5713, 120
      %v5895 = vpop.permute.xlu0 %5894
      %5896 = vrot.lane.b32.xlu0 %v5718, 120
      %v5897 = vpop.permute.xlu0 %5896
      %5898 = vrot.lane.b32.xlu0 %v5723, 120
      %v5899 = vpop.permute.xlu0 %5898
      %5900 = vrot.lane.b32.xlu0 %v5728, 120
      %v5901 = vpop.permute.xlu0 %5900
      %5902 = vrot.lane.b32.xlu0 %v5733, 120
      %v5903 = vpop.permute.xlu0 %5902
      %5904 = vrot.lane.b32.xlu0 %v5738, 120
      %v5905 = vpop.permute.xlu0 %5904
      %5906 = vrot.lane.b32.xlu0 %v5743, 120
      %v5907 = vpop.permute.xlu0 %5906
      %5908 = vrot.lane.b32.xlu0 %v5748, 120
      %v5909 = vpop.permute.xlu0 %5908
      %5910 = vrot.lane.b32.xlu0 %v5753, 120
      %v5911 = vpop.permute.xlu0 %5910
      %5912 = vrot.lane.b32.xlu0 %v5758, 120
      %v5913 = vpop.permute.xlu0 %5912
      %5914 = vrot.lane.b32.xlu0 %v5763, 120
      %v5915 = vpop.permute.xlu0 %5914
      %5916 = vrot.lane.b32.xlu0 %v5768, 120
      %v5917 = vpop.permute.xlu0 %5916
      %5918 = vrot.lane.b32.xlu0 %v5773, 120
      %v5919 = vpop.permute.xlu0 %5918
      %5920 = vrot.lane.b32.xlu0 %v5778, 120
      %v5921 = vpop.permute.xlu0 %5920
      %5922 = vrot.lane.b32.xlu0 %v5783, 120
      %v5923 = vpop.permute.xlu0 %5922
      %5924 = vrot.lane.b32.xlu0 %v5788, 120
      %v5925 = vpop.permute.xlu0 %5924
      %5926 = vrot.lane.b32.xlu0 %v5793, 120
      %v5927 = vpop.permute.xlu0 %5926
      %5928 = vrot.lane.b32.xlu0 %v5798, 120
      %v5929 = vpop.permute.xlu0 %5928
      %5930 = vrot.lane.b32.xlu0 %v5803, 120
      %v5931 = vpop.permute.xlu0 %5930
      %5932 = vrot.lane.b32.xlu0 %v5808, 120
      %v5933 = vpop.permute.xlu0 %5932
      %5934 = vrot.lane.b32.xlu0 %v5813, 120
      %v5935 = vpop.permute.xlu0 %5934
      %5936 = vrot.lane.b32.xlu0 %v5818, 120
      %v5937 = vpop.permute.xlu0 %5936
      %5938 = vrot.lane.b32.xlu0 %v5823, 120
      %v5939 = vpop.permute.xlu0 %5938
      %5940 = vrot.lane.b32.xlu0 %v5828, 120
      %v5941 = vpop.permute.xlu0 %5940
      %5942 = vrot.lane.b32.xlu0 %v5833, 120
      %v5943 = vpop.permute.xlu0 %5942
      %5944 = vrot.lane.b32.xlu0 %v5838, 120
      %v5945 = vpop.permute.xlu0 %5944
      %5946 = vrot.lane.b32.xlu0 %v5843, 120
      %v5947 = vpop.permute.xlu0 %5946
      %5948 = vrot.lane.b32.xlu0 %v5848, 120
      %v5949 = vpop.permute.xlu0 %5948
      %5950 = vrot.lane.b32.xlu0 %v5853, 120
      %v5951 = vpop.permute.xlu0 %5950
      %v5984 = vadd.f32 %v5889, 0.0
      %v5985 = vadd.f32 %v5891, 0.0
      %v5986 = vadd.f32 %v5698, %v5893
      %v5987 = vadd.f32 %v5703, %v5895
      %v5988 = vadd.f32 %v5708, %v5897
      %v5989 = vadd.f32 %v5713, %v5899
      %v5990 = vadd.f32 %v5718, %v5901
      %v5991 = vadd.f32 %v5723, %v5903
      %v5992 = vadd.f32 %v5728, %v5905
      %v5993 = vadd.f32 %v5733, %v5907
      %v5994 = vadd.f32 %v5738, %v5909
      %v5995 = vadd.f32 %v5743, %v5911
      %v5996 = vadd.f32 %v5748, %v5913
      %v5997 = vadd.f32 %v5753, %v5915
      %v5998 = vadd.f32 %v5758, %v5917
      %v5999 = vadd.f32 %v5763, %v5919
      %v6000 = vadd.f32 %v5768, %v5921
      %v6001 = vadd.f32 %v5773, %v5923
      %v6002 = vadd.f32 %v5778, %v5925
      %v6003 = vadd.f32 %v5783, %v5927
      %v6004 = vadd.f32 %v5788, %v5929
      %v6005 = vadd.f32 %v5793, %v5931
      %v6006 = vadd.f32 %v5798, %v5933
      %v6007 = vadd.f32 %v5803, %v5935
      %v6008 = vadd.f32 %v5808, %v5937
      %v6009 = vadd.f32 %v5813, %v5939
      %v6010 = vadd.f32 %v5818, %v5941
      %v6011 = vadd.f32 %v5823, %v5943
      %v6012 = vadd.f32 %v5828, %v5945
      %v6013 = vadd.f32 %v5833, %v5947
      %v6014 = vadd.f32 %v5838, %v5949
      %v6015 = vadd.f32 %v5843, %v5951
      %6017 = vrot.lane.b32.xlu0 %v5708, 112
      %v6018 = vpop.permute.xlu0 %6017
      %6019 = vrot.lane.b32.xlu0 %v5713, 112
      %v6020 = vpop.permute.xlu0 %6019
      %6021 = vrot.lane.b32.xlu0 %v5718, 112
      %v6022 = vpop.permute.xlu0 %6021
      %6023 = vrot.lane.b32.xlu0 %v5723, 112
      %v6024 = vpop.permute.xlu0 %6023
      %6025 = vrot.lane.b32.xlu0 %v5728, 112
      %v6026 = vpop.permute.xlu0 %6025
      %6027 = vrot.lane.b32.xlu0 %v5733, 112
      %v6028 = vpop.permute.xlu0 %6027
      %6029 = vrot.lane.b32.xlu0 %v5738, 112
      %v6030 = vpop.permute.xlu0 %6029
      %6031 = vrot.lane.b32.xlu0 %v5743, 112
      %v6032 = vpop.permute.xlu0 %6031
      %6033 = vrot.lane.b32.xlu0 %v5748, 112
      %v6034 = vpop.permute.xlu0 %6033
      %6035 = vrot.lane.b32.xlu0 %v5753, 112
      %v6036 = vpop.permute.xlu0 %6035
      %6037 = vrot.lane.b32.xlu0 %v5758, 112
      %v6038 = vpop.permute.xlu0 %6037
      %6039 = vrot.lane.b32.xlu0 %v5763, 112
      %v6040 = vpop.permute.xlu0 %6039
      %6041 = vrot.lane.b32.xlu0 %v5768, 112
      %v6042 = vpop.permute.xlu0 %6041
      %6043 = vrot.lane.b32.xlu0 %v5773, 112
      %v6044 = vpop.permute.xlu0 %6043
      %6045 = vrot.lane.b32.xlu0 %v5778, 112
      %v6046 = vpop.permute.xlu0 %6045
      %6047 = vrot.lane.b32.xlu0 %v5783, 112
      %v6048 = vpop.permute.xlu0 %6047
      %6049 = vrot.lane.b32.xlu0 %v5788, 112
      %v6050 = vpop.permute.xlu0 %6049
      %6051 = vrot.lane.b32.xlu0 %v5793, 112
      %v6052 = vpop.permute.xlu0 %6051
      %6053 = vrot.lane.b32.xlu0 %v5798, 112
      %v6054 = vpop.permute.xlu0 %6053
      %6055 = vrot.lane.b32.xlu0 %v5803, 112
      %v6056 = vpop.permute.xlu0 %6055
      %6057 = vrot.lane.b32.xlu0 %v5808, 112
      %v6058 = vpop.permute.xlu0 %6057
      %6059 = vrot.lane.b32.xlu0 %v5813, 112
      %v6060 = vpop.permute.xlu0 %6059
      %6061 = vrot.lane.b32.xlu0 %v5818, 112
      %v6062 = vpop.permute.xlu0 %6061
      %6063 = vrot.lane.b32.xlu0 %v5823, 112
      %v6064 = vpop.permute.xlu0 %6063
      %6065 = vrot.lane.b32.xlu0 %v5828, 112
      %v6066 = vpop.permute.xlu0 %6065
      %6067 = vrot.lane.b32.xlu0 %v5833, 112
      %v6068 = vpop.permute.xlu0 %6067
      %6069 = vrot.lane.b32.xlu0 %v5838, 112
      %v6070 = vpop.permute.xlu0 %6069
      %6071 = vrot.lane.b32.xlu0 %v5843, 112
      %v6072 = vpop.permute.xlu0 %6071
      %6073 = vrot.lane.b32.xlu0 %v5848, 112
      %v6074 = vpop.permute.xlu0 %6073
      %6075 = vrot.lane.b32.xlu0 %v5853, 112
      %v6076 = vpop.permute.xlu0 %6075
      %6077 = vrot.lane.b32.xlu0 0.0, 112
      %v6078 = vpop.permute.xlu0 %6077
      %v6110 = vadd.f32 %v5984, %v6018
      %v6111 = vadd.f32 %v5985, %v6020
      %v6112 = vadd.f32 %v5986, %v6022
      %v6113 = vadd.f32 %v5987, %v6024
      %v6114 = vadd.f32 %v5988, %v6026
      %v6115 = vadd.f32 %v5989, %v6028
      %v6116 = vadd.f32 %v5990, %v6030
      %v6117 = vadd.f32 %v5991, %v6032
      %v6118 = vadd.f32 %v5992, %v6034
      %v6119 = vadd.f32 %v5993, %v6036
      %v6120 = vadd.f32 %v5994, %v6038
      %v6121 = vadd.f32 %v5995, %v6040
      %v6122 = vadd.f32 %v5996, %v6042
      %v6123 = vadd.f32 %v5997, %v6044
      %v6124 = vadd.f32 %v5998, %v6046
      %v6125 = vadd.f32 %v5999, %v6048
      %v6126 = vadd.f32 %v6000, %v6050
      %v6127 = vadd.f32 %v6001, %v6052
      %v6128 = vadd.f32 %v6002, %v6054
      %v6129 = vadd.f32 %v6003, %v6056
      %v6130 = vadd.f32 %v6004, %v6058
      %v6131 = vadd.f32 %v6005, %v6060
      %v6132 = vadd.f32 %v6006, %v6062
      %v6133 = vadd.f32 %v6007, %v6064
      %v6134 = vadd.f32 %v6008, %v6066
      %v6135 = vadd.f32 %v6009, %v6068
      %v6136 = vadd.f32 %v6010, %v6070
      %v6137 = vadd.f32 %v6011, %v6072
      %v6138 = vadd.f32 %v6012, %v6074
      %v6139 = vadd.f32 %v6013, %v6076
      %v6140 = vadd.f32 %v6014, %v6078
      %v6141 = vadd.f32 %v6015, %v6078
      %v6142 = vld [vmem:[%s10] sm:$0x1]
      %v6144 = vlaneseq
      %v6145 = vshrl.u32 %v6144, 7
      %v6146 = vsub.s32 0, %v6145
      %v6147 = vrot.slane %v6142, %v6146
      %v6149 = vadd.f32 %v6110, %v6147
      %v6150 = vadd.f32 %v6111, %v6147
      %v6151 = vadd.f32 %v6112, %v6147
      %v6152 = vadd.f32 %v6113, %v6147
      %v6153 = vadd.f32 %v6114, %v6147
      %v6154 = vadd.f32 %v6115, %v6147
      %v6155 = vadd.f32 %v6116, %v6147
      %v6156 = vadd.f32 %v6117, %v6147
      %v6157 = vadd.f32 %v6118, %v6147
      %v6158 = vadd.f32 %v6119, %v6147
      %v6159 = vadd.f32 %v6120, %v6147
      %v6160 = vadd.f32 %v6121, %v6147
      %v6161 = vadd.f32 %v6122, %v6147
      %v6162 = vadd.f32 %v6123, %v6147
      %v6163 = vadd.f32 %v6124, %v6147
      %v6164 = vadd.f32 %v6125, %v6147
      %v6165 = vadd.f32 %v6126, %v6147
      %v6166 = vadd.f32 %v6127, %v6147
      %v6167 = vadd.f32 %v6128, %v6147
      %v6168 = vadd.f32 %v6129, %v6147
      %v6169 = vadd.f32 %v6130, %v6147
      %v6170 = vadd.f32 %v6131, %v6147
      %v6171 = vadd.f32 %v6132, %v6147
      %v6172 = vadd.f32 %v6133, %v6147
      %v6173 = vadd.f32 %v6134, %v6147
      %v6174 = vadd.f32 %v6135, %v6147
      %v6175 = vadd.f32 %v6136, %v6147
      %v6176 = vadd.f32 %v6137, %v6147
      %v6177 = vadd.f32 %v6138, %v6147
      %v6178 = vadd.f32 %v6139, %v6147
      %v6179 = vadd.f32 %v6140, %v6147
      %v6180 = vadd.f32 %v6141, %v6147
      %v6181 = vmax.f32 %v6149, 0.0
      %v6182 = vmax.f32 %v6150, 0.0
      %v6183 = vmax.f32 %v6151, 0.0
      %v6184 = vmax.f32 %v6152, 0.0
      %v6185 = vmax.f32 %v6153, 0.0
      %v6186 = vmax.f32 %v6154, 0.0
      %v6187 = vmax.f32 %v6155, 0.0
      %v6188 = vmax.f32 %v6156, 0.0
      %v6189 = vmax.f32 %v6157, 0.0
      %v6190 = vmax.f32 %v6158, 0.0
      %v6191 = vmax.f32 %v6159, 0.0
      %v6192 = vmax.f32 %v6160, 0.0
      %v6193 = vmax.f32 %v6161, 0.0
      %v6194 = vmax.f32 %v6162, 0.0
      %v6195 = vmax.f32 %v6163, 0.0
      %v6196 = vmax.f32 %v6164, 0.0
      %v6197 = vmax.f32 %v6165, 0.0
      %v6198 = vmax.f32 %v6166, 0.0
      %v6199 = vmax.f32 %v6167, 0.0
      %v6200 = vmax.f32 %v6168, 0.0
      %v6201 = vmax.f32 %v6169, 0.0
      %v6202 = vmax.f32 %v6170, 0.0
      %v6203 = vmax.f32 %v6171, 0.0
      %v6204 = vmax.f32 %v6172, 0.0
      %v6205 = vmax.f32 %v6173, 0.0
      %v6206 = vmax.f32 %v6174, 0.0
      %v6207 = vmax.f32 %v6175, 0.0
      %v6208 = vmax.f32 %v6176, 0.0
      %v6209 = vmax.f32 %v6177, 0.0
      %v6210 = vmax.f32 %v6178, 0.0
      %v6211 = vmax.f32 %v6179, 0.0
      %v6212 = vmax.f32 %v6180, 0.0
      %6213 = vst.msk [vmem:[%s386] sm:$0xff] %vm1710, %v6181
      %6214 = vst.msk [vmem:[%s386 + $0x8] sm:$0xff] %vm1710, %v6182
      %6215 = vst.msk [vmem:[%s386 + $0x10] sm:$0xff] %vm1710, %v6183
      %6216 = vst.msk [vmem:[%s386 + $0x18] sm:$0xff] %vm1710, %v6184
      %6217 = vst.msk [vmem:[%s386 + $0x20] sm:$0xff] %vm1710, %v6185
      %6218 = vst.msk [vmem:[%s386 + $0x28] sm:$0xff] %vm1710, %v6186
      %6219 = vst.msk [vmem:[%s386 + $0x30] sm:$0xff] %vm1710, %v6187
      %6220 = vst.msk [vmem:[%s386 + $0x38] sm:$0xff] %vm1710, %v6188
      %6221 = vst.msk [vmem:[%s386 + $0x40] sm:$0xff] %vm1710, %v6189
      %6222 = vst.msk [vmem:[%s386 + $0x48] sm:$0xff] %vm1710, %v6190
      %6223 = vst.msk [vmem:[%s386 + $0x50] sm:$0xff] %vm1710, %v6191
      %6224 = vst.msk [vmem:[%s386 + $0x58] sm:$0xff] %vm1710, %v6192
      %6225 = vst.msk [vmem:[%s386 + $0x60] sm:$0xff] %vm1710, %v6193
      %6226 = vst.msk [vmem:[%s386 + $0x68] sm:$0xff] %vm1710, %v6194
      %6227 = vst.msk [vmem:[%s386 + $0x70] sm:$0xff] %vm1710, %v6195
      %6228 = vst.msk [vmem:[%s386 + $0x78] sm:$0xff] %vm1710, %v6196
      %6229 = vst.msk [vmem:[%s386 + $0x80] sm:$0xff] %vm1710, %v6197
      %6230 = vst.msk [vmem:[%s386 + $0x88] sm:$0xff] %vm1710, %v6198
      %6231 = vst.msk [vmem:[%s386 + $0x90] sm:$0xff] %vm1710, %v6199
      %6232 = vst.msk [vmem:[%s386 + $0x98] sm:$0xff] %vm1710, %v6200
      %6233 = vst.msk [vmem:[%s386 + $0xa0] sm:$0xff] %vm1710, %v6201
      %6234 = vst.msk [vmem:[%s386 + $0xa8] sm:$0xff] %vm1710, %v6202
      %6235 = vst.msk [vmem:[%s386 + $0xb0] sm:$0xff] %vm1710, %v6203
      %6236 = vst.msk [vmem:[%s386 + $0xb8] sm:$0xff] %vm1710, %v6204
      %6237 = vst.msk [vmem:[%s386 + $0xc0] sm:$0xff] %vm1710, %v6205
      %6238 = vst.msk [vmem:[%s386 + $0xc8] sm:$0xff] %vm1710, %v6206
      %6239 = vst.msk [vmem:[%s386 + $0xd0] sm:$0xff] %vm1710, %v6207
      %6240 = vst.msk [vmem:[%s386 + $0xd8] sm:$0xff] %vm1710, %v6208
      %6241 = vst.msk [vmem:[%s386 + $0xe0] sm:$0xff] %vm1710, %v6209
      %6242 = vst.msk [vmem:[%s386 + $0xe8] sm:$0xff] %vm1710, %v6210
      %6243 = vst.msk [vmem:[%s386 + $0xf0] sm:$0xff] %vm1710, %v6211
      %6244 = vst.msk [vmem:[%s386 + $0xf8] sm:$0xff] %vm1710, %v6212
      %p6245 = scmp.lt.s32.totalorder %s22, 1
      %s6246 = scalar_select %p6245, %s22, 1
      %s6247 = smul.addr %s6246, 32
      %s6248 = smul.addr %s6247, 8
      %s6249 = scalar_lea.vmem %s11, %s6248
      // Predicated region
      $region65: #{cpm_forward.1} parent=63 // pred_check
        %p6250 = pneg %p276
      $region66: #{cpm_forward.1} parent=63 // pred_check_branch
        %6252 = sbr.rel (%p6250) target = $region68
      $region67: #{cpm_forward.1} parent=63 // pred_region
        _
      $region68: #{cpm_forward.1} parent=63 // pred_fallthru
        _
    $region64: #{cpm_forward.1} parent=5 // pred_fallthru
      _
    %p6253 = scmp.le.s32.totalorder 2, %s17
    // Predicated region
    $region69: #{cpm_forward.1} parent=5 // pred_check
      %p6254 = pneg %p6253
    $region70: #{cpm_forward.1} parent=5 // pred_check_branch
      %6256 = sbr.rel (%p6254) target = $region72
    $region71: #{cpm_forward.1} parent=5 // pred_region
      %s6257 = ssub.s32 %s17, 2
      // Predicated region
      $region73: #{cpm_forward.1} parent=71 // pred_check
        %p6258 = pneg %p282
      $region74: #{cpm_forward.1} parent=71 // pred_check_branch
        %6260 = sbr.rel (%p6258) target = $region76
      $region75: #{cpm_forward.1} parent=71 // pred_region
        %p6261 = scmp.lt.s32.totalorder %s23, 1
        %s6262 = scalar_select %p6261, %s23, 1
        %s6263 = smul.addr %s6262, 32
        %s6264 = smul.addr %s6263, 8
        %s6265 = scalar_lea.vmem %s11, %s6264
      $region76: #{cpm_forward.1} parent=71 // pred_fallthru
        _
    $region72: #{cpm_forward.1} parent=5 // pred_fallthru
      _
  $region6: #{cpm_forward.1} parent=0 // loop_footer
    %s21 = sadd.s32 1, %s17
  $region7: #{cpm_forward.1} parent=0 // loop_footer_branch
    %16 = sbr.rel target = $region3
  $region8: #{cpm_forward.1} parent=0 // loop_exit
    _

</llo_original>
